<compile_context>
chip_gen: v7x
topology: tpu7x:2x2x1
jax: 0.10.0
libtpu: 0.0.40
codegen_flags: <defaults>
</compile_context>

<pallas_src>
import jax
import jax.numpy as jnp
from jax import lax
from jax.experimental import pallas as pl
from jax.experimental.pallas import tpu as pltpu

# ---- small synthetic SpliceBERT config -------------------------------------
HIDDEN = 32
NUM_HEADS = 2
HEAD_DIM = HIDDEN // NUM_HEADS
INTERMEDIATE = 64
NUM_LAYERS = 2
VOCAB = 16
MAX_POS = 64
NUM_LABELS = 3
PAD = 6            # matches SpliceBERTForTokenCls.pad
LN_EPS = 1e-12
LANE = 128         # lane-dense padding unit
NEG_INF = -1e30

# packed weight-slab column offsets (each matrix 128-lane aligned)
_QKV_OFF = 0 * LANE     # [H, 3H]  fused QKV projection
_WO_OFF = 1 * LANE      # [H, H]   attention output projection
_W1_OFF = 2 * LANE      # [H, I]   FFN up-projection
_W2T_OFF = 3 * LANE     # [H, I]   FFN down-projection, stored transposed
# packed bias/LN-slab sublane rows
_R_BQKV, _R_BO, _R_LN1G, _R_LN1B, _R_B1, _R_B2, _R_LN2G, _R_LN2B = range(8)
# embedding-slab sublane rows
_ROW_WORD = 0                       # VOCAB rows: word embeddings
_ROW_POS = VOCAB                    # MAX_POS rows: pos_emb + type_emb[0]
_ROW_EMB_LN_G = VOCAB + MAX_POS
_ROW_EMB_LN_B = VOCAB + MAX_POS + 1


# --------------------------- in-kernel helpers ------------------------------
def _layernorm(x, g, b):
    mu = jnp.mean(x, axis=-1, keepdims=True)
    xc = x - mu
    var = jnp.mean(xc * xc, axis=-1, keepdims=True)
    return xc * lax.rsqrt(var + LN_EPS) * g + b


def _gelu(y):
    # TODO(synk): HF BERT defaults to erf-GELU; tanh approximation used here
    # (erf has no guaranteed Mosaic lowering).
    return 0.5 * y * (1.0 + jnp.tanh(0.7978845608028654 * (y + 0.044715 * y * y * y)))


def _softmax_rows(s):
    s = s - jnp.max(s, axis=-1, keepdims=True)
    p = jnp.exp(s)
    return p * pl.reciprocal(jnp.sum(p, axis=-1, keepdims=True), approx=True)


# ------------------------------ fused kernel --------------------------------
def _fused_forward(ids, embed_slab, w_slab, vec_slab, head_slab, *, B, L, Lp, L_out):
    """ids: [B*Lp, 1] int32 -> interior-row, lane-padded logits [B, L_out, 128]."""
    scale = HEAD_DIM ** -0.5
    dn_last = (((1,), (1,)), ((), ()))   # contract last dims of both operands

    def kernel(ids_ref, emb_ref, w_ref, vec_ref, head_ref, out_ref):
        f32 = jnp.float32

        # ---- embeddings via one-hot matmul; all tables VMEM-resident ----
        ids_col = ids_ref[...]                                        # [B*Lp, 1]
        onehot = (ids_col == lax.broadcasted_iota(
            jnp.int32, (B * Lp, VOCAB), 1)).astype(f32)               # [B*Lp, V]
        word = jnp.dot(onehot, emb_ref[_ROW_WORD:_ROW_WORD + VOCAB, :],
                       preferred_element_type=f32)                    # [B*Lp, H]
        pos = emb_ref[_ROW_POS:_ROW_POS + Lp, :]                      # [Lp, H]
        pos = jnp.concatenate([pos] * B, axis=0)                      # [B*Lp, H]
        x = _layernorm(word + pos,
                       emb_ref[_ROW_EMB_LN_G:_ROW_EMB_LN_G + 1, :],
                       emb_ref[_ROW_EMB_LN_B:_ROW_EMB_LN_B + 1, :])   # [B*Lp, H]

        # additive mask for padded key columns (key index >= L)
        col = lax.broadcasted_iota(jnp.int32, (1, Lp), 1)
        mask_bias = jnp.where(col < L, 0.0, NEG_INF).astype(f32)      # [1, Lp]

        for li in range(NUM_LAYERS):                                  # static unroll
            # ---- fused QKV projection over the whole [B*Lp, H] slab ----
            qkv = jnp.dot(x, w_ref[li, :, _QKV_OFF:_QKV_OFF + 3 * HIDDEN],
                          preferred_element_type=f32)
            qkv = qkv + vec_ref[li, _R_BQKV:_R_BQKV + 1, 0:3 * HIDDEN]

            # ---- per-(batch, head) attention; output projection folded in ----
            # TODO(synk): no attention_mask / token_type_ids path (the
            # reference wrapper never passes them; token type fixed to 0).
            attn_rows = []
            for b in range(B):
                r0 = b * Lp
                acc = None
                for h in range(NUM_HEADS):
                    c = h * HEAD_DIM
                    q = qkv[r0:r0 + Lp, c:c + HEAD_DIM]
                    k = qkv[r0:r0 + Lp, HIDDEN + c:HIDDEN + c + HEAD_DIM]
                    v = qkv[r0:r0 + Lp, 2 * HIDDEN + c:2 * HIDDEN + c + HEAD_DIM]
                    # contract last dims of q and k: no k.T / XLU transpose
                    s = lax.dot_general(q, k, dn_last,
                                        preferred_element_type=f32) * scale
                    p = _softmax_rows(s + mask_bias)                  # [Lp, Lp]
                    ctx = jnp.dot(p, v, preferred_element_type=f32)   # [Lp, hd]
                    contrib = jnp.dot(
                        ctx, w_ref[li, c:c + HEAD_DIM, _WO_OFF:_WO_OFF + HIDDEN],
                        preferred_element_type=f32)                   # [Lp, H]
                    acc = contrib if acc is None else acc + contrib
                attn_rows.append(acc)
            attn = jnp.concatenate(attn_rows, axis=0)                 # [B*Lp, H]
            attn = attn + vec_ref[li, _R_BO:_R_BO + 1, 0:HIDDEN]
            x = _layernorm(attn + x,
                           vec_ref[li, _R_LN1G:_R_LN1G + 1, 0:HIDDEN],
                           vec_ref[li, _R_LN1B:_R_LN1B + 1, 0:HIDDEN])

            # ---- feed-forward (down-projection stored pre-transposed) ----
            hmid = jnp.dot(x, w_ref[li, :, _W1_OFF:_W1_OFF + INTERMEDIATE],
                           preferred_element_type=f32)
            hmid = _gelu(hmid + vec_ref[li, _R_B1:_R_B1 + 1, 0:INTERMEDIATE])
            hout = lax.dot_general(
                hmid, w_ref[li, :, _W2T_OFF:_W2T_OFF + INTERMEDIATE],
                dn_last, preferred_element_type=f32)
            hout = hout + vec_ref[li, _R_B2:_R_B2 + 1, 0:HIDDEN]
            x = _layernorm(hout + x,
                           vec_ref[li, _R_LN2G:_R_LN2G + 1, 0:HIDDEN],
                           vec_ref[li, _R_LN2B:_R_LN2B + 1, 0:HIDDEN])

        # ---- classifier: interior rows only, 128-lane-dense store ----
        cls_w = head_ref[0:HIDDEN, :]                                 # [H, 128]
        cls_b = head_ref[HIDDEN:HIDDEN + 1, :]                        # [1, 128]
        for b in range(B):
            xb = x[b * Lp + PAD:b * Lp + PAD + L_out, :]              # [L_out, H]
            out_ref[b] = jnp.dot(xb, cls_w, preferred_element_type=f32) + cls_b

    return pl.pallas_call(
        kernel,
        grid=(1,),   # single step: batch flattened into the sublane dim
        out_shape=jax.ShapeDtypeStruct((B, L_out, LANE), jnp.float32),
        in_specs=[
            pl.BlockSpec(ids.shape, lambda i: (0, 0)),
            pl.BlockSpec(embed_slab.shape, lambda i: (0, 0)),
            pl.BlockSpec(w_slab.shape, lambda i: (0, 0, 0)),
            pl.BlockSpec(vec_slab.shape, lambda i: (0, 0, 0)),
            pl.BlockSpec(head_slab.shape, lambda i: (0, 0)),
        ],
        out_specs=pl.BlockSpec((B, L_out, LANE), lambda i: (0, 0, 0)),
        compiler_params=pltpu.CompilerParams(
            dimension_semantics=("arbitrary",)),
    )(ids, embed_slab, w_slab, vec_slab, head_slab)


# --------------------------- parameter init ---------------------------------
def init_params(key):
    ks = jax.random.split(key, 4 + NUM_LAYERS)

    def w(k, shape):
        return 0.02 * jax.random.normal(k, shape, dtype=jnp.float32)

    def pad_lanes(m, width=LANE):
        return jnp.pad(m, ((0, 0), (0, width - m.shape[1])))

    # embedding slab: word | pos+type | emb LN gamma | emb LN beta
    word_emb = w(ks[0], (VOCAB, HIDDEN))
    pos_type = w(ks[1], (MAX_POS, HIDDEN)) + w(ks[2], (2, HIDDEN))[0][None, :]
    embed_slab = jnp.concatenate(
        [word_emb, pos_type,
         jnp.ones((1, HIDDEN), jnp.float32),
         jnp.zeros((1, HIDDEN), jnp.float32)], axis=0)     # [V + MAX_POS + 2, H]

    # classifier head slab: lane-padded weight + bias row (lane-dense store)
    cls_w = jnp.zeros((HIDDEN, LANE), jnp.float32)
    cls_w = cls_w.at[:, :NUM_LABELS].set(w(ks[3], (HIDDEN, NUM_LABELS)))
    head_slab = jnp.concatenate(
        [cls_w, jnp.zeros((1, LANE), jnp.float32)], axis=0)            # [H+1, 128]

    # per-layer packed slabs
    w_layers, vec_layers = [], []
    for li in range(NUM_LAYERS):
        lk = jax.random.split(ks[4 + li], 6)
        wqkv = jnp.concatenate([w(lk[0], (HIDDEN, HIDDEN)),
                                w(lk[1], (HIDDEN, HIDDEN)),
                                w(lk[2], (HIDDEN, HIDDEN))], axis=1)   # [H, 3H]
        wo = w(lk[3], (HIDDEN, HIDDEN))                                # [H, H]
        w1 = w(lk[4], (HIDDEN, INTERMEDIATE))                          # [H, I]
        w2t = w(lk[5], (INTERMEDIATE, HIDDEN)).T                       # [H, I]
        w_layers.append(jnp.concatenate(
            [pad_lanes(wqkv), pad_lanes(wo), pad_lanes(w1), pad_lanes(w2t)],
            axis=1))                                                   # [H, 4*128]

        def row(v):
            return pad_lanes(v.reshape(1, -1))
        vec_layers.append(jnp.concatenate([
            row(jnp.zeros((3 * HIDDEN,), jnp.float32)),    # bqkv
            row(jnp.zeros((HIDDEN,), jnp.float32)),        # bo
            row(jnp.ones((HIDDEN,), jnp.float32)),         # ln1 gamma
            row(jnp.zeros((HIDDEN,), jnp.float32)),        # ln1 beta
            row(jnp.zeros((INTERMEDIATE,), jnp.float32)),  # b1
            row(jnp.zeros((HIDDEN,), jnp.float32)),        # b2
            row(jnp.ones((HIDDEN,), jnp.float32)),         # ln2 gamma
            row(jnp.zeros((HIDDEN,), jnp.float32)),        # ln2 beta
        ], axis=0))                                                    # [8, 128]

    return {
        "embed_slab": embed_slab,
        "head_slab": head_slab,
        "w_slab": jnp.stack(w_layers),       # [NUM_LAYERS, H, 4*128]
        "vec_slab": jnp.stack(vec_layers),   # [NUM_LAYERS, 8, 128]
    }


# ------------------------------ forward -------------------------------------
def splicebert_token_cls_forward(params, input_ids):
    # 1) drop the first token, as in the PyTorch wrapper
    input_ids = input_ids[:, 1:]
    B, L = input_ids.shape
    assert L > 2 * PAD
    L_out = L - 2 * PAD

    # 2) pad the sequence to a sublane multiple; padded keys masked in-kernel
    Lp = ((L + 7) // 8) * 8
    assert Lp <= MAX_POS
    ids = jnp.pad(input_ids.astype(jnp.int32), ((0, 0), (0, Lp - L)))
    ids = ids.reshape(B * Lp, 1)

    # 3) fused embeddings + encoder + classifier head (single pallas_call)
    logits_pad = _fused_forward(ids, params["embed_slab"], params["w_slab"],
                                params["vec_slab"], params["head_slab"],
                                B=B, L=L, Lp=Lp, L_out=L_out)   # [B, L_out, 128]

    # 4) wrapper post-processing: unpad lanes, transpose(1, 2)
    return logits_pad[:, :, :NUM_LABELS].transpose(0, 2, 1)     # [B, labels, L_out]


# -------------------------------- main --------------------------------------
if __name__ == "__main__":
    key = jax.random.PRNGKey(0)
    pkey, dkey = jax.random.split(key)
    params = init_params(pkey)

    B, S = 2, 32  # after drop-first and 6/6 flank removal -> 19 tokens
    input_ids = jax.random.randint(dkey, (B, S), 0, VOCAB, dtype=jnp.int32)

    fwd = jax.jit(lambda ids: splicebert_token_cls_forward(params, ids))
    out = fwd(input_ids)
    jax.block_until_ready(out)

    expected = (B, NUM_LABELS, S - 1 - 2 * PAD)
    assert out.shape == expected, (out.shape, expected)
    assert out.dtype == jnp.float32
    print("KERNEL_OK")
</pallas_src>

<mosaic_0001>
module attributes {stable_mosaic.version = 11 : i64} {
  func.func @kernel(%arg0: i32, %arg1: memref<64x1xi32, #tpu.memory_space<vmem>>, %arg2: memref<82x32xf32, #tpu.memory_space<vmem>>, %arg3: memref<2x32x512xf32, #tpu.memory_space<vmem>>, %arg4: memref<2x8x128xf32, #tpu.memory_space<vmem>>, %arg5: memref<33x128xf32, #tpu.memory_space<vmem>>, %arg6: memref<2x19x128xf32, #tpu.memory_space<vmem>>) attributes {dimension_semantics = [#tpu.dimension_semantics<arbitrary>], iteration_bounds = array<i64: 1>, scalar_prefetch = 0 : i64, scratch_operands = 0 : i64, tpu.core_type = #tpu.core_type<tc>, window_params = [{pipeline_mode = #tpu.pipeline_mode<synchronous>, transform_indices = @transform_0, window_bounds = array<i64: 64, 1>}, {pipeline_mode = #tpu.pipeline_mode<synchronous>, transform_indices = @transform_1, window_bounds = array<i64: 82, 32>}, {pipeline_mode = #tpu.pipeline_mode<synchronous>, transform_indices = @transform_2, window_bounds = array<i64: 2, 32, 512>}, {pipeline_mode = #tpu.pipeline_mode<synchronous>, transform_indices = @transform_3, window_bounds = array<i64: 2, 8, 128>}, {pipeline_mode = #tpu.pipeline_mode<synchronous>, transform_indices = @transform_4, window_bounds = array<i64: 33, 128>}, {pipeline_mode = #tpu.pipeline_mode<synchronous>, transform_indices = @transform_5, window_bounds = array<i64: 2, 19, 128>}]} {
    %c0 = arith.constant 0 : index
    %c0_0 = arith.constant 0 : index
    %0 = vector.load %arg1[%c0, %c0_0] : memref<64x1xi32, #tpu.memory_space<vmem>>, vector<64x1xi32>
    %1 = tpu.iota {dimensions = array<i32: 1>} : vector<64x16xi32>
    %2 = vector.broadcast %0 : vector<64x1xi32> to vector<64x16xi32>
    %3 = arith.cmpi eq, %2, %1 : vector<64x16xi32>
    %4 = arith.extui %3 : vector<64x16xi1> to vector<64x16xi32>
    %5 = arith.sitofp %4 : vector<64x16xi32> to vector<64x16xf32>
    %c0_1 = arith.constant 0 : index
    %c0_2 = arith.constant 0 : index
    %6 = vector.load %arg2[%c0_1, %c0_2] : memref<82x32xf32, #tpu.memory_space<vmem>>, vector<16x32xf32>
    %cst = arith.constant dense<0.000000e+00> : vector<64x32xf32>
    %7 = tpu.matmul %5, %6, %cst {dimension_numbers = #tpu.dot_dimension_numbers<[1], [0], [0], [1], [0, 0, 1, 1], [], []>} : vector<64x16xf32>, vector<16x32xf32>, vector<64x32xf32> -> vector<64x32xf32>
    %c16 = arith.constant 16 : index
    %c0_3 = arith.constant 0 : index
    %8 = vector.load %arg2[%c16, %c0_3] : memref<82x32xf32, #tpu.memory_space<vmem>>, vector<32x32xf32>
    %9 = tpu.concatenate %8, %8 in 0 : vector<32x32xf32>, vector<32x32xf32> -> vector<64x32xf32>
    %10 = arith.addf %7, %9 : vector<64x32xf32>
    %c80 = arith.constant 80 : index
    %c0_4 = arith.constant 0 : index
    %11 = vector.load %arg2[%c80, %c0_4] : memref<82x32xf32, #tpu.memory_space<vmem>>, vector<1x32xf32>
    %c81 = arith.constant 81 : index
    %c0_5 = arith.constant 0 : index
    %12 = vector.load %arg2[%c81, %c0_5] : memref<82x32xf32, #tpu.memory_space<vmem>>, vector<1x32xf32>
    %cst_6 = arith.constant dense<0.000000e+00> : vector<64xf32>
    %13 = vector.multi_reduction <add>, %10, %cst_6 [1] : vector<64x32xf32> to vector<64xf32>
    %14 = vector.shape_cast %13 : vector<64xf32> to vector<64x1xf32>
    %cst_7 = arith.constant 3.200000e+01 : f32
    %15 = vector.broadcast %cst_7 : f32 to vector<64x1xf32>
    %16 = arith.divf %14, %15 : vector<64x1xf32>
    %17 = vector.broadcast %16 : vector<64x1xf32> to vector<64x32xf32>
    %18 = arith.subf %10, %17 : vector<64x32xf32>
    %19 = arith.mulf %18, %18 : vector<64x32xf32>
    %cst_8 = arith.constant dense<0.000000e+00> : vector<64xf32>
    %20 = vector.multi_reduction <add>, %19, %cst_8 [1] : vector<64x32xf32> to vector<64xf32>
    %21 = vector.shape_cast %20 : vector<64xf32> to vector<64x1xf32>
    %cst_9 = arith.constant 3.200000e+01 : f32
    %22 = vector.broadcast %cst_9 : f32 to vector<64x1xf32>
    %23 = arith.divf %21, %22 : vector<64x1xf32>
    %cst_10 = arith.constant 9.99999996E-13 : f32
    %24 = vector.broadcast %cst_10 : f32 to vector<64x1xf32>
    %25 = arith.addf %23, %24 : vector<64x1xf32>
    %26 = math.rsqrt %25 : vector<64x1xf32>
    %27 = vector.broadcast %26 : vector<64x1xf32> to vector<64x32xf32>
    %28 = arith.mulf %18, %27 : vector<64x32xf32>
    %29 = vector.broadcast %11 : vector<1x32xf32> to vector<64x32xf32>
    %30 = arith.mulf %28, %29 : vector<64x32xf32>
    %31 = vector.broadcast %12 : vector<1x32xf32> to vector<64x32xf32>
    %32 = arith.addf %30, %31 : vector<64x32xf32>
    %33 = tpu.iota {dimensions = array<i32: 1>} : vector<1x32xi32>
    %c31_i32 = arith.constant 31 : i32
    %34 = vector.broadcast %c31_i32 : i32 to vector<1x32xi32>
    %35 = arith.cmpi slt, %33, %34 : vector<1x32xi32>
    %cst_11 = arith.constant 0.000000e+00 : f32
    %cst_12 = arith.constant -1.000000e+30 : f32
    %36 = vector.broadcast %cst_11 : f32 to vector<1x32xf32>
    %37 = vector.broadcast %cst_12 : f32 to vector<1x32xf32>
    %38 = arith.select %35, %36, %37 : vector<1x32xi1>, vector<1x32xf32>
    %c0_13 = arith.constant 0 : index
    %c0_14 = arith.constant 0 : index
    %c0_15 = arith.constant 0 : index
    %39 = vector.load %arg3[%c0_13, %c0_14, %c0_15] : memref<2x32x512xf32, #tpu.memory_space<vmem>>, vector<1x32x96xf32>
    %40 = vector.shape_cast %39 : vector<1x32x96xf32> to vector<32x96xf32>
    %cst_16 = arith.constant dense<0.000000e+00> : vector<64x96xf32>
    %41 = tpu.matmul %32, %40, %cst_16 {dimension_numbers = #tpu.dot_dimension_numbers<[1], [0], [0], [1], [0, 0, 1, 1], [], []>} : vector<64x32xf32>, vector<32x96xf32>, vector<64x96xf32> -> vector<64x96xf32>
    %c0_17 = arith.constant 0 : index
    %c0_18 = arith.constant 0 : index
    %c0_19 = arith.constant 0 : index
    %42 = vector.load %arg4[%c0_17, %c0_18, %c0_19] : memref<2x8x128xf32, #tpu.memory_space<vmem>>, vector<1x1x96xf32>
    %43 = vector.shape_cast %42 : vector<1x1x96xf32> to vector<1x96xf32>
    %44 = vector.broadcast %43 : vector<1x96xf32> to vector<64x96xf32>
    %45 = arith.addf %41, %44 : vector<64x96xf32>
    %46 = vector.extract_strided_slice %45 {offsets = [0, 0], sizes = [32, 16], strides = [1, 1]} : vector<64x96xf32> to vector<32x16xf32>
    %47 = vector.extract_strided_slice %45 {offsets = [0, 32], sizes = [32, 16], strides = [1, 1]} : vector<64x96xf32> to vector<32x16xf32>
    %48 = vector.extract_strided_slice %45 {offsets = [0, 64], sizes = [32, 16], strides = [1, 1]} : vector<64x96xf32> to vector<32x16xf32>
    %cst_20 = arith.constant dense<0.000000e+00> : vector<32x32xf32>
    %49 = tpu.matmul %46, %47, %cst_20 {dimension_numbers = #tpu.dot_dimension_numbers<[1], [1], [0], [0], [0, 0, 1, 0], [], []>} : vector<32x16xf32>, vector<32x16xf32>, vector<32x32xf32> -> vector<32x32xf32>
    %cst_21 = arith.constant 2.500000e-01 : f32
    %50 = vector.broadcast %cst_21 : f32 to vector<32x32xf32>
    %51 = arith.mulf %49, %50 : vector<32x32xf32>
    %52 = vector.broadcast %38 : vector<1x32xf32> to vector<32x32xf32>
    %53 = arith.addf %51, %52 : vector<32x32xf32>
    %cst_22 = arith.constant dense<0xFF800000> : vector<32xf32>
    %54 = vector.multi_reduction <maximumf>, %53, %cst_22 [1] : vector<32x32xf32> to vector<32xf32>
    %55 = vector.shape_cast %54 : vector<32xf32> to vector<32x1xf32>
    %56 = vector.broadcast %55 : vector<32x1xf32> to vector<32x32xf32>
    %57 = arith.subf %53, %56 : vector<32x32xf32>
    %58 = math.exp %57 : vector<32x32xf32>
    %cst_23 = arith.constant dense<0.000000e+00> : vector<32xf32>
    %59 = vector.multi_reduction <add>, %58, %cst_23 [1] : vector<32x32xf32> to vector<32xf32>
    %60 = vector.shape_cast %59 : vector<32xf32> to vector<32x1xf32>
    %61 = tpu.reciprocal %60 {approx = true} : vector<32x1xf32> -> vector<32x1xf32>
    %62 = vector.broadcast %61 : vector<32x1xf32> to vector<32x32xf32>
    %63 = arith.mulf %58, %62 : vector<32x32xf32>
    %cst_24 = arith.constant dense<0.000000e+00> : vector<32x16xf32>
    %64 = tpu.matmul %63, %48, %cst_24 {dimension_numbers = #tpu.dot_dimension_numbers<[1], [0], [0], [1], [0, 0, 1, 1], [], []>} : vector<32x32xf32>, vector<32x16xf32>, vector<32x16xf32> -> vector<32x16xf32>
    %c0_25 = arith.constant 0 : index
    %c0_26 = arith.constant 0 : index
    %c128 = arith.constant 128 : index
    %65 = vector.load %arg3[%c0_25, %c0_26, %c128] : memref<2x32x512xf32, #tpu.memory_space<vmem>>, vector<1x16x32xf32>
    %66 = vector.shape_cast %65 : vector<1x16x32xf32> to vector<16x32xf32>
    %cst_27 = arith.constant dense<0.000000e+00> : vector<32x32xf32>
    %67 = tpu.matmul %64, %66, %cst_27 {dimension_numbers = #tpu.dot_dimension_numbers<[1], [0], [0], [1], [0, 0, 1, 1], [], []>} : vector<32x16xf32>, vector<16x32xf32>, vector<32x32xf32> -> vector<32x32xf32>
    %68 = vector.extract_strided_slice %45 {offsets = [0, 16], sizes = [32, 16], strides = [1, 1]} : vector<64x96xf32> to vector<32x16xf32>
    %69 = vector.extract_strided_slice %45 {offsets = [0, 48], sizes = [32, 16], strides = [1, 1]} : vector<64x96xf32> to vector<32x16xf32>
    %70 = vector.extract_strided_slice %45 {offsets = [0, 80], sizes = [32, 16], strides = [1, 1]} : vector<64x96xf32> to vector<32x16xf32>
    %cst_28 = arith.constant dense<0.000000e+00> : vector<32x32xf32>
    %71 = tpu.matmul %68, %69, %cst_28 {dimension_numbers = #tpu.dot_dimension_numbers<[1], [1], [0], [0], [0, 0, 1, 0], [], []>} : vector<32x16xf32>, vector<32x16xf32>, vector<32x32xf32> -> vector<32x32xf32>
    %cst_29 = arith.constant 2.500000e-01 : f32
    %72 = vector.broadcast %cst_29 : f32 to vector<32x32xf32>
    %73 = arith.mulf %71, %72 : vector<32x32xf32>
    %74 = vector.broadcast %38 : vector<1x32xf32> to vector<32x32xf32>
    %75 = arith.addf %73, %74 : vector<32x32xf32>
    %cst_30 = arith.constant dense<0xFF800000> : vector<32xf32>
    %76 = vector.multi_reduction <maximumf>, %75, %cst_30 [1] : vector<32x32xf32> to vector<32xf32>
    %77 = vector.shape_cast %76 : vector<32xf32> to vector<32x1xf32>
    %78 = vector.broadcast %77 : vector<32x1xf32> to vector<32x32xf32>
    %79 = arith.subf %75, %78 : vector<32x32xf32>
    %80 = math.exp %79 : vector<32x32xf32>
    %cst_31 = arith.constant dense<0.000000e+00> : vector<32xf32>
    %81 = vector.multi_reduction <add>, %80, %cst_31 [1] : vector<32x32xf32> to vector<32xf32>
    %82 = vector.shape_cast %81 : vector<32xf32> to vector<32x1xf32>
    %83 = tpu.reciprocal %82 {approx = true} : vector<32x1xf32> -> vector<32x1xf32>
    %84 = vector.broadcast %83 : vector<32x1xf32> to vector<32x32xf32>
    %85 = arith.mulf %80, %84 : vector<32x32xf32>
    %cst_32 = arith.constant dense<0.000000e+00> : vector<32x16xf32>
    %86 = tpu.matmul %85, %70, %cst_32 {dimension_numbers = #tpu.dot_dimension_numbers<[1], [0], [0], [1], [0, 0, 1, 1], [], []>} : vector<32x32xf32>, vector<32x16xf32>, vector<32x16xf32> -> vector<32x16xf32>
    %c0_33 = arith.constant 0 : index
    %c16_34 = arith.constant 16 : index
    %c128_35 = arith.constant 128 : index
    %87 = vector.load %arg3[%c0_33, %c16_34, %c128_35] : memref<2x32x512xf32, #tpu.memory_space<vmem>>, vector<1x16x32xf32>
    %88 = vector.shape_cast %87 : vector<1x16x32xf32> to vector<16x32xf32>
    %cst_36 = arith.constant dense<0.000000e+00> : vector<32x32xf32>
    %89 = tpu.matmul %86, %88, %cst_36 {dimension_numbers = #tpu.dot_dimension_numbers<[1], [0], [0], [1], [0, 0, 1, 1], [], []>} : vector<32x16xf32>, vector<16x32xf32>, vector<32x32xf32> -> vector<32x32xf32>
    %90 = arith.addf %67, %89 : vector<32x32xf32>
    %91 = vector.extract_strided_slice %45 {offsets = [32, 0], sizes = [32, 16], strides = [1, 1]} : vector<64x96xf32> to vector<32x16xf32>
    %92 = vector.extract_strided_slice %45 {offsets = [32, 32], sizes = [32, 16], strides = [1, 1]} : vector<64x96xf32> to vector<32x16xf32>
    %93 = vector.extract_strided_slice %45 {offsets = [32, 64], sizes = [32, 16], strides = [1, 1]} : vector<64x96xf32> to vector<32x16xf32>
    %cst_37 = arith.constant dense<0.000000e+00> : vector<32x32xf32>
    %94 = tpu.matmul %91, %92, %cst_37 {dimension_numbers = #tpu.dot_dimension_numbers<[1], [1], [0], [0], [0, 0, 1, 0], [], []>} : vector<32x16xf32>, vector<32x16xf32>, vector<32x32xf32> -> vector<32x32xf32>
    %cst_38 = arith.constant 2.500000e-01 : f32
    %95 = vector.broadcast %cst_38 : f32 to vector<32x32xf32>
    %96 = arith.mulf %94, %95 : vector<32x32xf32>
    %97 = vector.broadcast %38 : vector<1x32xf32> to vector<32x32xf32>
    %98 = arith.addf %96, %97 : vector<32x32xf32>
    %cst_39 = arith.constant dense<0xFF800000> : vector<32xf32>
    %99 = vector.multi_reduction <maximumf>, %98, %cst_39 [1] : vector<32x32xf32> to vector<32xf32>
    %100 = vector.shape_cast %99 : vector<32xf32> to vector<32x1xf32>
    %101 = vector.broadcast %100 : vector<32x1xf32> to vector<32x32xf32>
    %102 = arith.subf %98, %101 : vector<32x32xf32>
    %103 = math.exp %102 : vector<32x32xf32>
    %cst_40 = arith.constant dense<0.000000e+00> : vector<32xf32>
    %104 = vector.multi_reduction <add>, %103, %cst_40 [1] : vector<32x32xf32> to vector<32xf32>
    %105 = vector.shape_cast %104 : vector<32xf32> to vector<32x1xf32>
    %106 = tpu.reciprocal %105 {approx = true} : vector<32x1xf32> -> vector<32x1xf32>
    %107 = vector.broadcast %106 : vector<32x1xf32> to vector<32x32xf32>
    %108 = arith.mulf %103, %107 : vector<32x32xf32>
    %cst_41 = arith.constant dense<0.000000e+00> : vector<32x16xf32>
    %109 = tpu.matmul %108, %93, %cst_41 {dimension_numbers = #tpu.dot_dimension_numbers<[1], [0], [0], [1], [0, 0, 1, 1], [], []>} : vector<32x32xf32>, vector<32x16xf32>, vector<32x16xf32> -> vector<32x16xf32>
    %c0_42 = arith.constant 0 : index
    %c0_43 = arith.constant 0 : index
    %c128_44 = arith.constant 128 : index
    %110 = vector.load %arg3[%c0_42, %c0_43, %c128_44] : memref<2x32x512xf32, #tpu.memory_space<vmem>>, vector<1x16x32xf32>
    %111 = vector.shape_cast %110 : vector<1x16x32xf32> to vector<16x32xf32>
    %cst_45 = arith.constant dense<0.000000e+00> : vector<32x32xf32>
    %112 = tpu.matmul %109, %111, %cst_45 {dimension_numbers = #tpu.dot_dimension_numbers<[1], [0], [0], [1], [0, 0, 1, 1], [], []>} : vector<32x16xf32>, vector<16x32xf32>, vector<32x32xf32> -> vector<32x32xf32>
    %113 = vector.extract_strided_slice %45 {offsets = [32, 16], sizes = [32, 16], strides = [1, 1]} : vector<64x96xf32> to vector<32x16xf32>
    %114 = vector.extract_strided_slice %45 {offsets = [32, 48], sizes = [32, 16], strides = [1, 1]} : vector<64x96xf32> to vector<32x16xf32>
    %115 = vector.extract_strided_slice %45 {offsets = [32, 80], sizes = [32, 16], strides = [1, 1]} : vector<64x96xf32> to vector<32x16xf32>
    %cst_46 = arith.constant dense<0.000000e+00> : vector<32x32xf32>
    %116 = tpu.matmul %113, %114, %cst_46 {dimension_numbers = #tpu.dot_dimension_numbers<[1], [1], [0], [0], [0, 0, 1, 0], [], []>} : vector<32x16xf32>, vector<32x16xf32>, vector<32x32xf32> -> vector<32x32xf32>
    %cst_47 = arith.constant 2.500000e-01 : f32
    %117 = vector.broadcast %cst_47 : f32 to vector<32x32xf32>
    %118 = arith.mulf %116, %117 : vector<32x32xf32>
    %119 = vector.broadcast %38 : vector<1x32xf32> to vector<32x32xf32>
    %120 = arith.addf %118, %119 : vector<32x32xf32>
    %cst_48 = arith.constant dense<0xFF800000> : vector<32xf32>
    %121 = vector.multi_reduction <maximumf>, %120, %cst_48 [1] : vector<32x32xf32> to vector<32xf32>
    %122 = vector.shape_cast %121 : vector<32xf32> to vector<32x1xf32>
    %123 = vector.broadcast %122 : vector<32x1xf32> to vector<32x32xf32>
    %124 = arith.subf %120, %123 : vector<32x32xf32>
    %125 = math.exp %124 : vector<32x32xf32>
    %cst_49 = arith.constant dense<0.000000e+00> : vector<32xf32>
    %126 = vector.multi_reduction <add>, %125, %cst_49 [1] : vector<32x32xf32> to vector<32xf32>
    %127 = vector.shape_cast %126 : vector<32xf32> to vector<32x1xf32>
    %128 = tpu.reciprocal %127 {approx = true} : vector<32x1xf32> -> vector<32x1xf32>
    %129 = vector.broadcast %128 : vector<32x1xf32> to vector<32x32xf32>
    %130 = arith.mulf %125, %129 : vector<32x32xf32>
    %cst_50 = arith.constant dense<0.000000e+00> : vector<32x16xf32>
    %131 = tpu.matmul %130, %115, %cst_50 {dimension_numbers = #tpu.dot_dimension_numbers<[1], [0], [0], [1], [0, 0, 1, 1], [], []>} : vector<32x32xf32>, vector<32x16xf32>, vector<32x16xf32> -> vector<32x16xf32>
    %c0_51 = arith.constant 0 : index
    %c16_52 = arith.constant 16 : index
    %c128_53 = arith.constant 128 : index
    %132 = vector.load %arg3[%c0_51, %c16_52, %c128_53] : memref<2x32x512xf32, #tpu.memory_space<vmem>>, vector<1x16x32xf32>
    %133 = vector.shape_cast %132 : vector<1x16x32xf32> to vector<16x32xf32>
    %cst_54 = arith.constant dense<0.000000e+00> : vector<32x32xf32>
    %134 = tpu.matmul %131, %133, %cst_54 {dimension_numbers = #tpu.dot_dimension_numbers<[1], [0], [0], [1], [0, 0, 1, 1], [], []>} : vector<32x16xf32>, vector<16x32xf32>, vector<32x32xf32> -> vector<32x32xf32>
    %135 = arith.addf %112, %134 : vector<32x32xf32>
    %136 = tpu.concatenate %90, %135 in 0 : vector<32x32xf32>, vector<32x32xf32> -> vector<64x32xf32>
    %c0_55 = arith.constant 0 : index
    %c1 = arith.constant 1 : index
    %c0_56 = arith.constant 0 : index
    %137 = vector.load %arg4[%c0_55, %c1, %c0_56] : memref<2x8x128xf32, #tpu.memory_space<vmem>>, vector<1x1x32xf32>
    %138 = vector.shape_cast %137 : vector<1x1x32xf32> to vector<1x32xf32>
    %139 = vector.broadcast %138 : vector<1x32xf32> to vector<64x32xf32>
    %140 = arith.addf %136, %139 : vector<64x32xf32>
    %141 = arith.addf %140, %32 : vector<64x32xf32>
    %c0_57 = arith.constant 0 : index
    %c2 = arith.constant 2 : index
    %c0_58 = arith.constant 0 : index
    %142 = vector.load %arg4[%c0_57, %c2, %c0_58] : memref<2x8x128xf32, #tpu.memory_space<vmem>>, vector<1x1x32xf32>
    %143 = vector.shape_cast %142 : vector<1x1x32xf32> to vector<1x32xf32>
    %c0_59 = arith.constant 0 : index
    %c3 = arith.constant 3 : index
    %c0_60 = arith.constant 0 : index
    %144 = vector.load %arg4[%c0_59, %c3, %c0_60] : memref<2x8x128xf32, #tpu.memory_space<vmem>>, vector<1x1x32xf32>
    %145 = vector.shape_cast %144 : vector<1x1x32xf32> to vector<1x32xf32>
    %cst_61 = arith.constant dense<0.000000e+00> : vector<64xf32>
    %146 = vector.multi_reduction <add>, %141, %cst_61 [1] : vector<64x32xf32> to vector<64xf32>
    %147 = vector.shape_cast %146 : vector<64xf32> to vector<64x1xf32>
    %cst_62 = arith.constant 3.200000e+01 : f32
    %148 = vector.broadcast %cst_62 : f32 to vector<64x1xf32>
    %149 = arith.divf %147, %148 : vector<64x1xf32>
    %150 = vector.broadcast %149 : vector<64x1xf32> to vector<64x32xf32>
    %151 = arith.subf %141, %150 : vector<64x32xf32>
    %152 = arith.mulf %151, %151 : vector<64x32xf32>
    %cst_63 = arith.constant dense<0.000000e+00> : vector<64xf32>
    %153 = vector.multi_reduction <add>, %152, %cst_63 [1] : vector<64x32xf32> to vector<64xf32>
    %154 = vector.shape_cast %153 : vector<64xf32> to vector<64x1xf32>
    %cst_64 = arith.constant 3.200000e+01 : f32
    %155 = vector.broadcast %cst_64 : f32 to vector<64x1xf32>
    %156 = arith.divf %154, %155 : vector<64x1xf32>
    %cst_65 = arith.constant 9.99999996E-13 : f32
    %157 = vector.broadcast %cst_65 : f32 to vector<64x1xf32>
    %158 = arith.addf %156, %157 : vector<64x1xf32>
    %159 = math.rsqrt %158 : vector<64x1xf32>
    %160 = vector.broadcast %159 : vector<64x1xf32> to vector<64x32xf32>
    %161 = arith.mulf %151, %160 : vector<64x32xf32>
    %162 = vector.broadcast %143 : vector<1x32xf32> to vector<64x32xf32>
    %163 = arith.mulf %161, %162 : vector<64x32xf32>
    %164 = vector.broadcast %145 : vector<1x32xf32> to vector<64x32xf32>
    %165 = arith.addf %163, %164 : vector<64x32xf32>
    %c0_66 = arith.constant 0 : index
    %c0_67 = arith.constant 0 : index
    %c256 = arith.constant 256 : index
    %166 = vector.load %arg3[%c0_66, %c0_67, %c256] : memref<2x32x512xf32, #tpu.memory_space<vmem>>, vector<1x32x64xf32>
    %167 = vector.shape_cast %166 : vector<1x32x64xf32> to vector<32x64xf32>
    %cst_68 = arith.constant dense<0.000000e+00> : vector<64x64xf32>
    %168 = tpu.matmul %165, %167, %cst_68 {dimension_numbers = #tpu.dot_dimension_numbers<[1], [0], [0], [1], [0, 0, 1, 1], [], []>} : vector<64x32xf32>, vector<32x64xf32>, vector<64x64xf32> -> vector<64x64xf32>
    %c0_69 = arith.constant 0 : index
    %c4 = arith.constant 4 : index
    %c0_70 = arith.constant 0 : index
    %169 = vector.load %arg4[%c0_69, %c4, %c0_70] : memref<2x8x128xf32, #tpu.memory_space<vmem>>, vector<1x1x64xf32>
    %170 = vector.shape_cast %169 : vector<1x1x64xf32> to vector<1x64xf32>
    %171 = vector.broadcast %170 : vector<1x64xf32> to vector<64x64xf32>
    %172 = arith.addf %168, %171 : vector<64x64xf32>
    %cst_71 = arith.constant 5.000000e-01 : f32
    %173 = vector.broadcast %cst_71 : f32 to vector<64x64xf32>
    %174 = arith.mulf %173, %172 : vector<64x64xf32>
    %cst_72 = arith.constant 4.471500e-02 : f32
    %175 = vector.broadcast %cst_72 : f32 to vector<64x64xf32>
    %176 = arith.mulf %175, %172 : vector<64x64xf32>
    %177 = arith.mulf %176, %172 : vector<64x64xf32>
    %178 = arith.mulf %177, %172 : vector<64x64xf32>
    %179 = arith.addf %172, %178 : vector<64x64xf32>
    %cst_73 = arith.constant 0.797884583 : f32
    %180 = vector.broadcast %cst_73 : f32 to vector<64x64xf32>
    %181 = arith.mulf %180, %179 : vector<64x64xf32>
    %182 = math.tanh %181 : vector<64x64xf32>
    %cst_74 = arith.constant 1.000000e+00 : f32
    %183 = vector.broadcast %cst_74 : f32 to vector<64x64xf32>
    %184 = arith.addf %183, %182 : vector<64x64xf32>
    %185 = arith.mulf %174, %184 : vector<64x64xf32>
    %c0_75 = arith.constant 0 : index
    %c0_76 = arith.constant 0 : index
    %c384 = arith.constant 384 : index
    %186 = vector.load %arg3[%c0_75, %c0_76, %c384] : memref<2x32x512xf32, #tpu.memory_space<vmem>>, vector<1x32x64xf32>
    %187 = vector.shape_cast %186 : vector<1x32x64xf32> to vector<32x64xf32>
    %cst_77 = arith.constant dense<0.000000e+00> : vector<64x32xf32>
    %188 = tpu.matmul %185, %187, %cst_77 {dimension_numbers = #tpu.dot_dimension_numbers<[1], [1], [0], [0], [0, 0, 1, 0], [], []>} : vector<64x64xf32>, vector<32x64xf32>, vector<64x32xf32> -> vector<64x32xf32>
    %c0_78 = arith.constant 0 : index
    %c5 = arith.constant 5 : index
    %c0_79 = arith.constant 0 : index
    %189 = vector.load %arg4[%c0_78, %c5, %c0_79] : memref<2x8x128xf32, #tpu.memory_space<vmem>>, vector<1x1x32xf32>
    %190 = vector.shape_cast %189 : vector<1x1x32xf32> to vector<1x32xf32>
    %191 = vector.broadcast %190 : vector<1x32xf32> to vector<64x32xf32>
    %192 = arith.addf %188, %191 : vector<64x32xf32>
    %193 = arith.addf %192, %165 : vector<64x32xf32>
    %c0_80 = arith.constant 0 : index
    %c6 = arith.constant 6 : index
    %c0_81 = arith.constant 0 : index
    %194 = vector.load %arg4[%c0_80, %c6, %c0_81] : memref<2x8x128xf32, #tpu.memory_space<vmem>>, vector<1x1x32xf32>
    %195 = vector.shape_cast %194 : vector<1x1x32xf32> to vector<1x32xf32>
    %c0_82 = arith.constant 0 : index
    %c7 = arith.constant 7 : index
    %c0_83 = arith.constant 0 : index
    %196 = vector.load %arg4[%c0_82, %c7, %c0_83] : memref<2x8x128xf32, #tpu.memory_space<vmem>>, vector<1x1x32xf32>
    %197 = vector.shape_cast %196 : vector<1x1x32xf32> to vector<1x32xf32>
    %cst_84 = arith.constant dense<0.000000e+00> : vector<64xf32>
    %198 = vector.multi_reduction <add>, %193, %cst_84 [1] : vector<64x32xf32> to vector<64xf32>
    %199 = vector.shape_cast %198 : vector<64xf32> to vector<64x1xf32>
    %cst_85 = arith.constant 3.200000e+01 : f32
    %200 = vector.broadcast %cst_85 : f32 to vector<64x1xf32>
    %201 = arith.divf %199, %200 : vector<64x1xf32>
    %202 = vector.broadcast %201 : vector<64x1xf32> to vector<64x32xf32>
    %203 = arith.subf %193, %202 : vector<64x32xf32>
    %204 = arith.mulf %203, %203 : vector<64x32xf32>
    %cst_86 = arith.constant dense<0.000000e+00> : vector<64xf32>
    %205 = vector.multi_reduction <add>, %204, %cst_86 [1] : vector<64x32xf32> to vector<64xf32>
    %206 = vector.shape_cast %205 : vector<64xf32> to vector<64x1xf32>
    %cst_87 = arith.constant 3.200000e+01 : f32
    %207 = vector.broadcast %cst_87 : f32 to vector<64x1xf32>
    %208 = arith.divf %206, %207 : vector<64x1xf32>
    %cst_88 = arith.constant 9.99999996E-13 : f32
    %209 = vector.broadcast %cst_88 : f32 to vector<64x1xf32>
    %210 = arith.addf %208, %209 : vector<64x1xf32>
    %211 = math.rsqrt %210 : vector<64x1xf32>
    %212 = vector.broadcast %211 : vector<64x1xf32> to vector<64x32xf32>
    %213 = arith.mulf %203, %212 : vector<64x32xf32>
    %214 = vector.broadcast %195 : vector<1x32xf32> to vector<64x32xf32>
    %215 = arith.mulf %213, %214 : vector<64x32xf32>
    %216 = vector.broadcast %197 : vector<1x32xf32> to vector<64x32xf32>
    %217 = arith.addf %215, %216 : vector<64x32xf32>
    %c1_89 = arith.constant 1 : index
    %c0_90 = arith.constant 0 : index
    %c0_91 = arith.constant 0 : index
    %218 = vector.load %arg3[%c1_89, %c0_90, %c0_91] : memref<2x32x512xf32, #tpu.memory_space<vmem>>, vector<1x32x96xf32>
    %219 = vector.shape_cast %218 : vector<1x32x96xf32> to vector<32x96xf32>
    %cst_92 = arith.constant dense<0.000000e+00> : vector<64x96xf32>
    %220 = tpu.matmul %217, %219, %cst_92 {dimension_numbers = #tpu.dot_dimension_numbers<[1], [0], [0], [1], [0, 0, 1, 1], [], []>} : vector<64x32xf32>, vector<32x96xf32>, vector<64x96xf32> -> vector<64x96xf32>
    %c1_93 = arith.constant 1 : index
    %c0_94 = arith.constant 0 : index
    %c0_95 = arith.constant 0 : index
    %221 = vector.load %arg4[%c1_93, %c0_94, %c0_95] : memref<2x8x128xf32, #tpu.memory_space<vmem>>, vector<1x1x96xf32>
    %222 = vector.shape_cast %221 : vector<1x1x96xf32> to vector<1x96xf32>
    %223 = vector.broadcast %222 : vector<1x96xf32> to vector<64x96xf32>
    %224 = arith.addf %220, %223 : vector<64x96xf32>
    %225 = vector.extract_strided_slice %224 {offsets = [0, 0], sizes = [32, 16], strides = [1, 1]} : vector<64x96xf32> to vector<32x16xf32>
    %226 = vector.extract_strided_slice %224 {offsets = [0, 32], sizes = [32, 16], strides = [1, 1]} : vector<64x96xf32> to vector<32x16xf32>
    %227 = vector.extract_strided_slice %224 {offsets = [0, 64], sizes = [32, 16], strides = [1, 1]} : vector<64x96xf32> to vector<32x16xf32>
    %cst_96 = arith.constant dense<0.000000e+00> : vector<32x32xf32>
    %228 = tpu.matmul %225, %226, %cst_96 {dimension_numbers = #tpu.dot_dimension_numbers<[1], [1], [0], [0], [0, 0, 1, 0], [], []>} : vector<32x16xf32>, vector<32x16xf32>, vector<32x32xf32> -> vector<32x32xf32>
    %cst_97 = arith.constant 2.500000e-01 : f32
    %229 = vector.broadcast %cst_97 : f32 to vector<32x32xf32>
    %230 = arith.mulf %228, %229 : vector<32x32xf32>
    %231 = vector.broadcast %38 : vector<1x32xf32> to vector<32x32xf32>
    %232 = arith.addf %230, %231 : vector<32x32xf32>
    %cst_98 = arith.constant dense<0xFF800000> : vector<32xf32>
    %233 = vector.multi_reduction <maximumf>, %232, %cst_98 [1] : vector<32x32xf32> to vector<32xf32>
    %234 = vector.shape_cast %233 : vector<32xf32> to vector<32x1xf32>
    %235 = vector.broadcast %234 : vector<32x1xf32> to vector<32x32xf32>
    %236 = arith.subf %232, %235 : vector<32x32xf32>
    %237 = math.exp %236 : vector<32x32xf32>
    %cst_99 = arith.constant dense<0.000000e+00> : vector<32xf32>
    %238 = vector.multi_reduction <add>, %237, %cst_99 [1] : vector<32x32xf32> to vector<32xf32>
    %239 = vector.shape_cast %238 : vector<32xf32> to vector<32x1xf32>
    %240 = tpu.reciprocal %239 {approx = true} : vector<32x1xf32> -> vector<32x1xf32>
    %241 = vector.broadcast %240 : vector<32x1xf32> to vector<32x32xf32>
    %242 = arith.mulf %237, %241 : vector<32x32xf32>
    %cst_100 = arith.constant dense<0.000000e+00> : vector<32x16xf32>
    %243 = tpu.matmul %242, %227, %cst_100 {dimension_numbers = #tpu.dot_dimension_numbers<[1], [0], [0], [1], [0, 0, 1, 1], [], []>} : vector<32x32xf32>, vector<32x16xf32>, vector<32x16xf32> -> vector<32x16xf32>
    %c1_101 = arith.constant 1 : index
    %c0_102 = arith.constant 0 : index
    %c128_103 = arith.constant 128 : index
    %244 = vector.load %arg3[%c1_101, %c0_102, %c128_103] : memref<2x32x512xf32, #tpu.memory_space<vmem>>, vector<1x16x32xf32>
    %245 = vector.shape_cast %244 : vector<1x16x32xf32> to vector<16x32xf32>
    %cst_104 = arith.constant dense<0.000000e+00> : vector<32x32xf32>
    %246 = tpu.matmul %243, %245, %cst_104 {dimension_numbers = #tpu.dot_dimension_numbers<[1], [0], [0], [1], [0, 0, 1, 1], [], []>} : vector<32x16xf32>, vector<16x32xf32>, vector<32x32xf32> -> vector<32x32xf32>
    %247 = vector.extract_strided_slice %224 {offsets = [0, 16], sizes = [32, 16], strides = [1, 1]} : vector<64x96xf32> to vector<32x16xf32>
    %248 = vector.extract_strided_slice %224 {offsets = [0, 48], sizes = [32, 16], strides = [1, 1]} : vector<64x96xf32> to vector<32x16xf32>
    %249 = vector.extract_strided_slice %224 {offsets = [0, 80], sizes = [32, 16], strides = [1, 1]} : vector<64x96xf32> to vector<32x16xf32>
    %cst_105 = arith.constant dense<0.000000e+00> : vector<32x32xf32>
    %250 = tpu.matmul %247, %248, %cst_105 {dimension_numbers = #tpu.dot_dimension_numbers<[1], [1], [0], [0], [0, 0, 1, 0], [], []>} : vector<32x16xf32>, vector<32x16xf32>, vector<32x32xf32> -> vector<32x32xf32>
    %cst_106 = arith.constant 2.500000e-01 : f32
    %251 = vector.broadcast %cst_106 : f32 to vector<32x32xf32>
    %252 = arith.mulf %250, %251 : vector<32x32xf32>
    %253 = vector.broadcast %38 : vector<1x32xf32> to vector<32x32xf32>
    %254 = arith.addf %252, %253 : vector<32x32xf32>
    %cst_107 = arith.constant dense<0xFF800000> : vector<32xf32>
    %255 = vector.multi_reduction <maximumf>, %254, %cst_107 [1] : vector<32x32xf32> to vector<32xf32>
    %256 = vector.shape_cast %255 : vector<32xf32> to vector<32x1xf32>
    %257 = vector.broadcast %256 : vector<32x1xf32> to vector<32x32xf32>
    %258 = arith.subf %254, %257 : vector<32x32xf32>
    %259 = math.exp %258 : vector<32x32xf32>
    %cst_108 = arith.constant dense<0.000000e+00> : vector<32xf32>
    %260 = vector.multi_reduction <add>, %259, %cst_108 [1] : vector<32x32xf32> to vector<32xf32>
    %261 = vector.shape_cast %260 : vector<32xf32> to vector<32x1xf32>
    %262 = tpu.reciprocal %261 {approx = true} : vector<32x1xf32> -> vector<32x1xf32>
    %263 = vector.broadcast %262 : vector<32x1xf32> to vector<32x32xf32>
    %264 = arith.mulf %259, %263 : vector<32x32xf32>
    %cst_109 = arith.constant dense<0.000000e+00> : vector<32x16xf32>
    %265 = tpu.matmul %264, %249, %cst_109 {dimension_numbers = #tpu.dot_dimension_numbers<[1], [0], [0], [1], [0, 0, 1, 1], [], []>} : vector<32x32xf32>, vector<32x16xf32>, vector<32x16xf32> -> vector<32x16xf32>
    %c1_110 = arith.constant 1 : index
    %c16_111 = arith.constant 16 : index
    %c128_112 = arith.constant 128 : index
    %266 = vector.load %arg3[%c1_110, %c16_111, %c128_112] : memref<2x32x512xf32, #tpu.memory_space<vmem>>, vector<1x16x32xf32>
    %267 = vector.shape_cast %266 : vector<1x16x32xf32> to vector<16x32xf32>
    %cst_113 = arith.constant dense<0.000000e+00> : vector<32x32xf32>
    %268 = tpu.matmul %265, %267, %cst_113 {dimension_numbers = #tpu.dot_dimension_numbers<[1], [0], [0], [1], [0, 0, 1, 1], [], []>} : vector<32x16xf32>, vector<16x32xf32>, vector<32x32xf32> -> vector<32x32xf32>
    %269 = arith.addf %246, %268 : vector<32x32xf32>
    %270 = vector.extract_strided_slice %224 {offsets = [32, 0], sizes = [32, 16], strides = [1, 1]} : vector<64x96xf32> to vector<32x16xf32>
    %271 = vector.extract_strided_slice %224 {offsets = [32, 32], sizes = [32, 16], strides = [1, 1]} : vector<64x96xf32> to vector<32x16xf32>
    %272 = vector.extract_strided_slice %224 {offsets = [32, 64], sizes = [32, 16], strides = [1, 1]} : vector<64x96xf32> to vector<32x16xf32>
    %cst_114 = arith.constant dense<0.000000e+00> : vector<32x32xf32>
    %273 = tpu.matmul %270, %271, %cst_114 {dimension_numbers = #tpu.dot_dimension_numbers<[1], [1], [0], [0], [0, 0, 1, 0], [], []>} : vector<32x16xf32>, vector<32x16xf32>, vector<32x32xf32> -> vector<32x32xf32>
    %cst_115 = arith.constant 2.500000e-01 : f32
    %274 = vector.broadcast %cst_115 : f32 to vector<32x32xf32>
    %275 = arith.mulf %273, %274 : vector<32x32xf32>
    %276 = vector.broadcast %38 : vector<1x32xf32> to vector<32x32xf32>
    %277 = arith.addf %275, %276 : vector<32x32xf32>
    %cst_116 = arith.constant dense<0xFF800000> : vector<32xf32>
    %278 = vector.multi_reduction <maximumf>, %277, %cst_116 [1] : vector<32x32xf32> to vector<32xf32>
    %279 = vector.shape_cast %278 : vector<32xf32> to vector<32x1xf32>
    %280 = vector.broadcast %279 : vector<32x1xf32> to vector<32x32xf32>
    %281 = arith.subf %277, %280 : vector<32x32xf32>
    %282 = math.exp %281 : vector<32x32xf32>
    %cst_117 = arith.constant dense<0.000000e+00> : vector<32xf32>
    %283 = vector.multi_reduction <add>, %282, %cst_117 [1] : vector<32x32xf32> to vector<32xf32>
    %284 = vector.shape_cast %283 : vector<32xf32> to vector<32x1xf32>
    %285 = tpu.reciprocal %284 {approx = true} : vector<32x1xf32> -> vector<32x1xf32>
    %286 = vector.broadcast %285 : vector<32x1xf32> to vector<32x32xf32>
    %287 = arith.mulf %282, %286 : vector<32x32xf32>
    %cst_118 = arith.constant dense<0.000000e+00> : vector<32x16xf32>
    %288 = tpu.matmul %287, %272, %cst_118 {dimension_numbers = #tpu.dot_dimension_numbers<[1], [0], [0], [1], [0, 0, 1, 1], [], []>} : vector<32x32xf32>, vector<32x16xf32>, vector<32x16xf32> -> vector<32x16xf32>
    %c1_119 = arith.constant 1 : index
    %c0_120 = arith.constant 0 : index
    %c128_121 = arith.constant 128 : index
    %289 = vector.load %arg3[%c1_119, %c0_120, %c128_121] : memref<2x32x512xf32, #tpu.memory_space<vmem>>, vector<1x16x32xf32>
    %290 = vector.shape_cast %289 : vector<1x16x32xf32> to vector<16x32xf32>
    %cst_122 = arith.constant dense<0.000000e+00> : vector<32x32xf32>
    %291 = tpu.matmul %288, %290, %cst_122 {dimension_numbers = #tpu.dot_dimension_numbers<[1], [0], [0], [1], [0, 0, 1, 1], [], []>} : vector<32x16xf32>, vector<16x32xf32>, vector<32x32xf32> -> vector<32x32xf32>
    %292 = vector.extract_strided_slice %224 {offsets = [32, 16], sizes = [32, 16], strides = [1, 1]} : vector<64x96xf32> to vector<32x16xf32>
    %293 = vector.extract_strided_slice %224 {offsets = [32, 48], sizes = [32, 16], strides = [1, 1]} : vector<64x96xf32> to vector<32x16xf32>
    %294 = vector.extract_strided_slice %224 {offsets = [32, 80], sizes = [32, 16], strides = [1, 1]} : vector<64x96xf32> to vector<32x16xf32>
    %cst_123 = arith.constant dense<0.000000e+00> : vector<32x32xf32>
    %295 = tpu.matmul %292, %293, %cst_123 {dimension_numbers = #tpu.dot_dimension_numbers<[1], [1], [0], [0], [0, 0, 1, 0], [], []>} : vector<32x16xf32>, vector<32x16xf32>, vector<32x32xf32> -> vector<32x32xf32>
    %cst_124 = arith.constant 2.500000e-01 : f32
    %296 = vector.broadcast %cst_124 : f32 to vector<32x32xf32>
    %297 = arith.mulf %295, %296 : vector<32x32xf32>
    %298 = vector.broadcast %38 : vector<1x32xf32> to vector<32x32xf32>
    %299 = arith.addf %297, %298 : vector<32x32xf32>
    %cst_125 = arith.constant dense<0xFF800000> : vector<32xf32>
    %300 = vector.multi_reduction <maximumf>, %299, %cst_125 [1] : vector<32x32xf32> to vector<32xf32>
    %301 = vector.shape_cast %300 : vector<32xf32> to vector<32x1xf32>
    %302 = vector.broadcast %301 : vector<32x1xf32> to vector<32x32xf32>
    %303 = arith.subf %299, %302 : vector<32x32xf32>
    %304 = math.exp %303 : vector<32x32xf32>
    %cst_126 = arith.constant dense<0.000000e+00> : vector<32xf32>
    %305 = vector.multi_reduction <add>, %304, %cst_126 [1] : vector<32x32xf32> to vector<32xf32>
    %306 = vector.shape_cast %305 : vector<32xf32> to vector<32x1xf32>
    %307 = tpu.reciprocal %306 {approx = true} : vector<32x1xf32> -> vector<32x1xf32>
    %308 = vector.broadcast %307 : vector<32x1xf32> to vector<32x32xf32>
    %309 = arith.mulf %304, %308 : vector<32x32xf32>
    %cst_127 = arith.constant dense<0.000000e+00> : vector<32x16xf32>
    %310 = tpu.matmul %309, %294, %cst_127 {dimension_numbers = #tpu.dot_dimension_numbers<[1], [0], [0], [1], [0, 0, 1, 1], [], []>} : vector<32x32xf32>, vector<32x16xf32>, vector<32x16xf32> -> vector<32x16xf32>
    %c1_128 = arith.constant 1 : index
    %c16_129 = arith.constant 16 : index
    %c128_130 = arith.constant 128 : index
    %311 = vector.load %arg3[%c1_128, %c16_129, %c128_130] : memref<2x32x512xf32, #tpu.memory_space<vmem>>, vector<1x16x32xf32>
    %312 = vector.shape_cast %311 : vector<1x16x32xf32> to vector<16x32xf32>
    %cst_131 = arith.constant dense<0.000000e+00> : vector<32x32xf32>
    %313 = tpu.matmul %310, %312, %cst_131 {dimension_numbers = #tpu.dot_dimension_numbers<[1], [0], [0], [1], [0, 0, 1, 1], [], []>} : vector<32x16xf32>, vector<16x32xf32>, vector<32x32xf32> -> vector<32x32xf32>
    %314 = arith.addf %291, %313 : vector<32x32xf32>
    %315 = tpu.concatenate %269, %314 in 0 : vector<32x32xf32>, vector<32x32xf32> -> vector<64x32xf32>
    %c1_132 = arith.constant 1 : index
    %c1_133 = arith.constant 1 : index
    %c0_134 = arith.constant 0 : index
    %316 = vector.load %arg4[%c1_132, %c1_133, %c0_134] : memref<2x8x128xf32, #tpu.memory_space<vmem>>, vector<1x1x32xf32>
    %317 = vector.shape_cast %316 : vector<1x1x32xf32> to vector<1x32xf32>
    %318 = vector.broadcast %317 : vector<1x32xf32> to vector<64x32xf32>
    %319 = arith.addf %315, %318 : vector<64x32xf32>
    %320 = arith.addf %319, %217 : vector<64x32xf32>
    %c1_135 = arith.constant 1 : index
    %c2_136 = arith.constant 2 : index
    %c0_137 = arith.constant 0 : index
    %321 = vector.load %arg4[%c1_135, %c2_136, %c0_137] : memref<2x8x128xf32, #tpu.memory_space<vmem>>, vector<1x1x32xf32>
    %322 = vector.shape_cast %321 : vector<1x1x32xf32> to vector<1x32xf32>
    %c1_138 = arith.constant 1 : index
    %c3_139 = arith.constant 3 : index
    %c0_140 = arith.constant 0 : index
    %323 = vector.load %arg4[%c1_138, %c3_139, %c0_140] : memref<2x8x128xf32, #tpu.memory_space<vmem>>, vector<1x1x32xf32>
    %324 = vector.shape_cast %323 : vector<1x1x32xf32> to vector<1x32xf32>
    %cst_141 = arith.constant dense<0.000000e+00> : vector<64xf32>
    %325 = vector.multi_reduction <add>, %320, %cst_141 [1] : vector<64x32xf32> to vector<64xf32>
    %326 = vector.shape_cast %325 : vector<64xf32> to vector<64x1xf32>
    %cst_142 = arith.constant 3.200000e+01 : f32
    %327 = vector.broadcast %cst_142 : f32 to vector<64x1xf32>
    %328 = arith.divf %326, %327 : vector<64x1xf32>
    %329 = vector.broadcast %328 : vector<64x1xf32> to vector<64x32xf32>
    %330 = arith.subf %320, %329 : vector<64x32xf32>
    %331 = arith.mulf %330, %330 : vector<64x32xf32>
    %cst_143 = arith.constant dense<0.000000e+00> : vector<64xf32>
    %332 = vector.multi_reduction <add>, %331, %cst_143 [1] : vector<64x32xf32> to vector<64xf32>
    %333 = vector.shape_cast %332 : vector<64xf32> to vector<64x1xf32>
    %cst_144 = arith.constant 3.200000e+01 : f32
    %334 = vector.broadcast %cst_144 : f32 to vector<64x1xf32>
    %335 = arith.divf %333, %334 : vector<64x1xf32>
    %cst_145 = arith.constant 9.99999996E-13 : f32
    %336 = vector.broadcast %cst_145 : f32 to vector<64x1xf32>
    %337 = arith.addf %335, %336 : vector<64x1xf32>
    %338 = math.rsqrt %337 : vector<64x1xf32>
    %339 = vector.broadcast %338 : vector<64x1xf32> to vector<64x32xf32>
    %340 = arith.mulf %330, %339 : vector<64x32xf32>
    %341 = vector.broadcast %322 : vector<1x32xf32> to vector<64x32xf32>
    %342 = arith.mulf %340, %341 : vector<64x32xf32>
    %343 = vector.broadcast %324 : vector<1x32xf32> to vector<64x32xf32>
    %344 = arith.addf %342, %343 : vector<64x32xf32>
    %c1_146 = arith.constant 1 : index
    %c0_147 = arith.constant 0 : index
    %c256_148 = arith.constant 256 : index
    %345 = vector.load %arg3[%c1_146, %c0_147, %c256_148] : memref<2x32x512xf32, #tpu.memory_space<vmem>>, vector<1x32x64xf32>
    %346 = vector.shape_cast %345 : vector<1x32x64xf32> to vector<32x64xf32>
    %cst_149 = arith.constant dense<0.000000e+00> : vector<64x64xf32>
    %347 = tpu.matmul %344, %346, %cst_149 {dimension_numbers = #tpu.dot_dimension_numbers<[1], [0], [0], [1], [0, 0, 1, 1], [], []>} : vector<64x32xf32>, vector<32x64xf32>, vector<64x64xf32> -> vector<64x64xf32>
    %c1_150 = arith.constant 1 : index
    %c4_151 = arith.constant 4 : index
    %c0_152 = arith.constant 0 : index
    %348 = vector.load %arg4[%c1_150, %c4_151, %c0_152] : memref<2x8x128xf32, #tpu.memory_space<vmem>>, vector<1x1x64xf32>
    %349 = vector.shape_cast %348 : vector<1x1x64xf32> to vector<1x64xf32>
    %350 = vector.broadcast %349 : vector<1x64xf32> to vector<64x64xf32>
    %351 = arith.addf %347, %350 : vector<64x64xf32>
    %cst_153 = arith.constant 5.000000e-01 : f32
    %352 = vector.broadcast %cst_153 : f32 to vector<64x64xf32>
    %353 = arith.mulf %352, %351 : vector<64x64xf32>
    %cst_154 = arith.constant 4.471500e-02 : f32
    %354 = vector.broadcast %cst_154 : f32 to vector<64x64xf32>
    %355 = arith.mulf %354, %351 : vector<64x64xf32>
    %356 = arith.mulf %355, %351 : vector<64x64xf32>
    %357 = arith.mulf %356, %351 : vector<64x64xf32>
    %358 = arith.addf %351, %357 : vector<64x64xf32>
    %cst_155 = arith.constant 0.797884583 : f32
    %359 = vector.broadcast %cst_155 : f32 to vector<64x64xf32>
    %360 = arith.mulf %359, %358 : vector<64x64xf32>
    %361 = math.tanh %360 : vector<64x64xf32>
    %cst_156 = arith.constant 1.000000e+00 : f32
    %362 = vector.broadcast %cst_156 : f32 to vector<64x64xf32>
    %363 = arith.addf %362, %361 : vector<64x64xf32>
    %364 = arith.mulf %353, %363 : vector<64x64xf32>
    %c1_157 = arith.constant 1 : index
    %c0_158 = arith.constant 0 : index
    %c384_159 = arith.constant 384 : index
    %365 = vector.load %arg3[%c1_157, %c0_158, %c384_159] : memref<2x32x512xf32, #tpu.memory_space<vmem>>, vector<1x32x64xf32>
    %366 = vector.shape_cast %365 : vector<1x32x64xf32> to vector<32x64xf32>
    %cst_160 = arith.constant dense<0.000000e+00> : vector<64x32xf32>
    %367 = tpu.matmul %364, %366, %cst_160 {dimension_numbers = #tpu.dot_dimension_numbers<[1], [1], [0], [0], [0, 0, 1, 0], [], []>} : vector<64x64xf32>, vector<32x64xf32>, vector<64x32xf32> -> vector<64x32xf32>
    %c1_161 = arith.constant 1 : index
    %c5_162 = arith.constant 5 : index
    %c0_163 = arith.constant 0 : index
    %368 = vector.load %arg4[%c1_161, %c5_162, %c0_163] : memref<2x8x128xf32, #tpu.memory_space<vmem>>, vector<1x1x32xf32>
    %369 = vector.shape_cast %368 : vector<1x1x32xf32> to vector<1x32xf32>
    %370 = vector.broadcast %369 : vector<1x32xf32> to vector<64x32xf32>
    %371 = arith.addf %367, %370 : vector<64x32xf32>
    %372 = arith.addf %371, %344 : vector<64x32xf32>
    %c1_164 = arith.constant 1 : index
    %c6_165 = arith.constant 6 : index
    %c0_166 = arith.constant 0 : index
    %373 = vector.load %arg4[%c1_164, %c6_165, %c0_166] : memref<2x8x128xf32, #tpu.memory_space<vmem>>, vector<1x1x32xf32>
    %374 = vector.shape_cast %373 : vector<1x1x32xf32> to vector<1x32xf32>
    %c1_167 = arith.constant 1 : index
    %c7_168 = arith.constant 7 : index
    %c0_169 = arith.constant 0 : index
    %375 = vector.load %arg4[%c1_167, %c7_168, %c0_169] : memref<2x8x128xf32, #tpu.memory_space<vmem>>, vector<1x1x32xf32>
    %376 = vector.shape_cast %375 : vector<1x1x32xf32> to vector<1x32xf32>
    %cst_170 = arith.constant dense<0.000000e+00> : vector<64xf32>
    %377 = vector.multi_reduction <add>, %372, %cst_170 [1] : vector<64x32xf32> to vector<64xf32>
    %378 = vector.shape_cast %377 : vector<64xf32> to vector<64x1xf32>
    %cst_171 = arith.constant 3.200000e+01 : f32
    %379 = vector.broadcast %cst_171 : f32 to vector<64x1xf32>
    %380 = arith.divf %378, %379 : vector<64x1xf32>
    %381 = vector.broadcast %380 : vector<64x1xf32> to vector<64x32xf32>
    %382 = arith.subf %372, %381 : vector<64x32xf32>
    %383 = arith.mulf %382, %382 : vector<64x32xf32>
    %cst_172 = arith.constant dense<0.000000e+00> : vector<64xf32>
    %384 = vector.multi_reduction <add>, %383, %cst_172 [1] : vector<64x32xf32> to vector<64xf32>
    %385 = vector.shape_cast %384 : vector<64xf32> to vector<64x1xf32>
    %cst_173 = arith.constant 3.200000e+01 : f32
    %386 = vector.broadcast %cst_173 : f32 to vector<64x1xf32>
    %387 = arith.divf %385, %386 : vector<64x1xf32>
    %cst_174 = arith.constant 9.99999996E-13 : f32
    %388 = vector.broadcast %cst_174 : f32 to vector<64x1xf32>
    %389 = arith.addf %387, %388 : vector<64x1xf32>
    %390 = math.rsqrt %389 : vector<64x1xf32>
    %391 = vector.broadcast %390 : vector<64x1xf32> to vector<64x32xf32>
    %392 = arith.mulf %382, %391 : vector<64x32xf32>
    %393 = vector.broadcast %374 : vector<1x32xf32> to vector<64x32xf32>
    %394 = arith.mulf %392, %393 : vector<64x32xf32>
    %395 = vector.broadcast %376 : vector<1x32xf32> to vector<64x32xf32>
    %396 = arith.addf %394, %395 : vector<64x32xf32>
    %c0_175 = arith.constant 0 : index
    %c0_176 = arith.constant 0 : index
    %397 = vector.load %arg5[%c0_175, %c0_176] : memref<33x128xf32, #tpu.memory_space<vmem>>, vector<32x128xf32>
    %c32 = arith.constant 32 : index
    %c0_177 = arith.constant 0 : index
    %398 = vector.load %arg5[%c32, %c0_177] : memref<33x128xf32, #tpu.memory_space<vmem>>, vector<1x128xf32>
    %399 = vector.extract_strided_slice %396 {offsets = [6, 0], sizes = [19, 32], strides = [1, 1]} : vector<64x32xf32> to vector<19x32xf32>
    %cst_178 = arith.constant dense<0.000000e+00> : vector<19x128xf32>
    %400 = tpu.matmul %399, %397, %cst_178 {dimension_numbers = #tpu.dot_dimension_numbers<[1], [0], [0], [1], [0, 0, 1, 1], [], []>} : vector<19x32xf32>, vector<32x128xf32>, vector<19x128xf32> -> vector<19x128xf32>
    %401 = vector.broadcast %398 : vector<1x128xf32> to vector<19x128xf32>
    %402 = arith.addf %400, %401 : vector<19x128xf32>
    %c0_179 = arith.constant 0 : index
    %c0_180 = arith.constant 0 : index
    %c0_181 = arith.constant 0 : index
    %403 = vector.load %arg6[%c0_179, %c0_180, %c0_181] : memref<2x19x128xf32, #tpu.memory_space<vmem>>, vector<1x19x128xf32>
    %404 = vector.shape_cast %403 : vector<1x19x128xf32> to vector<19x128xf32>
    %405 = vector.shape_cast %402 : vector<19x128xf32> to vector<1x19x128xf32>
    tpu.vector_store %arg6[%c0_179, %c0_180, %c0_181], %405 {strides = array<i32>} : memref<2x19x128xf32, #tpu.memory_space<vmem>>, vector<1x19x128xf32>,
    %406 = vector.extract_strided_slice %396 {offsets = [38, 0], sizes = [19, 32], strides = [1, 1]} : vector<64x32xf32> to vector<19x32xf32>
    %cst_182 = arith.constant dense<0.000000e+00> : vector<19x128xf32>
    %407 = tpu.matmul %406, %397, %cst_182 {dimension_numbers = #tpu.dot_dimension_numbers<[1], [0], [0], [1], [0, 0, 1, 1], [], []>} : vector<19x32xf32>, vector<32x128xf32>, vector<19x128xf32> -> vector<19x128xf32>
    %408 = vector.broadcast %398 : vector<1x128xf32> to vector<19x128xf32>
    %409 = arith.addf %407, %408 : vector<19x128xf32>
    %c1_183 = arith.constant 1 : index
    %c0_184 = arith.constant 0 : index
    %c0_185 = arith.constant 0 : index
    %410 = vector.load %arg6[%c1_183, %c0_184, %c0_185] : memref<2x19x128xf32, #tpu.memory_space<vmem>>, vector<1x19x128xf32>
    %411 = vector.shape_cast %410 : vector<1x19x128xf32> to vector<19x128xf32>
    %412 = vector.shape_cast %409 : vector<19x128xf32> to vector<1x19x128xf32>
    tpu.vector_store %arg6[%c1_183, %c0_184, %c0_185], %412 {strides = array<i32>} : memref<2x19x128xf32, #tpu.memory_space<vmem>>, vector<1x19x128xf32>,
    return
  }
  func.func @transform_0(%arg0: i32) -> (i32, i32) {
    %c0_i32 = arith.constant 0 : i32
    %c0_i32_0 = arith.constant 0 : i32
    %c0_i32_1 = arith.constant 0 : i32
    return %c0_i32, %c0_i32_0 : i32, i32
  }
  func.func @transform_1(%arg0: i32) -> (i32, i32) {
    %c0_i32 = arith.constant 0 : i32
    %c0_i32_0 = arith.constant 0 : i32
    %c0_i32_1 = arith.constant 0 : i32
    return %c0_i32, %c0_i32_0 : i32, i32
  }
  func.func @transform_2(%arg0: i32) -> (i32, i32, i32) {
    %c0_i32 = arith.constant 0 : i32
    %c0_i32_0 = arith.constant 0 : i32
    %c0_i32_1 = arith.constant 0 : i32
    %c0_i32_2 = arith.constant 0 : i32
    return %c0_i32, %c0_i32_0, %c0_i32_1 : i32, i32, i32
  }
  func.func @transform_3(%arg0: i32) -> (i32, i32, i32) {
    %c0_i32 = arith.constant 0 : i32
    %c0_i32_0 = arith.constant 0 : i32
    %c0_i32_1 = arith.constant 0 : i32
    %c0_i32_2 = arith.constant 0 : i32
    return %c0_i32, %c0_i32_0, %c0_i32_1 : i32, i32, i32
  }
  func.func @transform_4(%arg0: i32) -> (i32, i32) {
    %c0_i32 = arith.constant 0 : i32
    %c0_i32_0 = arith.constant 0 : i32
    %c0_i32_1 = arith.constant 0 : i32
    return %c0_i32, %c0_i32_0 : i32, i32
  }
  func.func @transform_5(%arg0: i32) -> (i32, i32, i32) {
    %c0_i32 = arith.constant 0 : i32
    %c0_i32_0 = arith.constant 0 : i32
    %c0_i32_1 = arith.constant 0 : i32
    %c0_i32_2 = arith.constant 0 : i32
    return %c0_i32, %c0_i32_0, %c0_i32_1 : i32, i32, i32
  }
}

</mosaic_0001>

<llo_original>
// kernel: _lambda_.1
$region0: #{_lambda_.1}
  #allocation0 [shape = 'u32[]', space=smem, size = 0x4, offset = 0x4, fixed_abs, tag = 'smem constant byte address 0x4 - core index']
  #allocation1 [shape = 'u32[144,128]{1,0:T(1,128)}', space=vmem, size = 0x12000, scoped, tag = 'internal scratch']
  %s0 = inlined_call_operand.vmem [shape: s32[64,1], index: 0, kind: input, shape index: {}]
  %s1 = inlined_call_operand.hbm [shape: f32[82,32], index: 1, kind: input, shape index: {}]
  %s2 = inlined_call_operand.hbm [shape: f32[2,32,512], index: 2, kind: input, shape index: {}]
  %s3 = inlined_call_operand.vmem [shape: f32[2,8,128], index: 3, kind: input, shape index: {}]
  %s4 = inlined_call_operand.vmem [shape: f32[33,128], index: 4, kind: input, shape index: {}]
  %s5 = inlined_call_operand.vmem [shape: f32[2,19,128], index: 5, kind: output, shape index: {}]
  %s6 = sld [smem:[#allocation0]]
  $region38: #{_lambda_.1} parent=0
    _
  %s8 = ssub.s32 1, %s6
  %s9 = scalar_select 0, %s8, %s6
  $region1: #{_lambda_.1} parent=0
    #allocation2 [shape = 'u8[45056]{0}', space=vmem, size = 0xb000, scoped, tag = 'input window, operand 1, single buffered']
    #allocation3 [shape = 's32[1]{0}', space=sflag, size = 0x4, scoped, tag = 'scoped memory for _lambda_.1']
    #allocation4 [shape = 'u8[131072]{0}', space=vmem, size = 0x20000, scoped, tag = 'input window, operand 2, single buffered']
    #allocation5 [shape = 's32[1]{0}', space=sflag, size = 0x4, scoped, tag = 'scoped memory for _lambda_.1']
    %10 = vsyncpa [#allocation3], 0
    %11 = vsyncpa [#allocation5], 0
    // Predicated region
    $region2: #{_lambda_.1} parent=1 // pred_check
      _
    $region3: #{_lambda_.1} parent=1 // pred_check_branch
      %13 = sbr.rel (0) target = $region5
    $region4: #{_lambda_.1} parent=1 // pred_region
      _
    $region5: #{_lambda_.1} parent=1 // pred_fallthru
      _
    // Predicated region
    $region6: #{_lambda_.1} parent=1 // pred_check
      _
    $region7: #{_lambda_.1} parent=1 // pred_check_branch
      %15 = sbr.rel (0) target = $region9
    $region8: #{_lambda_.1} parent=1 // pred_region
      %s17 = ssub.s32 1408, 1408
      %18 = vsyncadd [#allocation3], %s17
      %s19 = sshll.u32 [#allocation2], 4
      %s20 = int_to_ptr.vmem [resolvable:$true] %s19
      %25 = dma.hbm_to_vmem [thread:$0]  %s1, 1408, %s20, [#allocation3], 128, 128, 8
    $region9: #{_lambda_.1} parent=1 // pred_fallthru
      _
    // Predicated region
    $region10: #{_lambda_.1} parent=1 // pred_check
      _
    $region11: #{_lambda_.1} parent=1 // pred_check_branch
      %27 = sbr.rel (0) target = $region13
    $region12: #{_lambda_.1} parent=1 // pred_region
      %s29 = ssub.s32 4096, 4096
      %30 = vsyncadd [#allocation5], %s29
      %s31 = sshll.u32 [#allocation4], 4
      %s32 = int_to_ptr.vmem [resolvable:$true] %s31
      %37 = dma.hbm_to_vmem [thread:$0]  %s2, 4096, %s32, [#allocation5], 512, 512, 32
    $region13: #{_lambda_.1} parent=1 // pred_fallthru
      _
    // Predicated region
    $region14: #{_lambda_.1} parent=1 // pred_check
      _
    $region15: #{_lambda_.1} parent=1 // pred_check_branch
      %39 = sbr.rel (0) target = $region17
    $region16: #{_lambda_.1} parent=1 // pred_region
      _
    $region17: #{_lambda_.1} parent=1 // pred_fallthru
      _
    // Predicated region
    $region18: #{_lambda_.1} parent=1 // pred_check
      _
    $region19: #{_lambda_.1} parent=1 // pred_check_branch
      %41 = sbr.rel (0) target = $region21
    $region20: #{_lambda_.1} parent=1 // pred_region
      _
    $region21: #{_lambda_.1} parent=1 // pred_fallthru
      _
    // Predicated region
    $region22: #{_lambda_.1} parent=1 // pred_check
      _
    $region23: #{_lambda_.1} parent=1 // pred_check_branch
      %43 = sbr.rel (0) target = $region25
    $region24: #{_lambda_.1} parent=1 // pred_region
      %44 = dma.done [#allocation3], 1408
    $region25: #{_lambda_.1} parent=1 // pred_fallthru
      _
    // Predicated region
    $region26: #{_lambda_.1} parent=1 // pred_check
      _
    $region27: #{_lambda_.1} parent=1 // pred_check_branch
      %46 = sbr.rel (0) target = $region29
    $region28: #{_lambda_.1} parent=1 // pred_region
      %47 = dma.done [#allocation5], 4096
    $region29: #{_lambda_.1} parent=1 // pred_fallthru
      _
    %v48 = vld [vmem:[%s0] sm:$0xff]
    %v49 = vld [vmem:[%s0 + $0x8] sm:$0xff]
    %v50 = vld [vmem:[%s0 + $0x10] sm:$0xff]
    %v51 = vld [vmem:[%s0 + $0x18] sm:$0xff]
    %v52 = vld [vmem:[%s0 + $0x20] sm:$0xff]
    %v53 = vld [vmem:[%s0 + $0x28] sm:$0xff]
    %v54 = vld [vmem:[%s0 + $0x30] sm:$0xff]
    %v55 = vld [vmem:[%s0 + $0x38] sm:$0xff]
    %v56 = vlaneseq
    %v57 = vand.u32 %v56, 127
    %58 = vset.pattern.permute.xlu0 0
    %59 = vperm.xlu0 %58, %v48
    %v60 = vpop.permute.xlu0 %59
    %61 = vset.pattern.permute.xlu0 0
    %62 = vperm.xlu0 %61, %v49
    %v63 = vpop.permute.xlu0 %62
    %64 = vset.pattern.permute.xlu0 0
    %65 = vperm.xlu0 %64, %v50
    %v66 = vpop.permute.xlu0 %65
    %67 = vset.pattern.permute.xlu0 0
    %68 = vperm.xlu0 %67, %v51
    %v69 = vpop.permute.xlu0 %68
    %70 = vset.pattern.permute.xlu0 0
    %71 = vperm.xlu0 %70, %v52
    %v72 = vpop.permute.xlu0 %71
    %73 = vset.pattern.permute.xlu0 0
    %74 = vperm.xlu0 %73, %v53
    %v75 = vpop.permute.xlu0 %74
    %76 = vset.pattern.permute.xlu0 0
    %77 = vperm.xlu0 %76, %v54
    %v78 = vpop.permute.xlu0 %77
    %79 = vset.pattern.permute.xlu0 0
    %80 = vperm.xlu0 %79, %v55
    %v81 = vpop.permute.xlu0 %80
    %vm82 = vcmp.eq.s32.totalorder %v60, %v57
    %vm83 = vcmp.eq.s32.totalorder %v63, %v57
    %vm84 = vcmp.eq.s32.totalorder %v66, %v57
    %vm85 = vcmp.eq.s32.totalorder %v69, %v57
    %vm86 = vcmp.eq.s32.totalorder %v72, %v57
    %vm87 = vcmp.eq.s32.totalorder %v75, %v57
    %vm88 = vcmp.eq.s32.totalorder %v78, %v57
    %vm89 = vcmp.eq.s32.totalorder %v81, %v57
    %v90 = vsel %vm82, 1, 0
    %v91 = vsel %vm83, 1, 0
    %v92 = vsel %vm84, 1, 0
    %v93 = vsel %vm85, 1, 0
    %v94 = vsel %vm86, 1, 0
    %v95 = vsel %vm87, 1, 0
    %v96 = vsel %vm88, 1, 0
    %v97 = vsel %vm89, 1, 0
    %v98 = vcvt.s32.f32 %v90
    %v99 = vcvt.s32.f32 %v91
    %v100 = vcvt.s32.f32 %v92
    %v101 = vcvt.s32.f32 %v93
    %v102 = vcvt.s32.f32 %v94
    %v103 = vcvt.s32.f32 %v95
    %v104 = vcvt.s32.f32 %v96
    %v105 = vcvt.s32.f32 %v97
    %v106 = vld [vmem:[#allocation2] sm:$0xff]
    %v107 = vld [vmem:[#allocation2 + $0x8] sm:$0xff]
    %v108 = vld [vmem:[#allocation2 + $0x10] sm:$0xff]
    %v109 = vld [vmem:[#allocation2 + $0x18] sm:$0xff]
    %v110 = vld [vmem:[#allocation2 + $0x20] sm:$0xff]
    %v111 = vld [vmem:[#allocation2 + $0x28] sm:$0xff]
    %vm112 = vcmask 130048
    %v114 = vsel %vm112, %v98, 0
    %v117 = vsel %vm112, %v99, 0
    %v120 = vsel %vm112, %v100, 0
    %v123 = vsel %vm112, %v101, 0
    %v126 = vsel %vm112, %v102, 0
    %v129 = vsel %vm112, %v103, 0
    %v132 = vsel %vm112, %v104, 0
    %v135 = vsel %vm112, %v105, 0
    %137 = vmatprep.subr.mxu0 0.0
    %138 = vmatpush1.msra.mxu0 %v106
    %139 = vmatprep.subr.mxu0 0.0
    %140 = vmatpush1.msra.mxu0 %v107
    %141 = vmatprep.subr.mxu0 0.0
    %142 = vmatpush1.msra.mxu0 0.0
    %143 = vmatprep.subr.mxu0 0.0
    %144 = vmatpush1.msra.mxu0 0.0
    %145 = vmatprep.subr.mxu0 0.0
    %146 = vmatpush1.msra.mxu0 0.0
    %147 = vmatprep.subr.mxu0 0.0
    %148 = vmatpush1.msra.mxu0 0.0
    %149 = vmatprep.subr.mxu0 0.0
    %150 = vmatpush1.msra.mxu0 0.0
    %151 = vmatprep.subr.mxu0 0.0
    %152 = vmatpush1.msra.mxu0 0.0
    %153 = vmatprep.subr.mxu0 0.0
    %154 = vmatpush1.msra.mxu0 0.0
    %155 = vmatprep.subr.mxu0 0.0
    %156 = vmatpush1.msra.mxu0 0.0
    %157 = vmatprep.subr.mxu0 0.0
    %158 = vmatpush1.msra.mxu0 0.0
    %159 = vmatprep.subr.mxu0 0.0
    %160 = vmatpush1.msra.mxu0 0.0
    %161 = vmatprep.subr.mxu0 0.0
    %162 = vmatpush1.msra.mxu0 0.0
    %163 = vmatprep.subr.mxu0 0.0
    %164 = vmatpush1.msra.mxu0 0.0
    %165 = vmatprep.subr.mxu0 0.0
    %166 = vmatpush1.msra.mxu0 0.0
    %167 = vmatprep.subr.mxu0 0.0
    %168 = vmatpush1.msra.mxu0 0.0
    %169 = vmatprep.subr.mxu0 0.0
    %170 = vmatpush1.msra.mxu0 0.0
    %171 = vmatprep.subr.mxu0 0.0
    %172 = vmatpush1.msra.mxu0 0.0
    %173 = vmatprep.subr.mxu0 0.0
    %174 = vmatpush1.msra.mxu0 0.0
    %175 = vmatprep.subr.mxu0 0.0
    %176 = vmatpush1.msra.mxu0 0.0
    %177 = vmatprep.subr.mxu0 0.0
    %178 = vmatpush1.msra.mxu0 0.0
    %179 = vmatprep.subr.mxu0 0.0
    %180 = vmatpush1.msra.mxu0 0.0
    %181 = vmatprep.subr.mxu0 0.0
    %182 = vmatpush1.msra.mxu0 0.0
    %183 = vmatprep.subr.mxu0 0.0
    %184 = vmatpush1.msra.mxu0 0.0
    %185 = vmatprep.subr.mxu0 0.0
    %186 = vmatpush1.msra.mxu0 0.0
    %187 = vmatprep.subr.mxu0 0.0
    %188 = vmatpush1.msra.mxu0 0.0
    %189 = vmatprep.subr.mxu0 0.0
    %190 = vmatpush1.msra.mxu0 0.0
    %191 = vmatprep.subr.mxu0 0.0
    %192 = vmatpush1.msra.mxu0 0.0
    %193 = vmatprep.subr.mxu0 0.0
    %194 = vmatpush1.msra.mxu0 0.0
    %195 = vmatprep.subr.mxu0 0.0
    %196 = vmatpush1.msra.mxu0 0.0
    %197 = vmatprep.subr.mxu0 0.0
    %198 = vmatpush1.msra.mxu0 0.0
    %199 = vmatprep.subr.mxu0 0.0
    %200 = vmatpush1.msra.mxu0 0.0
    %201 = vmatprep.mubr.f32.mxu0 0.0
    %202 = vmatmul.mubr.f32.gmra.mrb[0].mxu0 %v114
    %v203 = vpop.f32.mrb[0].mxu0
    %v204 = vadd.f32 %v108, %v203
    %v205 = vpop.f32.mrb[0].mxu0
    %206 = vmatprep.mubr.f32.mxu0 0.0
    %207 = vmatmul.mubr.f32.gmra.mrb[0].mxu0 %v117
    %v208 = vpop.f32.mrb[0].mxu0
    %v209 = vadd.f32 %v109, %v208
    %v210 = vpop.f32.mrb[0].mxu0
    %211 = vmatprep.mubr.f32.mxu0 0.0
    %212 = vmatmul.mubr.f32.gmra.mrb[0].mxu0 %v120
    %v213 = vpop.f32.mrb[0].mxu0
    %v214 = vadd.f32 %v110, %v213
    %v215 = vpop.f32.mrb[0].mxu0
    %216 = vmatprep.mubr.f32.mxu0 0.0
    %217 = vmatmul.mubr.f32.gmra.mrb[0].mxu0 %v123
    %v218 = vpop.f32.mrb[0].mxu0
    %v219 = vadd.f32 %v111, %v218
    %v220 = vpop.f32.mrb[0].mxu0
    %221 = vmatprep.mubr.f32.mxu0 0.0
    %222 = vmatmul.mubr.f32.gmra.mrb[0].mxu0 %v126
    %v223 = vpop.f32.mrb[0].mxu0
    %v224 = vadd.f32 %v108, %v223
    %v225 = vpop.f32.mrb[0].mxu0
    %226 = vmatprep.mubr.f32.mxu0 0.0
    %227 = vmatmul.mubr.f32.gmra.mrb[0].mxu0 %v129
    %v228 = vpop.f32.mrb[0].mxu0
    %v229 = vadd.f32 %v109, %v228
    %v230 = vpop.f32.mrb[0].mxu0
    %231 = vmatprep.mubr.f32.mxu0 0.0
    %232 = vmatmul.mubr.f32.gmra.mrb[0].mxu0 %v132
    %v233 = vpop.f32.mrb[0].mxu0
    %v234 = vadd.f32 %v110, %v233
    %v235 = vpop.f32.mrb[0].mxu0
    %236 = vmatprep.mubr.f32.mxu0 0.0
    %237 = vmatmul.mubr.f32.gmra.mrb[0].mxu0 %v135
    %v238 = vpop.f32.mrb[0].mxu0
    %v239 = vadd.f32 %v111, %v238
    %v240 = vpop.f32.mrb[0].mxu0
    %241 = vdwg.mxu0
    %v242 = vld [vmem:[#allocation2 + $0x50] sm:$0x1]
    %v243 = vld [vmem:[#allocation2 + $0x51] sm:$0x1]
    %vm244 = vcmask 261120
    %v245 = vsel %vm244, %v204, 0.0
    %246 = vadd.xlane.f32.xlu0 %v245
    %v247 = vpop.xlane.xlu0 %246
    %v248 = vsel %vm244, %v209, 0.0
    %249 = vadd.xlane.f32.xlu0 %v248
    %v250 = vpop.xlane.xlu0 %249
    %v251 = vsel %vm244, %v214, 0.0
    %252 = vadd.xlane.f32.xlu0 %v251
    %v253 = vpop.xlane.xlu0 %252
    %v254 = vsel %vm244, %v219, 0.0
    %255 = vadd.xlane.f32.xlu0 %v254
    %v256 = vpop.xlane.xlu0 %255
    %v257 = vsel %vm244, %v224, 0.0
    %258 = vadd.xlane.f32.xlu0 %v257
    %v259 = vpop.xlane.xlu0 %258
    %v260 = vsel %vm244, %v229, 0.0
    %261 = vadd.xlane.f32.xlu0 %v260
    %v262 = vpop.xlane.xlu0 %261
    %v263 = vsel %vm244, %v234, 0.0
    %264 = vadd.xlane.f32.xlu0 %v263
    %v265 = vpop.xlane.xlu0 %264
    %v266 = vsel %vm244, %v239, 0.0
    %267 = vadd.xlane.f32.xlu0 %v266
    %v268 = vpop.xlane.xlu0 %267
    %v269 = vrcp.pop 32.0
    %v270 = vmul.f32 %v247, %v269
    %v271 = vmul.f32 %v250, %v269
    %v272 = vmul.f32 %v253, %v269
    %v273 = vmul.f32 %v256, %v269
    %v274 = vmul.f32 %v259, %v269
    %v275 = vmul.f32 %v262, %v269
    %v276 = vmul.f32 %v265, %v269
    %v277 = vmul.f32 %v268, %v269
    %v278 = vsub.f32 %v204, %v270
    %v279 = vsub.f32 %v209, %v271
    %v280 = vsub.f32 %v214, %v272
    %v281 = vsub.f32 %v219, %v273
    %v282 = vsub.f32 %v224, %v274
    %v283 = vsub.f32 %v229, %v275
    %v284 = vsub.f32 %v234, %v276
    %v285 = vsub.f32 %v239, %v277
    %v286 = vmul.f32 %v278, %v278
    %v287 = vmul.f32 %v279, %v279
    %v288 = vmul.f32 %v280, %v280
    %v289 = vmul.f32 %v281, %v281
    %v290 = vmul.f32 %v282, %v282
    %v291 = vmul.f32 %v283, %v283
    %v292 = vmul.f32 %v284, %v284
    %v293 = vmul.f32 %v285, %v285
    %v294 = vsel %vm244, %v286, 0.0
    %295 = vadd.xlane.f32.xlu0 %v294
    %v296 = vpop.xlane.xlu0 %295
    %v297 = vsel %vm244, %v287, 0.0
    %298 = vadd.xlane.f32.xlu0 %v297
    %v299 = vpop.xlane.xlu0 %298
    %v300 = vsel %vm244, %v288, 0.0
    %301 = vadd.xlane.f32.xlu0 %v300
    %v302 = vpop.xlane.xlu0 %301
    %v303 = vsel %vm244, %v289, 0.0
    %304 = vadd.xlane.f32.xlu0 %v303
    %v305 = vpop.xlane.xlu0 %304
    %v306 = vsel %vm244, %v290, 0.0
    %307 = vadd.xlane.f32.xlu0 %v306
    %v308 = vpop.xlane.xlu0 %307
    %v309 = vsel %vm244, %v291, 0.0
    %310 = vadd.xlane.f32.xlu0 %v309
    %v311 = vpop.xlane.xlu0 %310
    %v312 = vsel %vm244, %v292, 0.0
    %313 = vadd.xlane.f32.xlu0 %v312
    %v314 = vpop.xlane.xlu0 %313
    %v315 = vsel %vm244, %v293, 0.0
    %316 = vadd.xlane.f32.xlu0 %v315
    %v317 = vpop.xlane.xlu0 %316
    %v318 = vmul.f32 %v296, %v269
    %v319 = vmul.f32 %v299, %v269
    %v320 = vmul.f32 %v302, %v269
    %v321 = vmul.f32 %v305, %v269
    %v322 = vmul.f32 %v308, %v269
    %v323 = vmul.f32 %v311, %v269
    %v324 = vmul.f32 %v314, %v269
    %v325 = vmul.f32 %v317, %v269
    %v326 = vadd.f32 %v318, 1e-12
    %v327 = vadd.f32 %v319, 1e-12
    %v328 = vadd.f32 %v320, 1e-12
    %v329 = vadd.f32 %v321, 1e-12
    %v330 = vadd.f32 %v322, 1e-12
    %v331 = vadd.f32 %v323, 1e-12
    %v332 = vadd.f32 %v324, 1e-12
    %v333 = vadd.f32 %v325, 1e-12
    %v334 = vrsqrt.pop %v326
    %v335 = vrsqrt.pop %v327
    %v336 = vrsqrt.pop %v328
    %v337 = vrsqrt.pop %v329
    %v338 = vrsqrt.pop %v330
    %v339 = vrsqrt.pop %v331
    %v340 = vrsqrt.pop %v332
    %v341 = vrsqrt.pop %v333
    %v342 = vmul.f32 %v278, %v334
    %v343 = vmul.f32 %v279, %v335
    %v344 = vmul.f32 %v280, %v336
    %v345 = vmul.f32 %v281, %v337
    %v346 = vmul.f32 %v282, %v338
    %v347 = vmul.f32 %v283, %v339
    %v348 = vmul.f32 %v284, %v340
    %v349 = vmul.f32 %v285, %v341
    %v350 = vlaneseq
    %v351 = vshrl.u32 %v350, 7
    %v352 = vsub.s32 0, %v351
    %v353 = vrot.slane %v242, %v352
    %v354 = vmul.f32 %v342, %v353
    %v355 = vmul.f32 %v343, %v353
    %v356 = vmul.f32 %v344, %v353
    %v357 = vmul.f32 %v345, %v353
    %v358 = vmul.f32 %v346, %v353
    %v359 = vmul.f32 %v347, %v353
    %v360 = vmul.f32 %v348, %v353
    %v361 = vmul.f32 %v349, %v353
    %v362 = vlaneseq
    %v363 = vshrl.u32 %v362, 7
    %v364 = vsub.s32 0, %v363
    %v365 = vrot.slane %v243, %v364
    %v366 = vadd.f32 %v354, %v365
    %v367 = vadd.f32 %v355, %v365
    %v368 = vadd.f32 %v356, %v365
    %v369 = vadd.f32 %v357, %v365
    %v370 = vadd.f32 %v358, %v365
    %v371 = vadd.f32 %v359, %v365
    %v372 = vadd.f32 %v360, %v365
    %v373 = vadd.f32 %v361, %v365
    %vm374 = vcmp.lt.s32.totalorder %v57, 31
    %v375 = vsel %vm374, 0.0, -1e+30
    %v376 = vld [vmem:[#allocation4] sm:$0xff]
    %v377 = vld [vmem:[#allocation4 + $0x20] sm:$0xff]
    %v378 = vld [vmem:[#allocation4 + $0x40] sm:$0xff]
    %v379 = vld [vmem:[#allocation4 + $0x60] sm:$0xff]
    %v380 = vld [vmem:[%s3] sm:$0x1]
    %v381 = vlaneseq
    %v382 = vshrl.u32 %v381, 7
    %v383 = vsub.s32 0, %v382
    %v384 = vrot.slane %v380, %v383
    %v386 = vsel %vm244, %v366, 0
    %v389 = vsel %vm244, %v367, 0
    %v392 = vsel %vm244, %v368, 0
    %v395 = vsel %vm244, %v369, 0
    %v398 = vsel %vm244, %v370, 0
    %v401 = vsel %vm244, %v371, 0
    %v404 = vsel %vm244, %v372, 0
    %v407 = vsel %vm244, %v373, 0
    %409 = vmatprep.subr.mxu0 0.0
    %410 = vmatpush1.msra.mxu0 %v376
    %411 = vmatprep.subr.mxu0 0.0
    %412 = vmatpush1.msra.mxu0 %v377
    %413 = vmatprep.subr.mxu0 0.0
    %414 = vmatpush1.msra.mxu0 %v378
    %415 = vmatprep.subr.mxu0 0.0
    %416 = vmatpush1.msra.mxu0 %v379
    %417 = vmatprep.subr.mxu0 0.0
    %418 = vmatpush1.msra.mxu0 0.0
    %419 = vmatprep.subr.mxu0 0.0
    %420 = vmatpush1.msra.mxu0 0.0
    %421 = vmatprep.subr.mxu0 0.0
    %422 = vmatpush1.msra.mxu0 0.0
    %423 = vmatprep.subr.mxu0 0.0
    %424 = vmatpush1.msra.mxu0 0.0
    %425 = vmatprep.subr.mxu0 0.0
    %426 = vmatpush1.msra.mxu0 0.0
    %427 = vmatprep.subr.mxu0 0.0
    %428 = vmatpush1.msra.mxu0 0.0
    %429 = vmatprep.subr.mxu0 0.0
    %430 = vmatpush1.msra.mxu0 0.0
    %431 = vmatprep.subr.mxu0 0.0
    %432 = vmatpush1.msra.mxu0 0.0
    %433 = vmatprep.subr.mxu0 0.0
    %434 = vmatpush1.msra.mxu0 0.0
    %435 = vmatprep.subr.mxu0 0.0
    %436 = vmatpush1.msra.mxu0 0.0
    %437 = vmatprep.subr.mxu0 0.0
    %438 = vmatpush1.msra.mxu0 0.0
    %439 = vmatprep.subr.mxu0 0.0
    %440 = vmatpush1.msra.mxu0 0.0
    %441 = vmatprep.subr.mxu0 0.0
    %442 = vmatpush1.msra.mxu0 0.0
    %443 = vmatprep.subr.mxu0 0.0
    %444 = vmatpush1.msra.mxu0 0.0
    %445 = vmatprep.subr.mxu0 0.0
    %446 = vmatpush1.msra.mxu0 0.0
    %447 = vmatprep.subr.mxu0 0.0
    %448 = vmatpush1.msra.mxu0 0.0
    %449 = vmatprep.subr.mxu0 0.0
    %450 = vmatpush1.msra.mxu0 0.0
    %451 = vmatprep.subr.mxu0 0.0
    %452 = vmatpush1.msra.mxu0 0.0
    %453 = vmatprep.subr.mxu0 0.0
    %454 = vmatpush1.msra.mxu0 0.0
    %455 = vmatprep.subr.mxu0 0.0
    %456 = vmatpush1.msra.mxu0 0.0
    %457 = vmatprep.subr.mxu0 0.0
    %458 = vmatpush1.msra.mxu0 0.0
    %459 = vmatprep.subr.mxu0 0.0
    %460 = vmatpush1.msra.mxu0 0.0
    %461 = vmatprep.subr.mxu0 0.0
    %462 = vmatpush1.msra.mxu0 0.0
    %463 = vmatprep.subr.mxu0 0.0
    %464 = vmatpush1.msra.mxu0 0.0
    %465 = vmatprep.subr.mxu0 0.0
    %466 = vmatpush1.msra.mxu0 0.0
    %467 = vmatprep.subr.mxu0 0.0
    %468 = vmatpush1.msra.mxu0 0.0
    %469 = vmatprep.subr.mxu0 0.0
    %470 = vmatpush1.msra.mxu0 0.0
    %471 = vmatprep.subr.mxu0 0.0
    %472 = vmatpush1.msra.mxu0 0.0
    %473 = vmatprep.mubr.f32.mxu0 0.0
    %474 = vmatmul.mubr.f32.gmra.mrb[0].mxu0 %v386
    %v475 = vpop.f32.mrb[0].mxu0
    %v476 = vadd.f32 %v384, %v475
    %v477 = vpop.f32.mrb[0].mxu0
    %478 = vmatprep.mubr.f32.mxu0 0.0
    %479 = vmatmul.mubr.f32.gmra.mrb[0].mxu0 %v389
    %v480 = vpop.f32.mrb[0].mxu0
    %v481 = vadd.f32 %v384, %v480
    %v482 = vpop.f32.mrb[0].mxu0
    %483 = vmatprep.mubr.f32.mxu0 0.0
    %484 = vmatmul.mubr.f32.gmra.mrb[0].mxu0 %v392
    %v485 = vpop.f32.mrb[0].mxu0
    %v486 = vadd.f32 %v384, %v485
    %v487 = vpop.f32.mrb[0].mxu0
    %488 = vmatprep.mubr.f32.mxu0 0.0
    %489 = vmatmul.mubr.f32.gmra.mrb[0].mxu0 %v395
    %v490 = vpop.f32.mrb[0].mxu0
    %v491 = vadd.f32 %v384, %v490
    %v492 = vpop.f32.mrb[0].mxu0
    %493 = vmatprep.mubr.f32.mxu0 0.0
    %494 = vmatmul.mubr.f32.gmra.mrb[0].mxu0 %v398
    %v495 = vpop.f32.mrb[0].mxu0
    %v496 = vadd.f32 %v384, %v495
    %v497 = vpop.f32.mrb[0].mxu0
    %498 = vmatprep.mubr.f32.mxu0 0.0
    %499 = vmatmul.mubr.f32.gmra.mrb[0].mxu0 %v401
    %v500 = vpop.f32.mrb[0].mxu0
    %v501 = vadd.f32 %v384, %v500
    %v502 = vpop.f32.mrb[0].mxu0
    %503 = vmatprep.mubr.f32.mxu0 0.0
    %504 = vmatmul.mubr.f32.gmra.mrb[0].mxu0 %v404
    %v505 = vpop.f32.mrb[0].mxu0
    %v506 = vadd.f32 %v384, %v505
    %v507 = vpop.f32.mrb[0].mxu0
    %508 = vmatprep.mubr.f32.mxu0 0.0
    %509 = vmatmul.mubr.f32.gmra.mrb[0].mxu0 %v407
    %v510 = vpop.f32.mrb[0].mxu0
    %v511 = vadd.f32 %v384, %v510
    %v512 = vpop.f32.mrb[0].mxu0
    %513 = vdwg.mxu0
    %518 = vrot.lane.b32.xlu0 %v476, 96
    %v519 = vpop.permute.xlu0 %518
    %520 = vrot.lane.b32.xlu0 %v481, 96
    %v521 = vpop.permute.xlu0 %520
    %522 = vrot.lane.b32.xlu0 %v486, 96
    %v523 = vpop.permute.xlu0 %522
    %524 = vrot.lane.b32.xlu0 %v491, 96
    %v525 = vpop.permute.xlu0 %524
    %v526 = vsel %vm112, %v476, 0
    %v528 = vsel %vm112, %v481, 0
    %v530 = vsel %vm112, %v486, 0
    %v532 = vsel %vm112, %v491, 0
    %v534 = vsel %vm112, %v519, 0
    %v536 = vsel %vm112, %v521, 0
    %v538 = vsel %vm112, %v523, 0
    %v540 = vsel %vm112, %v525, 0
    %542 = vmatprep.subr.mxu0 0.0
    %543 = vmatpush1.xpose.msra.mxu0 %v534
    %544 = vmatprep.subr.mxu0 0.0
    %545 = vmatpush1.xpose.msra.mxu0 %v536
    %546 = vmatprep.subr.mxu0 0.0
    %547 = vmatpush1.xpose.msra.mxu0 %v538
    %548 = vmatprep.subr.mxu0 0.0
    %549 = vmatpush1.xpose.msra.mxu0 %v540
    %550 = vmatprep.subr.mxu0 0.0
    %551 = vmatpush1.xpose.msra.mxu0 0.0
    %552 = vmatprep.subr.mxu0 0.0
    %553 = vmatpush1.xpose.msra.mxu0 0.0
    %554 = vmatprep.subr.mxu0 0.0
    %555 = vmatpush1.xpose.msra.mxu0 0.0
    %556 = vmatprep.subr.mxu0 0.0
    %557 = vmatpush1.xpose.msra.mxu0 0.0
    %558 = vmatprep.subr.mxu0 0.0
    %559 = vmatpush1.xpose.msra.mxu0 0.0
    %560 = vmatprep.subr.mxu0 0.0
    %561 = vmatpush1.xpose.msra.mxu0 0.0
    %562 = vmatprep.subr.mxu0 0.0
    %563 = vmatpush1.xpose.msra.mxu0 0.0
    %564 = vmatprep.subr.mxu0 0.0
    %565 = vmatpush1.xpose.msra.mxu0 0.0
    %566 = vmatprep.subr.mxu0 0.0
    %567 = vmatpush1.xpose.msra.mxu0 0.0
    %568 = vmatprep.subr.mxu0 0.0
    %569 = vmatpush1.xpose.msra.mxu0 0.0
    %570 = vmatprep.subr.mxu0 0.0
    %571 = vmatpush1.xpose.msra.mxu0 0.0
    %572 = vmatprep.subr.mxu0 0.0
    %573 = vmatpush1.xpose.msra.mxu0 0.0
    %574 = vmatprep.subr.mxu0 0.0
    %575 = vmatpush1.xpose.msra.mxu0 0.0
    %576 = vmatprep.subr.mxu0 0.0
    %577 = vmatpush1.xpose.msra.mxu0 0.0
    %578 = vmatprep.subr.mxu0 0.0
    %579 = vmatpush1.xpose.msra.mxu0 0.0
    %580 = vmatprep.subr.mxu0 0.0
    %581 = vmatpush1.xpose.msra.mxu0 0.0
    %582 = vmatprep.subr.mxu0 0.0
    %583 = vmatpush1.xpose.msra.mxu0 0.0
    %584 = vmatprep.subr.mxu0 0.0
    %585 = vmatpush1.xpose.msra.mxu0 0.0
    %586 = vmatprep.subr.mxu0 0.0
    %587 = vmatpush1.xpose.msra.mxu0 0.0
    %588 = vmatprep.subr.mxu0 0.0
    %589 = vmatpush1.xpose.msra.mxu0 0.0
    %590 = vmatprep.subr.mxu0 0.0
    %591 = vmatpush1.xpose.msra.mxu0 0.0
    %592 = vmatprep.subr.mxu0 0.0
    %593 = vmatpush1.xpose.msra.mxu0 0.0
    %594 = vmatprep.subr.mxu0 0.0
    %595 = vmatpush1.xpose.msra.mxu0 0.0
    %596 = vmatprep.subr.mxu0 0.0
    %597 = vmatpush1.xpose.msra.mxu0 0.0
    %598 = vmatprep.subr.mxu0 0.0
    %599 = vmatpush1.xpose.msra.mxu0 0.0
    %600 = vmatprep.subr.mxu0 0.0
    %601 = vmatpush1.xpose.msra.mxu0 0.0
    %602 = vmatprep.subr.mxu0 0.0
    %603 = vmatpush1.xpose.msra.mxu0 0.0
    %604 = vmatprep.subr.mxu0 0.0
    %605 = vmatpush1.xpose.msra.mxu0 0.0
    %606 = vmatprep.mubr.f32.mxu0 0.0
    %607 = vmatmul.mubr.f32.gmra.mrb[0].mxu0 %v526
    %v608 = vpop.f32.mrb[0].mxu0
    %v609 = vadd.f32 0.0, %v608
    %v610 = vpop.f32.mrb[0].mxu0
    %611 = vmatprep.mubr.f32.mxu0 0.0
    %612 = vmatmul.mubr.f32.gmra.mrb[0].mxu0 %v528
    %v613 = vpop.f32.mrb[0].mxu0
    %v614 = vadd.f32 0.0, %v613
    %v615 = vpop.f32.mrb[0].mxu0
    %616 = vmatprep.mubr.f32.mxu0 0.0
    %617 = vmatmul.mubr.f32.gmra.mrb[0].mxu0 %v530
    %v618 = vpop.f32.mrb[0].mxu0
    %v619 = vadd.f32 0.0, %v618
    %v620 = vpop.f32.mrb[0].mxu0
    %621 = vmatprep.mubr.f32.mxu0 0.0
    %622 = vmatmul.mubr.f32.gmra.mrb[0].mxu0 %v532
    %v623 = vpop.f32.mrb[0].mxu0
    %v624 = vadd.f32 0.0, %v623
    %v625 = vpop.f32.mrb[0].mxu0
    %626 = vdwg.mxu0
    %v627 = vmul.f32 %v609, 0.25
    %v628 = vmul.f32 %v614, 0.25
    %v629 = vmul.f32 %v619, 0.25
    %v630 = vmul.f32 %v624, 0.25
    %v631 = vadd.f32 %v627, %v375
    %v632 = vadd.f32 %v628, %v375
    %v633 = vadd.f32 %v629, %v375
    %v634 = vadd.f32 %v630, %v375
    %v635 = vsel %vm244, %v631, -inf
    %636 = vmax.xlane.f32.xlu0 %v635
    %v637 = vpop.xlane.xlu0 %636
    %v638 = vsel %vm244, %v632, -inf
    %639 = vmax.xlane.f32.xlu0 %v638
    %v640 = vpop.xlane.xlu0 %639
    %v641 = vsel %vm244, %v633, -inf
    %642 = vmax.xlane.f32.xlu0 %v641
    %v643 = vpop.xlane.xlu0 %642
    %v644 = vsel %vm244, %v634, -inf
    %645 = vmax.xlane.f32.xlu0 %v644
    %v646 = vpop.xlane.xlu0 %645
    %v647 = vsub.f32 %v631, %v637
    %v648 = vsub.f32 %v632, %v640
    %v649 = vsub.f32 %v633, %v643
    %v650 = vsub.f32 %v634, %v646
    %v651 = vmul.f32 %v647, 1.442695
    %v652 = vpow.pop %v651
    %v653 = vmul.f32 %v648, 1.442695
    %v654 = vpow.pop %v653
    %v655 = vmul.f32 %v649, 1.442695
    %v656 = vpow.pop %v655
    %v657 = vmul.f32 %v650, 1.442695
    %v658 = vpow.pop %v657
    %v659 = vsel %vm244, %v652, 0.0
    %660 = vadd.xlane.f32.xlu0 %v659
    %v661 = vpop.xlane.xlu0 %660
    %v662 = vsel %vm244, %v654, 0.0
    %663 = vadd.xlane.f32.xlu0 %v662
    %v664 = vpop.xlane.xlu0 %663
    %v665 = vsel %vm244, %v656, 0.0
    %666 = vadd.xlane.f32.xlu0 %v665
    %v667 = vpop.xlane.xlu0 %666
    %v668 = vsel %vm244, %v658, 0.0
    %669 = vadd.xlane.f32.xlu0 %v668
    %v670 = vpop.xlane.xlu0 %669
    %v671 = vrcp.pop %v661
    %v672 = vrcp.pop %v664
    %v673 = vrcp.pop %v667
    %v674 = vrcp.pop %v670
    %v675 = vmul.f32 %v652, %v671
    %v676 = vmul.f32 %v654, %v672
    %v677 = vmul.f32 %v656, %v673
    %v678 = vmul.f32 %v658, %v674
    %679 = vrot.lane.b32.xlu0 %v476, 64
    %v680 = vpop.permute.xlu0 %679
    %681 = vrot.lane.b32.xlu0 %v481, 64
    %v682 = vpop.permute.xlu0 %681
    %683 = vrot.lane.b32.xlu0 %v486, 64
    %v684 = vpop.permute.xlu0 %683
    %685 = vrot.lane.b32.xlu0 %v491, 64
    %v686 = vpop.permute.xlu0 %685
    %v692 = vsel %vm244, %v675, 0
    %v695 = vsel %vm244, %v676, 0
    %v698 = vsel %vm244, %v677, 0
    %v701 = vsel %vm244, %v678, 0
    %703 = vmatprep.subr.mxu0 0.0
    %704 = vmatpush1.msra.mxu0 %v680
    %705 = vmatprep.subr.mxu0 0.0
    %706 = vmatpush1.msra.mxu0 %v682
    %707 = vmatprep.subr.mxu0 0.0
    %708 = vmatpush1.msra.mxu0 %v684
    %709 = vmatprep.subr.mxu0 0.0
    %710 = vmatpush1.msra.mxu0 %v686
    %711 = vmatprep.subr.mxu0 0.0
    %712 = vmatpush1.msra.mxu0 0.0
    %713 = vmatprep.subr.mxu0 0.0
    %714 = vmatpush1.msra.mxu0 0.0
    %715 = vmatprep.subr.mxu0 0.0
    %716 = vmatpush1.msra.mxu0 0.0
    %717 = vmatprep.subr.mxu0 0.0
    %718 = vmatpush1.msra.mxu0 0.0
    %719 = vmatprep.subr.mxu0 0.0
    %720 = vmatpush1.msra.mxu0 0.0
    %721 = vmatprep.subr.mxu0 0.0
    %722 = vmatpush1.msra.mxu0 0.0
    %723 = vmatprep.subr.mxu0 0.0
    %724 = vmatpush1.msra.mxu0 0.0
    %725 = vmatprep.subr.mxu0 0.0
    %726 = vmatpush1.msra.mxu0 0.0
    %727 = vmatprep.subr.mxu0 0.0
    %728 = vmatpush1.msra.mxu0 0.0
    %729 = vmatprep.subr.mxu0 0.0
    %730 = vmatpush1.msra.mxu0 0.0
    %731 = vmatprep.subr.mxu0 0.0
    %732 = vmatpush1.msra.mxu0 0.0
    %733 = vmatprep.subr.mxu0 0.0
    %734 = vmatpush1.msra.mxu0 0.0
    %735 = vmatprep.subr.mxu0 0.0
    %736 = vmatpush1.msra.mxu0 0.0
    %737 = vmatprep.subr.mxu0 0.0
    %738 = vmatpush1.msra.mxu0 0.0
    %739 = vmatprep.subr.mxu0 0.0
    %740 = vmatpush1.msra.mxu0 0.0
    %741 = vmatprep.subr.mxu0 0.0
    %742 = vmatpush1.msra.mxu0 0.0
    %743 = vmatprep.subr.mxu0 0.0
    %744 = vmatpush1.msra.mxu0 0.0
    %745 = vmatprep.subr.mxu0 0.0
    %746 = vmatpush1.msra.mxu0 0.0
    %747 = vmatprep.subr.mxu0 0.0
    %748 = vmatpush1.msra.mxu0 0.0
    %749 = vmatprep.subr.mxu0 0.0
    %750 = vmatpush1.msra.mxu0 0.0
    %751 = vmatprep.subr.mxu0 0.0
    %752 = vmatpush1.msra.mxu0 0.0
    %753 = vmatprep.subr.mxu0 0.0
    %754 = vmatpush1.msra.mxu0 0.0
    %755 = vmatprep.subr.mxu0 0.0
    %756 = vmatpush1.msra.mxu0 0.0
    %757 = vmatprep.subr.mxu0 0.0
    %758 = vmatpush1.msra.mxu0 0.0
    %759 = vmatprep.subr.mxu0 0.0
    %760 = vmatpush1.msra.mxu0 0.0
    %761 = vmatprep.subr.mxu0 0.0
    %762 = vmatpush1.msra.mxu0 0.0
    %763 = vmatprep.subr.mxu0 0.0
    %764 = vmatpush1.msra.mxu0 0.0
    %765 = vmatprep.subr.mxu0 0.0
    %766 = vmatpush1.msra.mxu0 0.0
    %767 = vmatprep.mubr.f32.mxu0 0.0
    %768 = vmatmul.mubr.f32.gmra.mrb[0].mxu0 %v692
    %v769 = vpop.f32.mrb[0].mxu0
    %v770 = vadd.f32 0.0, %v769
    %v771 = vpop.f32.mrb[0].mxu0
    %772 = vmatprep.mubr.f32.mxu0 0.0
    %773 = vmatmul.mubr.f32.gmra.mrb[0].mxu0 %v695
    %v774 = vpop.f32.mrb[0].mxu0
    %v775 = vadd.f32 0.0, %v774
    %v776 = vpop.f32.mrb[0].mxu0
    %777 = vmatprep.mubr.f32.mxu0 0.0
    %778 = vmatmul.mubr.f32.gmra.mrb[0].mxu0 %v698
    %v779 = vpop.f32.mrb[0].mxu0
    %v780 = vadd.f32 0.0, %v779
    %v781 = vpop.f32.mrb[0].mxu0
    %782 = vmatprep.mubr.f32.mxu0 0.0
    %783 = vmatmul.mubr.f32.gmra.mrb[0].mxu0 %v701
    %v784 = vpop.f32.mrb[0].mxu0
    %v785 = vadd.f32 0.0, %v784
    %v786 = vpop.f32.mrb[0].mxu0
    %787 = vdwg.mxu0
    %v788 = vld [vmem:[#allocation4 + $0x8] sm:$0xff]
    %v789 = vld [vmem:[#allocation4 + $0x28] sm:$0xff]
    %790 = vrot.lane.b32.xlu0 %v476, 112
    %v791 = vpop.permute.xlu0 %790
    %792 = vrot.lane.b32.xlu0 %v481, 112
    %v793 = vpop.permute.xlu0 %792
    %794 = vrot.lane.b32.xlu0 %v486, 112
    %v795 = vpop.permute.xlu0 %794
    %796 = vrot.lane.b32.xlu0 %v491, 112
    %v797 = vpop.permute.xlu0 %796
    %798 = vrot.lane.b32.xlu0 %v476, 80
    %v799 = vpop.permute.xlu0 %798
    %800 = vrot.lane.b32.xlu0 %v481, 80
    %v801 = vpop.permute.xlu0 %800
    %802 = vrot.lane.b32.xlu0 %v486, 80
    %v803 = vpop.permute.xlu0 %802
    %804 = vrot.lane.b32.xlu0 %v491, 80
    %v805 = vpop.permute.xlu0 %804
    %v806 = vsel %vm112, %v791, 0
    %v808 = vsel %vm112, %v793, 0
    %v810 = vsel %vm112, %v795, 0
    %v812 = vsel %vm112, %v797, 0
    %v814 = vsel %vm112, %v799, 0
    %v816 = vsel %vm112, %v801, 0
    %v818 = vsel %vm112, %v803, 0
    %v820 = vsel %vm112, %v805, 0
    %822 = vmatprep.subr.mxu0 0.0
    %823 = vmatpush1.xpose.msra.mxu0 %v814
    %824 = vmatprep.subr.mxu0 0.0
    %825 = vmatpush1.xpose.msra.mxu0 %v816
    %826 = vmatprep.subr.mxu0 0.0
    %827 = vmatpush1.xpose.msra.mxu0 %v818
    %828 = vmatprep.subr.mxu0 0.0
    %829 = vmatpush1.xpose.msra.mxu0 %v820
    %830 = vmatprep.subr.mxu0 0.0
    %831 = vmatpush1.xpose.msra.mxu0 0.0
    %832 = vmatprep.subr.mxu0 0.0
    %833 = vmatpush1.xpose.msra.mxu0 0.0
    %834 = vmatprep.subr.mxu0 0.0
    %835 = vmatpush1.xpose.msra.mxu0 0.0
    %836 = vmatprep.subr.mxu0 0.0
    %837 = vmatpush1.xpose.msra.mxu0 0.0
    %838 = vmatprep.subr.mxu0 0.0
    %839 = vmatpush1.xpose.msra.mxu0 0.0
    %840 = vmatprep.subr.mxu0 0.0
    %841 = vmatpush1.xpose.msra.mxu0 0.0
    %842 = vmatprep.subr.mxu0 0.0
    %843 = vmatpush1.xpose.msra.mxu0 0.0
    %844 = vmatprep.subr.mxu0 0.0
    %845 = vmatpush1.xpose.msra.mxu0 0.0
    %846 = vmatprep.subr.mxu0 0.0
    %847 = vmatpush1.xpose.msra.mxu0 0.0
    %848 = vmatprep.subr.mxu0 0.0
    %849 = vmatpush1.xpose.msra.mxu0 0.0
    %850 = vmatprep.subr.mxu0 0.0
    %851 = vmatpush1.xpose.msra.mxu0 0.0
    %852 = vmatprep.subr.mxu0 0.0
    %853 = vmatpush1.xpose.msra.mxu0 0.0
    %854 = vmatprep.subr.mxu0 0.0
    %855 = vmatpush1.xpose.msra.mxu0 0.0
    %856 = vmatprep.subr.mxu0 0.0
    %857 = vmatpush1.xpose.msra.mxu0 0.0
    %858 = vmatprep.subr.mxu0 0.0
    %859 = vmatpush1.xpose.msra.mxu0 0.0
    %860 = vmatprep.subr.mxu0 0.0
    %861 = vmatpush1.xpose.msra.mxu0 0.0
    %862 = vmatprep.subr.mxu0 0.0
    %863 = vmatpush1.xpose.msra.mxu0 0.0
    %864 = vmatprep.subr.mxu0 0.0
    %865 = vmatpush1.xpose.msra.mxu0 0.0
    %866 = vmatprep.subr.mxu0 0.0
    %867 = vmatpush1.xpose.msra.mxu0 0.0
    %868 = vmatprep.subr.mxu0 0.0
    %869 = vmatpush1.xpose.msra.mxu0 0.0
    %870 = vmatprep.subr.mxu0 0.0
    %871 = vmatpush1.xpose.msra.mxu0 0.0
    %872 = vmatprep.subr.mxu0 0.0
    %873 = vmatpush1.xpose.msra.mxu0 0.0
    %874 = vmatprep.subr.mxu0 0.0
    %875 = vmatpush1.xpose.msra.mxu0 0.0
    %876 = vmatprep.subr.mxu0 0.0
    %877 = vmatpush1.xpose.msra.mxu0 0.0
    %878 = vmatprep.subr.mxu0 0.0
    %879 = vmatpush1.xpose.msra.mxu0 0.0
    %880 = vmatprep.subr.mxu0 0.0
    %881 = vmatpush1.xpose.msra.mxu0 0.0
    %882 = vmatprep.subr.mxu0 0.0
    %883 = vmatpush1.xpose.msra.mxu0 0.0
    %884 = vmatprep.subr.mxu0 0.0
    %885 = vmatpush1.xpose.msra.mxu0 0.0
    %886 = vmatprep.mubr.f32.mxu0 0.0
    %887 = vmatmul.mubr.f32.gmra.mrb[0].mxu0 %v806
    %v888 = vpop.f32.mrb[0].mxu0
    %v889 = vadd.f32 0.0, %v888
    %v890 = vpop.f32.mrb[0].mxu0
    %891 = vmatprep.mubr.f32.mxu0 0.0
    %892 = vmatmul.mubr.f32.gmra.mrb[0].mxu0 %v808
    %v893 = vpop.f32.mrb[0].mxu0
    %v894 = vadd.f32 0.0, %v893
    %v895 = vpop.f32.mrb[0].mxu0
    %896 = vmatprep.mubr.f32.mxu0 0.0
    %897 = vmatmul.mubr.f32.gmra.mrb[0].mxu0 %v810
    %v898 = vpop.f32.mrb[0].mxu0
    %v899 = vadd.f32 0.0, %v898
    %v900 = vpop.f32.mrb[0].mxu0
    %901 = vmatprep.mubr.f32.mxu0 0.0
    %902 = vmatmul.mubr.f32.gmra.mrb[0].mxu0 %v812
    %v903 = vpop.f32.mrb[0].mxu0
    %v904 = vadd.f32 0.0, %v903
    %v905 = vpop.f32.mrb[0].mxu0
    %906 = vdwg.mxu0
    %v907 = vmul.f32 %v889, 0.25
    %v908 = vmul.f32 %v894, 0.25
    %v909 = vmul.f32 %v899, 0.25
    %v910 = vmul.f32 %v904, 0.25
    %v911 = vadd.f32 %v907, %v375
    %v912 = vadd.f32 %v908, %v375
    %v913 = vadd.f32 %v909, %v375
    %v914 = vadd.f32 %v910, %v375
    %v915 = vsel %vm244, %v911, -inf
    %916 = vmax.xlane.f32.xlu0 %v915
    %v917 = vpop.xlane.xlu0 %916
    %v918 = vsel %vm244, %v912, -inf
    %919 = vmax.xlane.f32.xlu0 %v918
    %v920 = vpop.xlane.xlu0 %919
    %v921 = vsel %vm244, %v913, -inf
    %922 = vmax.xlane.f32.xlu0 %v921
    %v923 = vpop.xlane.xlu0 %922
    %v924 = vsel %vm244, %v914, -inf
    %925 = vmax.xlane.f32.xlu0 %v924
    %v926 = vpop.xlane.xlu0 %925
    %v927 = vsub.f32 %v911, %v917
    %v928 = vsub.f32 %v912, %v920
    %v929 = vsub.f32 %v913, %v923
    %v930 = vsub.f32 %v914, %v926
    %v931 = vmul.f32 %v927, 1.442695
    %v932 = vpow.pop %v931
    %v933 = vmul.f32 %v928, 1.442695
    %v934 = vpow.pop %v933
    %v935 = vmul.f32 %v929, 1.442695
    %v936 = vpow.pop %v935
    %v937 = vmul.f32 %v930, 1.442695
    %v938 = vpow.pop %v937
    %v939 = vsel %vm244, %v932, 0.0
    %940 = vadd.xlane.f32.xlu0 %v939
    %v941 = vpop.xlane.xlu0 %940
    %v942 = vsel %vm244, %v934, 0.0
    %943 = vadd.xlane.f32.xlu0 %v942
    %v944 = vpop.xlane.xlu0 %943
    %v945 = vsel %vm244, %v936, 0.0
    %946 = vadd.xlane.f32.xlu0 %v945
    %v947 = vpop.xlane.xlu0 %946
    %v948 = vsel %vm244, %v938, 0.0
    %949 = vadd.xlane.f32.xlu0 %v948
    %v950 = vpop.xlane.xlu0 %949
    %v951 = vrcp.pop %v941
    %v952 = vrcp.pop %v944
    %v953 = vrcp.pop %v947
    %v954 = vrcp.pop %v950
    %v955 = vmul.f32 %v932, %v951
    %v956 = vmul.f32 %v934, %v952
    %v957 = vmul.f32 %v936, %v953
    %v958 = vmul.f32 %v938, %v954
    %959 = vrot.lane.b32.xlu0 %v476, 48
    %v960 = vpop.permute.xlu0 %959
    %961 = vrot.lane.b32.xlu0 %v481, 48
    %v962 = vpop.permute.xlu0 %961
    %963 = vrot.lane.b32.xlu0 %v486, 48
    %v964 = vpop.permute.xlu0 %963
    %965 = vrot.lane.b32.xlu0 %v491, 48
    %v966 = vpop.permute.xlu0 %965
    %v972 = vsel %vm244, %v955, 0
    %v975 = vsel %vm244, %v956, 0
    %v978 = vsel %vm244, %v957, 0
    %v981 = vsel %vm244, %v958, 0
    %983 = vmatprep.subr.mxu0 0.0
    %984 = vmatpush1.msra.mxu0 %v960
    %985 = vmatprep.subr.mxu0 0.0
    %986 = vmatpush1.msra.mxu0 %v962
    %987 = vmatprep.subr.mxu0 0.0
    %988 = vmatpush1.msra.mxu0 %v964
    %989 = vmatprep.subr.mxu0 0.0
    %990 = vmatpush1.msra.mxu0 %v966
    %991 = vmatprep.subr.mxu0 0.0
    %992 = vmatpush1.msra.mxu0 0.0
    %993 = vmatprep.subr.mxu0 0.0
    %994 = vmatpush1.msra.mxu0 0.0
    %995 = vmatprep.subr.mxu0 0.0
    %996 = vmatpush1.msra.mxu0 0.0
    %997 = vmatprep.subr.mxu0 0.0
    %998 = vmatpush1.msra.mxu0 0.0
    %999 = vmatprep.subr.mxu0 0.0
    %1000 = vmatpush1.msra.mxu0 0.0
    %1001 = vmatprep.subr.mxu0 0.0
    %1002 = vmatpush1.msra.mxu0 0.0
    %1003 = vmatprep.subr.mxu0 0.0
    %1004 = vmatpush1.msra.mxu0 0.0
    %1005 = vmatprep.subr.mxu0 0.0
    %1006 = vmatpush1.msra.mxu0 0.0
    %1007 = vmatprep.subr.mxu0 0.0
    %1008 = vmatpush1.msra.mxu0 0.0
    %1009 = vmatprep.subr.mxu0 0.0
    %1010 = vmatpush1.msra.mxu0 0.0
    %1011 = vmatprep.subr.mxu0 0.0
    %1012 = vmatpush1.msra.mxu0 0.0
    %1013 = vmatprep.subr.mxu0 0.0
    %1014 = vmatpush1.msra.mxu0 0.0
    %1015 = vmatprep.subr.mxu0 0.0
    %1016 = vmatpush1.msra.mxu0 0.0
    %1017 = vmatprep.subr.mxu0 0.0
    %1018 = vmatpush1.msra.mxu0 0.0
    %1019 = vmatprep.subr.mxu0 0.0
    %1020 = vmatpush1.msra.mxu0 0.0
    %1021 = vmatprep.subr.mxu0 0.0
    %1022 = vmatpush1.msra.mxu0 0.0
    %1023 = vmatprep.subr.mxu0 0.0
    %1024 = vmatpush1.msra.mxu0 0.0
    %1025 = vmatprep.subr.mxu0 0.0
    %1026 = vmatpush1.msra.mxu0 0.0
    %1027 = vmatprep.subr.mxu0 0.0
    %1028 = vmatpush1.msra.mxu0 0.0
    %1029 = vmatprep.subr.mxu0 0.0
    %1030 = vmatpush1.msra.mxu0 0.0
    %1031 = vmatprep.subr.mxu0 0.0
    %1032 = vmatpush1.msra.mxu0 0.0
    %1033 = vmatprep.subr.mxu0 0.0
    %1034 = vmatpush1.msra.mxu0 0.0
    %1035 = vmatprep.subr.mxu0 0.0
    %1036 = vmatpush1.msra.mxu0 0.0
    %1037 = vmatprep.subr.mxu0 0.0
    %1038 = vmatpush1.msra.mxu0 0.0
    %1039 = vmatprep.subr.mxu0 0.0
    %1040 = vmatpush1.msra.mxu0 0.0
    %1041 = vmatprep.subr.mxu0 0.0
    %1042 = vmatpush1.msra.mxu0 0.0
    %1043 = vmatprep.subr.mxu0 0.0
    %1044 = vmatpush1.msra.mxu0 0.0
    %1045 = vmatprep.subr.mxu0 0.0
    %1046 = vmatpush1.msra.mxu0 0.0
    %1047 = vmatprep.mubr.f32.mxu0 0.0
    %1048 = vmatmul.mubr.f32.gmra.mrb[0].mxu0 %v972
    %v1049 = vpop.f32.mrb[0].mxu0
    %v1050 = vadd.f32 0.0, %v1049
    %v1051 = vpop.f32.mrb[0].mxu0
    %1052 = vmatprep.mubr.f32.mxu0 0.0
    %1053 = vmatmul.mubr.f32.gmra.mrb[0].mxu0 %v975
    %v1054 = vpop.f32.mrb[0].mxu0
    %v1055 = vadd.f32 0.0, %v1054
    %v1056 = vpop.f32.mrb[0].mxu0
    %1057 = vmatprep.mubr.f32.mxu0 0.0
    %1058 = vmatmul.mubr.f32.gmra.mrb[0].mxu0 %v978
    %v1059 = vpop.f32.mrb[0].mxu0
    %v1060 = vadd.f32 0.0, %v1059
    %v1061 = vpop.f32.mrb[0].mxu0
    %1062 = vmatprep.mubr.f32.mxu0 0.0
    %1063 = vmatmul.mubr.f32.gmra.mrb[0].mxu0 %v981
    %v1064 = vpop.f32.mrb[0].mxu0
    %v1065 = vadd.f32 0.0, %v1064
    %v1066 = vpop.f32.mrb[0].mxu0
    %1067 = vdwg.mxu0
    %v1068 = vld [vmem:[#allocation4 + $0x48] sm:$0xff]
    %v1069 = vld [vmem:[#allocation4 + $0x68] sm:$0xff]
    %v1071 = vsel %vm112, %v1050, 0
    %v1074 = vsel %vm112, %v1055, 0
    %v1077 = vsel %vm112, %v1060, 0
    %v1080 = vsel %vm112, %v1065, 0
    %1082 = vmatprep.subr.mxu0 0.0
    %1083 = vmatpush1.msra.mxu0 %v1068
    %1084 = vmatprep.subr.mxu0 0.0
    %1085 = vmatpush1.msra.mxu0 %v1069
    %1086 = vmatprep.subr.mxu0 0.0
    %1087 = vmatpush1.msra.mxu0 0.0
    %1088 = vmatprep.subr.mxu0 0.0
    %1089 = vmatpush1.msra.mxu0 0.0
    %1090 = vmatprep.subr.mxu0 0.0
    %1091 = vmatpush1.msra.mxu0 0.0
    %1092 = vmatprep.subr.mxu0 0.0
    %1093 = vmatpush1.msra.mxu0 0.0
    %1094 = vmatprep.subr.mxu0 0.0
    %1095 = vmatpush1.msra.mxu0 0.0
    %1096 = vmatprep.subr.mxu0 0.0
    %1097 = vmatpush1.msra.mxu0 0.0
    %1098 = vmatprep.subr.mxu0 0.0
    %1099 = vmatpush1.msra.mxu0 0.0
    %1100 = vmatprep.subr.mxu0 0.0
    %1101 = vmatpush1.msra.mxu0 0.0
    %1102 = vmatprep.subr.mxu0 0.0
    %1103 = vmatpush1.msra.mxu0 0.0
    %1104 = vmatprep.subr.mxu0 0.0
    %1105 = vmatpush1.msra.mxu0 0.0
    %1106 = vmatprep.subr.mxu0 0.0
    %1107 = vmatpush1.msra.mxu0 0.0
    %1108 = vmatprep.subr.mxu0 0.0
    %1109 = vmatpush1.msra.mxu0 0.0
    %1110 = vmatprep.subr.mxu0 0.0
    %1111 = vmatpush1.msra.mxu0 0.0
    %1112 = vmatprep.subr.mxu0 0.0
    %1113 = vmatpush1.msra.mxu0 0.0
    %1114 = vmatprep.subr.mxu0 0.0
    %1115 = vmatpush1.msra.mxu0 0.0
    %1116 = vmatprep.subr.mxu0 0.0
    %1117 = vmatpush1.msra.mxu0 0.0
    %1118 = vmatprep.subr.mxu0 0.0
    %1119 = vmatpush1.msra.mxu0 0.0
    %1120 = vmatprep.subr.mxu0 0.0
    %1121 = vmatpush1.msra.mxu0 0.0
    %1122 = vmatprep.subr.mxu0 0.0
    %1123 = vmatpush1.msra.mxu0 0.0
    %1124 = vmatprep.subr.mxu0 0.0
    %1125 = vmatpush1.msra.mxu0 0.0
    %1126 = vmatprep.subr.mxu0 0.0
    %1127 = vmatpush1.msra.mxu0 0.0
    %1128 = vmatprep.subr.mxu0 0.0
    %1129 = vmatpush1.msra.mxu0 0.0
    %1130 = vmatprep.subr.mxu0 0.0
    %1131 = vmatpush1.msra.mxu0 0.0
    %1132 = vmatprep.subr.mxu0 0.0
    %1133 = vmatpush1.msra.mxu0 0.0
    %1134 = vmatprep.subr.mxu0 0.0
    %1135 = vmatpush1.msra.mxu0 0.0
    %1136 = vmatprep.subr.mxu0 0.0
    %1137 = vmatpush1.msra.mxu0 0.0
    %1138 = vmatprep.subr.mxu0 0.0
    %1139 = vmatpush1.msra.mxu0 0.0
    %1140 = vmatprep.subr.mxu0 0.0
    %1141 = vmatpush1.msra.mxu0 0.0
    %1142 = vmatprep.subr.mxu0 0.0
    %1143 = vmatpush1.msra.mxu0 0.0
    %1144 = vmatprep.subr.mxu0 0.0
    %1145 = vmatpush1.msra.mxu0 0.0
    %1146 = vmatprep.mubr.f32.mxu0 0.0
    %1147 = vmatmul.mubr.f32.gmra.mrb[0].mxu0 %v1071
    %v1148 = vpop.f32.mrb[0].mxu0
    %v1149 = vadd.f32 0.0, %v1148
    %v1150 = vpop.f32.mrb[0].mxu0
    %1151 = vmatprep.mubr.f32.mxu0 0.0
    %1152 = vmatmul.mubr.f32.gmra.mrb[0].mxu0 %v1074
    %v1153 = vpop.f32.mrb[0].mxu0
    %v1154 = vadd.f32 0.0, %v1153
    %v1155 = vpop.f32.mrb[0].mxu0
    %1156 = vmatprep.mubr.f32.mxu0 0.0
    %1157 = vmatmul.mubr.f32.gmra.mrb[0].mxu0 %v1077
    %v1158 = vpop.f32.mrb[0].mxu0
    %v1159 = vadd.f32 0.0, %v1158
    %v1160 = vpop.f32.mrb[0].mxu0
    %1161 = vmatprep.mubr.f32.mxu0 0.0
    %1162 = vmatmul.mubr.f32.gmra.mrb[0].mxu0 %v1080
    %v1163 = vpop.f32.mrb[0].mxu0
    %v1164 = vadd.f32 0.0, %v1163
    %v1165 = vpop.f32.mrb[0].mxu0
    %1166 = vdwg.mxu0
    %v1168 = vsel %vm112, %v770, 0
    %v1171 = vsel %vm112, %v775, 0
    %v1174 = vsel %vm112, %v780, 0
    %v1177 = vsel %vm112, %v785, 0
    %1179 = vmatprep.subr.mxu0 0.0
    %1180 = vmatpush1.msra.mxu0 %v788
    %1181 = vmatprep.subr.mxu0 0.0
    %1182 = vmatpush1.msra.mxu0 %v789
    %1183 = vmatprep.subr.mxu0 0.0
    %1184 = vmatpush1.msra.mxu0 0.0
    %1185 = vmatprep.subr.mxu0 0.0
    %1186 = vmatpush1.msra.mxu0 0.0
    %1187 = vmatprep.subr.mxu0 0.0
    %1188 = vmatpush1.msra.mxu0 0.0
    %1189 = vmatprep.subr.mxu0 0.0
    %1190 = vmatpush1.msra.mxu0 0.0
    %1191 = vmatprep.subr.mxu0 0.0
    %1192 = vmatpush1.msra.mxu0 0.0
    %1193 = vmatprep.subr.mxu0 0.0
    %1194 = vmatpush1.msra.mxu0 0.0
    %1195 = vmatprep.subr.mxu0 0.0
    %1196 = vmatpush1.msra.mxu0 0.0
    %1197 = vmatprep.subr.mxu0 0.0
    %1198 = vmatpush1.msra.mxu0 0.0
    %1199 = vmatprep.subr.mxu0 0.0
    %1200 = vmatpush1.msra.mxu0 0.0
    %1201 = vmatprep.subr.mxu0 0.0
    %1202 = vmatpush1.msra.mxu0 0.0
    %1203 = vmatprep.subr.mxu0 0.0
    %1204 = vmatpush1.msra.mxu0 0.0
    %1205 = vmatprep.subr.mxu0 0.0
    %1206 = vmatpush1.msra.mxu0 0.0
    %1207 = vmatprep.subr.mxu0 0.0
    %1208 = vmatpush1.msra.mxu0 0.0
    %1209 = vmatprep.subr.mxu0 0.0
    %1210 = vmatpush1.msra.mxu0 0.0
    %1211 = vmatprep.subr.mxu0 0.0
    %1212 = vmatpush1.msra.mxu0 0.0
    %1213 = vmatprep.subr.mxu0 0.0
    %1214 = vmatpush1.msra.mxu0 0.0
    %1215 = vmatprep.subr.mxu0 0.0
    %1216 = vmatpush1.msra.mxu0 0.0
    %1217 = vmatprep.subr.mxu0 0.0
    %1218 = vmatpush1.msra.mxu0 0.0
    %1219 = vmatprep.subr.mxu0 0.0
    %1220 = vmatpush1.msra.mxu0 0.0
    %1221 = vmatprep.subr.mxu0 0.0
    %1222 = vmatpush1.msra.mxu0 0.0
    %1223 = vmatprep.subr.mxu0 0.0
    %1224 = vmatpush1.msra.mxu0 0.0
    %1225 = vmatprep.subr.mxu0 0.0
    %1226 = vmatpush1.msra.mxu0 0.0
    %1227 = vmatprep.subr.mxu0 0.0
    %1228 = vmatpush1.msra.mxu0 0.0
    %1229 = vmatprep.subr.mxu0 0.0
    %1230 = vmatpush1.msra.mxu0 0.0
    %1231 = vmatprep.subr.mxu0 0.0
    %1232 = vmatpush1.msra.mxu0 0.0
    %1233 = vmatprep.subr.mxu0 0.0
    %1234 = vmatpush1.msra.mxu0 0.0
    %1235 = vmatprep.subr.mxu0 0.0
    %1236 = vmatpush1.msra.mxu0 0.0
    %1237 = vmatprep.subr.mxu0 0.0
    %1238 = vmatpush1.msra.mxu0 0.0
    %1239 = vmatprep.subr.mxu0 0.0
    %1240 = vmatpush1.msra.mxu0 0.0
    %1241 = vmatprep.subr.mxu0 0.0
    %1242 = vmatpush1.msra.mxu0 0.0
    %1243 = vmatprep.mubr.f32.mxu0 0.0
    %1244 = vmatmul.mubr.f32.gmra.mrb[0].mxu0 %v1168
    %v1245 = vpop.f32.mrb[0].mxu0
    %v1246 = vadd.f32 %v1149, %v1245
    %v1247 = vpop.f32.mrb[0].mxu0
    %1248 = vmatprep.mubr.f32.mxu0 0.0
    %1249 = vmatmul.mubr.f32.gmra.mrb[0].mxu0 %v1171
    %v1250 = vpop.f32.mrb[0].mxu0
    %v1251 = vadd.f32 %v1154, %v1250
    %v1252 = vpop.f32.mrb[0].mxu0
    %1253 = vmatprep.mubr.f32.mxu0 0.0
    %1254 = vmatmul.mubr.f32.gmra.mrb[0].mxu0 %v1174
    %v1255 = vpop.f32.mrb[0].mxu0
    %v1256 = vadd.f32 %v1159, %v1255
    %v1257 = vpop.f32.mrb[0].mxu0
    %1258 = vmatprep.mubr.f32.mxu0 0.0
    %1259 = vmatmul.mubr.f32.gmra.mrb[0].mxu0 %v1177
    %v1260 = vpop.f32.mrb[0].mxu0
    %v1261 = vadd.f32 %v1164, %v1260
    %v1262 = vpop.f32.mrb[0].mxu0
    %1263 = vdwg.mxu0
    %1268 = vrot.lane.b32.xlu0 %v496, 96
    %v1269 = vpop.permute.xlu0 %1268
    %1270 = vrot.lane.b32.xlu0 %v501, 96
    %v1271 = vpop.permute.xlu0 %1270
    %1272 = vrot.lane.b32.xlu0 %v506, 96
    %v1273 = vpop.permute.xlu0 %1272
    %1274 = vrot.lane.b32.xlu0 %v511, 96
    %v1275 = vpop.permute.xlu0 %1274
    %v1276 = vsel %vm112, %v496, 0
    %v1278 = vsel %vm112, %v501, 0
    %v1280 = vsel %vm112, %v506, 0
    %v1282 = vsel %vm112, %v511, 0
    %v1284 = vsel %vm112, %v1269, 0
    %v1286 = vsel %vm112, %v1271, 0
    %v1288 = vsel %vm112, %v1273, 0
    %v1290 = vsel %vm112, %v1275, 0
    %1292 = vmatprep.subr.mxu0 0.0
    %1293 = vmatpush1.xpose.msra.mxu0 %v1284
    %1294 = vmatprep.subr.mxu0 0.0
    %1295 = vmatpush1.xpose.msra.mxu0 %v1286
    %1296 = vmatprep.subr.mxu0 0.0
    %1297 = vmatpush1.xpose.msra.mxu0 %v1288
    %1298 = vmatprep.subr.mxu0 0.0
    %1299 = vmatpush1.xpose.msra.mxu0 %v1290
    %1300 = vmatprep.subr.mxu0 0.0
    %1301 = vmatpush1.xpose.msra.mxu0 0.0
    %1302 = vmatprep.subr.mxu0 0.0
    %1303 = vmatpush1.xpose.msra.mxu0 0.0
    %1304 = vmatprep.subr.mxu0 0.0
    %1305 = vmatpush1.xpose.msra.mxu0 0.0
    %1306 = vmatprep.subr.mxu0 0.0
    %1307 = vmatpush1.xpose.msra.mxu0 0.0
    %1308 = vmatprep.subr.mxu0 0.0
    %1309 = vmatpush1.xpose.msra.mxu0 0.0
    %1310 = vmatprep.subr.mxu0 0.0
    %1311 = vmatpush1.xpose.msra.mxu0 0.0
    %1312 = vmatprep.subr.mxu0 0.0
    %1313 = vmatpush1.xpose.msra.mxu0 0.0
    %1314 = vmatprep.subr.mxu0 0.0
    %1315 = vmatpush1.xpose.msra.mxu0 0.0
    %1316 = vmatprep.subr.mxu0 0.0
    %1317 = vmatpush1.xpose.msra.mxu0 0.0
    %1318 = vmatprep.subr.mxu0 0.0
    %1319 = vmatpush1.xpose.msra.mxu0 0.0
    %1320 = vmatprep.subr.mxu0 0.0
    %1321 = vmatpush1.xpose.msra.mxu0 0.0
    %1322 = vmatprep.subr.mxu0 0.0
    %1323 = vmatpush1.xpose.msra.mxu0 0.0
    %1324 = vmatprep.subr.mxu0 0.0
    %1325 = vmatpush1.xpose.msra.mxu0 0.0
    %1326 = vmatprep.subr.mxu0 0.0
    %1327 = vmatpush1.xpose.msra.mxu0 0.0
    %1328 = vmatprep.subr.mxu0 0.0
    %1329 = vmatpush1.xpose.msra.mxu0 0.0
    %1330 = vmatprep.subr.mxu0 0.0
    %1331 = vmatpush1.xpose.msra.mxu0 0.0
    %1332 = vmatprep.subr.mxu0 0.0
    %1333 = vmatpush1.xpose.msra.mxu0 0.0
    %1334 = vmatprep.subr.mxu0 0.0
    %1335 = vmatpush1.xpose.msra.mxu0 0.0
    %1336 = vmatprep.subr.mxu0 0.0
    %1337 = vmatpush1.xpose.msra.mxu0 0.0
    %1338 = vmatprep.subr.mxu0 0.0
    %1339 = vmatpush1.xpose.msra.mxu0 0.0
    %1340 = vmatprep.subr.mxu0 0.0
    %1341 = vmatpush1.xpose.msra.mxu0 0.0
    %1342 = vmatprep.subr.mxu0 0.0
    %1343 = vmatpush1.xpose.msra.mxu0 0.0
    %1344 = vmatprep.subr.mxu0 0.0
    %1345 = vmatpush1.xpose.msra.mxu0 0.0
    %1346 = vmatprep.subr.mxu0 0.0
    %1347 = vmatpush1.xpose.msra.mxu0 0.0
    %1348 = vmatprep.subr.mxu0 0.0
    %1349 = vmatpush1.xpose.msra.mxu0 0.0
    %1350 = vmatprep.subr.mxu0 0.0
    %1351 = vmatpush1.xpose.msra.mxu0 0.0
    %1352 = vmatprep.subr.mxu0 0.0
    %1353 = vmatpush1.xpose.msra.mxu0 0.0
    %1354 = vmatprep.subr.mxu0 0.0
    %1355 = vmatpush1.xpose.msra.mxu0 0.0
    %1356 = vmatprep.mubr.f32.mxu0 0.0
    %1357 = vmatmul.mubr.f32.gmra.mrb[0].mxu0 %v1276
    %v1358 = vpop.f32.mrb[0].mxu0
    %v1359 = vadd.f32 0.0, %v1358
    %v1360 = vpop.f32.mrb[0].mxu0
    %1361 = vmatprep.mubr.f32.mxu0 0.0
    %1362 = vmatmul.mubr.f32.gmra.mrb[0].mxu0 %v1278
    %v1363 = vpop.f32.mrb[0].mxu0
    %v1364 = vadd.f32 0.0, %v1363
    %v1365 = vpop.f32.mrb[0].mxu0
    %1366 = vmatprep.mubr.f32.mxu0 0.0
    %1367 = vmatmul.mubr.f32.gmra.mrb[0].mxu0 %v1280
    %v1368 = vpop.f32.mrb[0].mxu0
    %v1369 = vadd.f32 0.0, %v1368
    %v1370 = vpop.f32.mrb[0].mxu0
    %1371 = vmatprep.mubr.f32.mxu0 0.0
    %1372 = vmatmul.mubr.f32.gmra.mrb[0].mxu0 %v1282
    %v1373 = vpop.f32.mrb[0].mxu0
    %v1374 = vadd.f32 0.0, %v1373
    %v1375 = vpop.f32.mrb[0].mxu0
    %1376 = vdwg.mxu0
    %v1377 = vmul.f32 %v1359, 0.25
    %v1378 = vmul.f32 %v1364, 0.25
    %v1379 = vmul.f32 %v1369, 0.25
    %v1380 = vmul.f32 %v1374, 0.25
    %v1381 = vadd.f32 %v1377, %v375
    %v1382 = vadd.f32 %v1378, %v375
    %v1383 = vadd.f32 %v1379, %v375
    %v1384 = vadd.f32 %v1380, %v375
    %v1385 = vsel %vm244, %v1381, -inf
    %1386 = vmax.xlane.f32.xlu0 %v1385
    %v1387 = vpop.xlane.xlu0 %1386
    %v1388 = vsel %vm244, %v1382, -inf
    %1389 = vmax.xlane.f32.xlu0 %v1388
    %v1390 = vpop.xlane.xlu0 %1389
    %v1391 = vsel %vm244, %v1383, -inf
    %1392 = vmax.xlane.f32.xlu0 %v1391
    %v1393 = vpop.xlane.xlu0 %1392
    %v1394 = vsel %vm244, %v1384, -inf
    %1395 = vmax.xlane.f32.xlu0 %v1394
    %v1396 = vpop.xlane.xlu0 %1395
    %v1397 = vsub.f32 %v1381, %v1387
    %v1398 = vsub.f32 %v1382, %v1390
    %v1399 = vsub.f32 %v1383, %v1393
    %v1400 = vsub.f32 %v1384, %v1396
    %v1401 = vmul.f32 %v1397, 1.442695
    %v1402 = vpow.pop %v1401
    %v1403 = vmul.f32 %v1398, 1.442695
    %v1404 = vpow.pop %v1403
    %v1405 = vmul.f32 %v1399, 1.442695
    %v1406 = vpow.pop %v1405
    %v1407 = vmul.f32 %v1400, 1.442695
    %v1408 = vpow.pop %v1407
    %v1409 = vsel %vm244, %v1402, 0.0
    %1410 = vadd.xlane.f32.xlu0 %v1409
    %v1411 = vpop.xlane.xlu0 %1410
    %v1412 = vsel %vm244, %v1404, 0.0
    %1413 = vadd.xlane.f32.xlu0 %v1412
    %v1414 = vpop.xlane.xlu0 %1413
    %v1415 = vsel %vm244, %v1406, 0.0
    %1416 = vadd.xlane.f32.xlu0 %v1415
    %v1417 = vpop.xlane.xlu0 %1416
    %v1418 = vsel %vm244, %v1408, 0.0
    %1419 = vadd.xlane.f32.xlu0 %v1418
    %v1420 = vpop.xlane.xlu0 %1419
    %v1421 = vrcp.pop %v1411
    %v1422 = vrcp.pop %v1414
    %v1423 = vrcp.pop %v1417
    %v1424 = vrcp.pop %v1420
    %v1425 = vmul.f32 %v1402, %v1421
    %v1426 = vmul.f32 %v1404, %v1422
    %v1427 = vmul.f32 %v1406, %v1423
    %v1428 = vmul.f32 %v1408, %v1424
    %1429 = vrot.lane.b32.xlu0 %v496, 64
    %v1430 = vpop.permute.xlu0 %1429
    %1431 = vrot.lane.b32.xlu0 %v501, 64
    %v1432 = vpop.permute.xlu0 %1431
    %1433 = vrot.lane.b32.xlu0 %v506, 64
    %v1434 = vpop.permute.xlu0 %1433
    %1435 = vrot.lane.b32.xlu0 %v511, 64
    %v1436 = vpop.permute.xlu0 %1435
    %v1442 = vsel %vm244, %v1425, 0
    %v1445 = vsel %vm244, %v1426, 0
    %v1448 = vsel %vm244, %v1427, 0
    %v1451 = vsel %vm244, %v1428, 0
    %1453 = vmatprep.subr.mxu0 0.0
    %1454 = vmatpush1.msra.mxu0 %v1430
    %1455 = vmatprep.subr.mxu0 0.0
    %1456 = vmatpush1.msra.mxu0 %v1432
    %1457 = vmatprep.subr.mxu0 0.0
    %1458 = vmatpush1.msra.mxu0 %v1434
    %1459 = vmatprep.subr.mxu0 0.0
    %1460 = vmatpush1.msra.mxu0 %v1436
    %1461 = vmatprep.subr.mxu0 0.0
    %1462 = vmatpush1.msra.mxu0 0.0
    %1463 = vmatprep.subr.mxu0 0.0
    %1464 = vmatpush1.msra.mxu0 0.0
    %1465 = vmatprep.subr.mxu0 0.0
    %1466 = vmatpush1.msra.mxu0 0.0
    %1467 = vmatprep.subr.mxu0 0.0
    %1468 = vmatpush1.msra.mxu0 0.0
    %1469 = vmatprep.subr.mxu0 0.0
    %1470 = vmatpush1.msra.mxu0 0.0
    %1471 = vmatprep.subr.mxu0 0.0
    %1472 = vmatpush1.msra.mxu0 0.0
    %1473 = vmatprep.subr.mxu0 0.0
    %1474 = vmatpush1.msra.mxu0 0.0
    %1475 = vmatprep.subr.mxu0 0.0
    %1476 = vmatpush1.msra.mxu0 0.0
    %1477 = vmatprep.subr.mxu0 0.0
    %1478 = vmatpush1.msra.mxu0 0.0
    %1479 = vmatprep.subr.mxu0 0.0
    %1480 = vmatpush1.msra.mxu0 0.0
    %1481 = vmatprep.subr.mxu0 0.0
    %1482 = vmatpush1.msra.mxu0 0.0
    %1483 = vmatprep.subr.mxu0 0.0
    %1484 = vmatpush1.msra.mxu0 0.0
    %1485 = vmatprep.subr.mxu0 0.0
    %1486 = vmatpush1.msra.mxu0 0.0
    %1487 = vmatprep.subr.mxu0 0.0
    %1488 = vmatpush1.msra.mxu0 0.0
    %1489 = vmatprep.subr.mxu0 0.0
    %1490 = vmatpush1.msra.mxu0 0.0
    %1491 = vmatprep.subr.mxu0 0.0
    %1492 = vmatpush1.msra.mxu0 0.0
    %1493 = vmatprep.subr.mxu0 0.0
    %1494 = vmatpush1.msra.mxu0 0.0
    %1495 = vmatprep.subr.mxu0 0.0
    %1496 = vmatpush1.msra.mxu0 0.0
    %1497 = vmatprep.subr.mxu0 0.0
    %1498 = vmatpush1.msra.mxu0 0.0
    %1499 = vmatprep.subr.mxu0 0.0
    %1500 = vmatpush1.msra.mxu0 0.0
    %1501 = vmatprep.subr.mxu0 0.0
    %1502 = vmatpush1.msra.mxu0 0.0
    %1503 = vmatprep.subr.mxu0 0.0
    %1504 = vmatpush1.msra.mxu0 0.0
    %1505 = vmatprep.subr.mxu0 0.0
    %1506 = vmatpush1.msra.mxu0 0.0
    %1507 = vmatprep.subr.mxu0 0.0
    %1508 = vmatpush1.msra.mxu0 0.0
    %1509 = vmatprep.subr.mxu0 0.0
    %1510 = vmatpush1.msra.mxu0 0.0
    %1511 = vmatprep.subr.mxu0 0.0
    %1512 = vmatpush1.msra.mxu0 0.0
    %1513 = vmatprep.subr.mxu0 0.0
    %1514 = vmatpush1.msra.mxu0 0.0
    %1515 = vmatprep.subr.mxu0 0.0
    %1516 = vmatpush1.msra.mxu0 0.0
    %1517 = vmatprep.mubr.f32.mxu0 0.0
    %1518 = vmatmul.mubr.f32.gmra.mrb[0].mxu0 %v1442
    %v1519 = vpop.f32.mrb[0].mxu0
    %v1520 = vadd.f32 0.0, %v1519
    %v1521 = vpop.f32.mrb[0].mxu0
    %1522 = vmatprep.mubr.f32.mxu0 0.0
    %1523 = vmatmul.mubr.f32.gmra.mrb[0].mxu0 %v1445
    %v1524 = vpop.f32.mrb[0].mxu0
    %v1525 = vadd.f32 0.0, %v1524
    %v1526 = vpop.f32.mrb[0].mxu0
    %1527 = vmatprep.mubr.f32.mxu0 0.0
    %1528 = vmatmul.mubr.f32.gmra.mrb[0].mxu0 %v1448
    %v1529 = vpop.f32.mrb[0].mxu0
    %v1530 = vadd.f32 0.0, %v1529
    %v1531 = vpop.f32.mrb[0].mxu0
    %1532 = vmatprep.mubr.f32.mxu0 0.0
    %1533 = vmatmul.mubr.f32.gmra.mrb[0].mxu0 %v1451
    %v1534 = vpop.f32.mrb[0].mxu0
    %v1535 = vadd.f32 0.0, %v1534
    %v1536 = vpop.f32.mrb[0].mxu0
    %1537 = vdwg.mxu0
    %1538 = vrot.lane.b32.xlu0 %v496, 112
    %v1539 = vpop.permute.xlu0 %1538
    %1540 = vrot.lane.b32.xlu0 %v501, 112
    %v1541 = vpop.permute.xlu0 %1540
    %1542 = vrot.lane.b32.xlu0 %v506, 112
    %v1543 = vpop.permute.xlu0 %1542
    %1544 = vrot.lane.b32.xlu0 %v511, 112
    %v1545 = vpop.permute.xlu0 %1544
    %1546 = vrot.lane.b32.xlu0 %v496, 80
    %v1547 = vpop.permute.xlu0 %1546
    %1548 = vrot.lane.b32.xlu0 %v501, 80
    %v1549 = vpop.permute.xlu0 %1548
    %1550 = vrot.lane.b32.xlu0 %v506, 80
    %v1551 = vpop.permute.xlu0 %1550
    %1552 = vrot.lane.b32.xlu0 %v511, 80
    %v1553 = vpop.permute.xlu0 %1552
    %v1554 = vsel %vm112, %v1539, 0
    %v1556 = vsel %vm112, %v1541, 0
    %v1558 = vsel %vm112, %v1543, 0
    %v1560 = vsel %vm112, %v1545, 0
    %v1562 = vsel %vm112, %v1547, 0
    %v1564 = vsel %vm112, %v1549, 0
    %v1566 = vsel %vm112, %v1551, 0
    %v1568 = vsel %vm112, %v1553, 0
    %1570 = vmatprep.subr.mxu0 0.0
    %1571 = vmatpush1.xpose.msra.mxu0 %v1562
    %1572 = vmatprep.subr.mxu0 0.0
    %1573 = vmatpush1.xpose.msra.mxu0 %v1564
    %1574 = vmatprep.subr.mxu0 0.0
    %1575 = vmatpush1.xpose.msra.mxu0 %v1566
    %1576 = vmatprep.subr.mxu0 0.0
    %1577 = vmatpush1.xpose.msra.mxu0 %v1568
    %1578 = vmatprep.subr.mxu0 0.0
    %1579 = vmatpush1.xpose.msra.mxu0 0.0
    %1580 = vmatprep.subr.mxu0 0.0
    %1581 = vmatpush1.xpose.msra.mxu0 0.0
    %1582 = vmatprep.subr.mxu0 0.0
    %1583 = vmatpush1.xpose.msra.mxu0 0.0
    %1584 = vmatprep.subr.mxu0 0.0
    %1585 = vmatpush1.xpose.msra.mxu0 0.0
    %1586 = vmatprep.subr.mxu0 0.0
    %1587 = vmatpush1.xpose.msra.mxu0 0.0
    %1588 = vmatprep.subr.mxu0 0.0
    %1589 = vmatpush1.xpose.msra.mxu0 0.0
    %1590 = vmatprep.subr.mxu0 0.0
    %1591 = vmatpush1.xpose.msra.mxu0 0.0
    %1592 = vmatprep.subr.mxu0 0.0
    %1593 = vmatpush1.xpose.msra.mxu0 0.0
    %1594 = vmatprep.subr.mxu0 0.0
    %1595 = vmatpush1.xpose.msra.mxu0 0.0
    %1596 = vmatprep.subr.mxu0 0.0
    %1597 = vmatpush1.xpose.msra.mxu0 0.0
    %1598 = vmatprep.subr.mxu0 0.0
    %1599 = vmatpush1.xpose.msra.mxu0 0.0
    %1600 = vmatprep.subr.mxu0 0.0
    %1601 = vmatpush1.xpose.msra.mxu0 0.0
    %1602 = vmatprep.subr.mxu0 0.0
    %1603 = vmatpush1.xpose.msra.mxu0 0.0
    %1604 = vmatprep.subr.mxu0 0.0
    %1605 = vmatpush1.xpose.msra.mxu0 0.0
    %1606 = vmatprep.subr.mxu0 0.0
    %1607 = vmatpush1.xpose.msra.mxu0 0.0
    %1608 = vmatprep.subr.mxu0 0.0
    %1609 = vmatpush1.xpose.msra.mxu0 0.0
    %1610 = vmatprep.subr.mxu0 0.0
    %1611 = vmatpush1.xpose.msra.mxu0 0.0
    %1612 = vmatprep.subr.mxu0 0.0
    %1613 = vmatpush1.xpose.msra.mxu0 0.0
    %1614 = vmatprep.subr.mxu0 0.0
    %1615 = vmatpush1.xpose.msra.mxu0 0.0
    %1616 = vmatprep.subr.mxu0 0.0
    %1617 = vmatpush1.xpose.msra.mxu0 0.0
    %1618 = vmatprep.subr.mxu0 0.0
    %1619 = vmatpush1.xpose.msra.mxu0 0.0
    %1620 = vmatprep.subr.mxu0 0.0
    %1621 = vmatpush1.xpose.msra.mxu0 0.0
    %1622 = vmatprep.subr.mxu0 0.0
    %1623 = vmatpush1.xpose.msra.mxu0 0.0
    %1624 = vmatprep.subr.mxu0 0.0
    %1625 = vmatpush1.xpose.msra.mxu0 0.0
    %1626 = vmatprep.subr.mxu0 0.0
    %1627 = vmatpush1.xpose.msra.mxu0 0.0
    %1628 = vmatprep.subr.mxu0 0.0
    %1629 = vmatpush1.xpose.msra.mxu0 0.0
    %1630 = vmatprep.subr.mxu0 0.0
    %1631 = vmatpush1.xpose.msra.mxu0 0.0
    %1632 = vmatprep.subr.mxu0 0.0
    %1633 = vmatpush1.xpose.msra.mxu0 0.0
    %1634 = vmatprep.mubr.f32.mxu0 0.0
    %1635 = vmatmul.mubr.f32.gmra.mrb[0].mxu0 %v1554
    %v1636 = vpop.f32.mrb[0].mxu0
    %v1637 = vadd.f32 0.0, %v1636
    %v1638 = vpop.f32.mrb[0].mxu0
    %1639 = vmatprep.mubr.f32.mxu0 0.0
    %1640 = vmatmul.mubr.f32.gmra.mrb[0].mxu0 %v1556
    %v1641 = vpop.f32.mrb[0].mxu0
    %v1642 = vadd.f32 0.0, %v1641
    %v1643 = vpop.f32.mrb[0].mxu0
    %1644 = vmatprep.mubr.f32.mxu0 0.0
    %1645 = vmatmul.mubr.f32.gmra.mrb[0].mxu0 %v1558
    %v1646 = vpop.f32.mrb[0].mxu0
    %v1647 = vadd.f32 0.0, %v1646
    %v1648 = vpop.f32.mrb[0].mxu0
    %1649 = vmatprep.mubr.f32.mxu0 0.0
    %1650 = vmatmul.mubr.f32.gmra.mrb[0].mxu0 %v1560
    %v1651 = vpop.f32.mrb[0].mxu0
    %v1652 = vadd.f32 0.0, %v1651
    %v1653 = vpop.f32.mrb[0].mxu0
    %1654 = vdwg.mxu0
    %v1655 = vmul.f32 %v1637, 0.25
    %v1656 = vmul.f32 %v1642, 0.25
    %v1657 = vmul.f32 %v1647, 0.25
    %v1658 = vmul.f32 %v1652, 0.25
    %v1659 = vadd.f32 %v1655, %v375
    %v1660 = vadd.f32 %v1656, %v375
    %v1661 = vadd.f32 %v1657, %v375
    %v1662 = vadd.f32 %v1658, %v375
    %v1663 = vsel %vm244, %v1659, -inf
    %1664 = vmax.xlane.f32.xlu0 %v1663
    %v1665 = vpop.xlane.xlu0 %1664
    %v1666 = vsel %vm244, %v1660, -inf
    %1667 = vmax.xlane.f32.xlu0 %v1666
    %v1668 = vpop.xlane.xlu0 %1667
    %v1669 = vsel %vm244, %v1661, -inf
    %1670 = vmax.xlane.f32.xlu0 %v1669
    %v1671 = vpop.xlane.xlu0 %1670
    %v1672 = vsel %vm244, %v1662, -inf
    %1673 = vmax.xlane.f32.xlu0 %v1672
    %v1674 = vpop.xlane.xlu0 %1673
    %v1675 = vsub.f32 %v1659, %v1665
    %v1676 = vsub.f32 %v1660, %v1668
    %v1677 = vsub.f32 %v1661, %v1671
    %v1678 = vsub.f32 %v1662, %v1674
    %v1679 = vmul.f32 %v1675, 1.442695
    %v1680 = vpow.pop %v1679
    %v1681 = vmul.f32 %v1676, 1.442695
    %v1682 = vpow.pop %v1681
    %v1683 = vmul.f32 %v1677, 1.442695
    %v1684 = vpow.pop %v1683
    %v1685 = vmul.f32 %v1678, 1.442695
    %v1686 = vpow.pop %v1685
    %v1687 = vsel %vm244, %v1680, 0.0
    %1688 = vadd.xlane.f32.xlu0 %v1687
    %v1689 = vpop.xlane.xlu0 %1688
    %v1690 = vsel %vm244, %v1682, 0.0
    %1691 = vadd.xlane.f32.xlu0 %v1690
    %v1692 = vpop.xlane.xlu0 %1691
    %v1693 = vsel %vm244, %v1684, 0.0
    %1694 = vadd.xlane.f32.xlu0 %v1693
    %v1695 = vpop.xlane.xlu0 %1694
    %v1696 = vsel %vm244, %v1686, 0.0
    %1697 = vadd.xlane.f32.xlu0 %v1696
    %v1698 = vpop.xlane.xlu0 %1697
    %v1699 = vrcp.pop %v1689
    %v1700 = vrcp.pop %v1692
    %v1701 = vrcp.pop %v1695
    %v1702 = vrcp.pop %v1698
    %v1703 = vmul.f32 %v1680, %v1699
    %v1704 = vmul.f32 %v1682, %v1700
    %v1705 = vmul.f32 %v1684, %v1701
    %v1706 = vmul.f32 %v1686, %v1702
    %1707 = vrot.lane.b32.xlu0 %v496, 48
    %v1708 = vpop.permute.xlu0 %1707
    %1709 = vrot.lane.b32.xlu0 %v501, 48
    %v1710 = vpop.permute.xlu0 %1709
    %1711 = vrot.lane.b32.xlu0 %v506, 48
    %v1712 = vpop.permute.xlu0 %1711
    %1713 = vrot.lane.b32.xlu0 %v511, 48
    %v1714 = vpop.permute.xlu0 %1713
    %v1720 = vsel %vm244, %v1703, 0
    %v1723 = vsel %vm244, %v1704, 0
    %v1726 = vsel %vm244, %v1705, 0
    %v1729 = vsel %vm244, %v1706, 0
    %1731 = vmatprep.subr.mxu0 0.0
    %1732 = vmatpush1.msra.mxu0 %v1708
    %1733 = vmatprep.subr.mxu0 0.0
    %1734 = vmatpush1.msra.mxu0 %v1710
    %1735 = vmatprep.subr.mxu0 0.0
    %1736 = vmatpush1.msra.mxu0 %v1712
    %1737 = vmatprep.subr.mxu0 0.0
    %1738 = vmatpush1.msra.mxu0 %v1714
    %1739 = vmatprep.subr.mxu0 0.0
    %1740 = vmatpush1.msra.mxu0 0.0
    %1741 = vmatprep.subr.mxu0 0.0
    %1742 = vmatpush1.msra.mxu0 0.0
    %1743 = vmatprep.subr.mxu0 0.0
    %1744 = vmatpush1.msra.mxu0 0.0
    %1745 = vmatprep.subr.mxu0 0.0
    %1746 = vmatpush1.msra.mxu0 0.0
    %1747 = vmatprep.subr.mxu0 0.0
    %1748 = vmatpush1.msra.mxu0 0.0
    %1749 = vmatprep.subr.mxu0 0.0
    %1750 = vmatpush1.msra.mxu0 0.0
    %1751 = vmatprep.subr.mxu0 0.0
    %1752 = vmatpush1.msra.mxu0 0.0
    %1753 = vmatprep.subr.mxu0 0.0
    %1754 = vmatpush1.msra.mxu0 0.0
    %1755 = vmatprep.subr.mxu0 0.0
    %1756 = vmatpush1.msra.mxu0 0.0
    %1757 = vmatprep.subr.mxu0 0.0
    %1758 = vmatpush1.msra.mxu0 0.0
    %1759 = vmatprep.subr.mxu0 0.0
    %1760 = vmatpush1.msra.mxu0 0.0
    %1761 = vmatprep.subr.mxu0 0.0
    %1762 = vmatpush1.msra.mxu0 0.0
    %1763 = vmatprep.subr.mxu0 0.0
    %1764 = vmatpush1.msra.mxu0 0.0
    %1765 = vmatprep.subr.mxu0 0.0
    %1766 = vmatpush1.msra.mxu0 0.0
    %1767 = vmatprep.subr.mxu0 0.0
    %1768 = vmatpush1.msra.mxu0 0.0
    %1769 = vmatprep.subr.mxu0 0.0
    %1770 = vmatpush1.msra.mxu0 0.0
    %1771 = vmatprep.subr.mxu0 0.0
    %1772 = vmatpush1.msra.mxu0 0.0
    %1773 = vmatprep.subr.mxu0 0.0
    %1774 = vmatpush1.msra.mxu0 0.0
    %1775 = vmatprep.subr.mxu0 0.0
    %1776 = vmatpush1.msra.mxu0 0.0
    %1777 = vmatprep.subr.mxu0 0.0
    %1778 = vmatpush1.msra.mxu0 0.0
    %1779 = vmatprep.subr.mxu0 0.0
    %1780 = vmatpush1.msra.mxu0 0.0
    %1781 = vmatprep.subr.mxu0 0.0
    %1782 = vmatpush1.msra.mxu0 0.0
    %1783 = vmatprep.subr.mxu0 0.0
    %1784 = vmatpush1.msra.mxu0 0.0
    %1785 = vmatprep.subr.mxu0 0.0
    %1786 = vmatpush1.msra.mxu0 0.0
    %1787 = vmatprep.subr.mxu0 0.0
    %1788 = vmatpush1.msra.mxu0 0.0
    %1789 = vmatprep.subr.mxu0 0.0
    %1790 = vmatpush1.msra.mxu0 0.0
    %1791 = vmatprep.subr.mxu0 0.0
    %1792 = vmatpush1.msra.mxu0 0.0
    %1793 = vmatprep.subr.mxu0 0.0
    %1794 = vmatpush1.msra.mxu0 0.0
    %1795 = vmatprep.mubr.f32.mxu0 0.0
    %1796 = vmatmul.mubr.f32.gmra.mrb[0].mxu0 %v1720
    %v1797 = vpop.f32.mrb[0].mxu0
    %v1798 = vadd.f32 0.0, %v1797
    %v1799 = vpop.f32.mrb[0].mxu0
    %1800 = vmatprep.mubr.f32.mxu0 0.0
    %1801 = vmatmul.mubr.f32.gmra.mrb[0].mxu0 %v1723
    %v1802 = vpop.f32.mrb[0].mxu0
    %v1803 = vadd.f32 0.0, %v1802
    %v1804 = vpop.f32.mrb[0].mxu0
    %1805 = vmatprep.mubr.f32.mxu0 0.0
    %1806 = vmatmul.mubr.f32.gmra.mrb[0].mxu0 %v1726
    %v1807 = vpop.f32.mrb[0].mxu0
    %v1808 = vadd.f32 0.0, %v1807
    %v1809 = vpop.f32.mrb[0].mxu0
    %1810 = vmatprep.mubr.f32.mxu0 0.0
    %1811 = vmatmul.mubr.f32.gmra.mrb[0].mxu0 %v1729
    %v1812 = vpop.f32.mrb[0].mxu0
    %v1813 = vadd.f32 0.0, %v1812
    %v1814 = vpop.f32.mrb[0].mxu0
    %1815 = vdwg.mxu0
    %v1817 = vsel %vm112, %v1798, 0
    %v1820 = vsel %vm112, %v1803, 0
    %v1823 = vsel %vm112, %v1808, 0
    %v1826 = vsel %vm112, %v1813, 0
    %1828 = vmatprep.subr.mxu0 0.0
    %1829 = vmatpush1.msra.mxu0 %v1068
    %1830 = vmatprep.subr.mxu0 0.0
    %1831 = vmatpush1.msra.mxu0 %v1069
    %1832 = vmatprep.subr.mxu0 0.0
    %1833 = vmatpush1.msra.mxu0 0.0
    %1834 = vmatprep.subr.mxu0 0.0
    %1835 = vmatpush1.msra.mxu0 0.0
    %1836 = vmatprep.subr.mxu0 0.0
    %1837 = vmatpush1.msra.mxu0 0.0
    %1838 = vmatprep.subr.mxu0 0.0
    %1839 = vmatpush1.msra.mxu0 0.0
    %1840 = vmatprep.subr.mxu0 0.0
    %1841 = vmatpush1.msra.mxu0 0.0
    %1842 = vmatprep.subr.mxu0 0.0
    %1843 = vmatpush1.msra.mxu0 0.0
    %1844 = vmatprep.subr.mxu0 0.0
    %1845 = vmatpush1.msra.mxu0 0.0
    %1846 = vmatprep.subr.mxu0 0.0
    %1847 = vmatpush1.msra.mxu0 0.0
    %1848 = vmatprep.subr.mxu0 0.0
    %1849 = vmatpush1.msra.mxu0 0.0
    %1850 = vmatprep.subr.mxu0 0.0
    %1851 = vmatpush1.msra.mxu0 0.0
    %1852 = vmatprep.subr.mxu0 0.0
    %1853 = vmatpush1.msra.mxu0 0.0
    %1854 = vmatprep.subr.mxu0 0.0
    %1855 = vmatpush1.msra.mxu0 0.0
    %1856 = vmatprep.subr.mxu0 0.0
    %1857 = vmatpush1.msra.mxu0 0.0
    %1858 = vmatprep.subr.mxu0 0.0
    %1859 = vmatpush1.msra.mxu0 0.0
    %1860 = vmatprep.subr.mxu0 0.0
    %1861 = vmatpush1.msra.mxu0 0.0
    %1862 = vmatprep.subr.mxu0 0.0
    %1863 = vmatpush1.msra.mxu0 0.0
    %1864 = vmatprep.subr.mxu0 0.0
    %1865 = vmatpush1.msra.mxu0 0.0
    %1866 = vmatprep.subr.mxu0 0.0
    %1867 = vmatpush1.msra.mxu0 0.0
    %1868 = vmatprep.subr.mxu0 0.0
    %1869 = vmatpush1.msra.mxu0 0.0
    %1870 = vmatprep.subr.mxu0 0.0
    %1871 = vmatpush1.msra.mxu0 0.0
    %1872 = vmatprep.subr.mxu0 0.0
    %1873 = vmatpush1.msra.mxu0 0.0
    %1874 = vmatprep.subr.mxu0 0.0
    %1875 = vmatpush1.msra.mxu0 0.0
    %1876 = vmatprep.subr.mxu0 0.0
    %1877 = vmatpush1.msra.mxu0 0.0
    %1878 = vmatprep.subr.mxu0 0.0
    %1879 = vmatpush1.msra.mxu0 0.0
    %1880 = vmatprep.subr.mxu0 0.0
    %1881 = vmatpush1.msra.mxu0 0.0
    %1882 = vmatprep.subr.mxu0 0.0
    %1883 = vmatpush1.msra.mxu0 0.0
    %1884 = vmatprep.subr.mxu0 0.0
    %1885 = vmatpush1.msra.mxu0 0.0
    %1886 = vmatprep.subr.mxu0 0.0
    %1887 = vmatpush1.msra.mxu0 0.0
    %1888 = vmatprep.subr.mxu0 0.0
    %1889 = vmatpush1.msra.mxu0 0.0
    %1890 = vmatprep.subr.mxu0 0.0
    %1891 = vmatpush1.msra.mxu0 0.0
    %1892 = vmatprep.mubr.f32.mxu0 0.0
    %1893 = vmatmul.mubr.f32.gmra.mrb[0].mxu0 %v1817
    %v1894 = vpop.f32.mrb[0].mxu0
    %v1895 = vadd.f32 0.0, %v1894
    %v1896 = vpop.f32.mrb[0].mxu0
    %1897 = vmatprep.mubr.f32.mxu0 0.0
    %1898 = vmatmul.mubr.f32.gmra.mrb[0].mxu0 %v1820
    %v1899 = vpop.f32.mrb[0].mxu0
    %v1900 = vadd.f32 0.0, %v1899
    %v1901 = vpop.f32.mrb[0].mxu0
    %1902 = vmatprep.mubr.f32.mxu0 0.0
    %1903 = vmatmul.mubr.f32.gmra.mrb[0].mxu0 %v1823
    %v1904 = vpop.f32.mrb[0].mxu0
    %v1905 = vadd.f32 0.0, %v1904
    %v1906 = vpop.f32.mrb[0].mxu0
    %1907 = vmatprep.mubr.f32.mxu0 0.0
    %1908 = vmatmul.mubr.f32.gmra.mrb[0].mxu0 %v1826
    %v1909 = vpop.f32.mrb[0].mxu0
    %v1910 = vadd.f32 0.0, %v1909
    %v1911 = vpop.f32.mrb[0].mxu0
    %1912 = vdwg.mxu0
    %v1914 = vsel %vm112, %v1520, 0
    %v1917 = vsel %vm112, %v1525, 0
    %v1920 = vsel %vm112, %v1530, 0
    %v1923 = vsel %vm112, %v1535, 0
    %1925 = vmatprep.subr.mxu0 0.0
    %1926 = vmatpush1.msra.mxu0 %v788
    %1927 = vmatprep.subr.mxu0 0.0
    %1928 = vmatpush1.msra.mxu0 %v789
    %1929 = vmatprep.subr.mxu0 0.0
    %1930 = vmatpush1.msra.mxu0 0.0
    %1931 = vmatprep.subr.mxu0 0.0
    %1932 = vmatpush1.msra.mxu0 0.0
    %1933 = vmatprep.subr.mxu0 0.0
    %1934 = vmatpush1.msra.mxu0 0.0
    %1935 = vmatprep.subr.mxu0 0.0
    %1936 = vmatpush1.msra.mxu0 0.0
    %1937 = vmatprep.subr.mxu0 0.0
    %1938 = vmatpush1.msra.mxu0 0.0
    %1939 = vmatprep.subr.mxu0 0.0
    %1940 = vmatpush1.msra.mxu0 0.0
    %1941 = vmatprep.subr.mxu0 0.0
    %1942 = vmatpush1.msra.mxu0 0.0
    %1943 = vmatprep.subr.mxu0 0.0
    %1944 = vmatpush1.msra.mxu0 0.0
    %1945 = vmatprep.subr.mxu0 0.0
    %1946 = vmatpush1.msra.mxu0 0.0
    %1947 = vmatprep.subr.mxu0 0.0
    %1948 = vmatpush1.msra.mxu0 0.0
    %1949 = vmatprep.subr.mxu0 0.0
    %1950 = vmatpush1.msra.mxu0 0.0
    %1951 = vmatprep.subr.mxu0 0.0
    %1952 = vmatpush1.msra.mxu0 0.0
    %1953 = vmatprep.subr.mxu0 0.0
    %1954 = vmatpush1.msra.mxu0 0.0
    %1955 = vmatprep.subr.mxu0 0.0
    %1956 = vmatpush1.msra.mxu0 0.0
    %1957 = vmatprep.subr.mxu0 0.0
    %1958 = vmatpush1.msra.mxu0 0.0
    %1959 = vmatprep.subr.mxu0 0.0
    %1960 = vmatpush1.msra.mxu0 0.0
    %1961 = vmatprep.subr.mxu0 0.0
    %1962 = vmatpush1.msra.mxu0 0.0
    %1963 = vmatprep.subr.mxu0 0.0
    %1964 = vmatpush1.msra.mxu0 0.0
    %1965 = vmatprep.subr.mxu0 0.0
    %1966 = vmatpush1.msra.mxu0 0.0
    %1967 = vmatprep.subr.mxu0 0.0
    %1968 = vmatpush1.msra.mxu0 0.0
    %1969 = vmatprep.subr.mxu0 0.0
    %1970 = vmatpush1.msra.mxu0 0.0
    %1971 = vmatprep.subr.mxu0 0.0
    %1972 = vmatpush1.msra.mxu0 0.0
    %1973 = vmatprep.subr.mxu0 0.0
    %1974 = vmatpush1.msra.mxu0 0.0
    %1975 = vmatprep.subr.mxu0 0.0
    %1976 = vmatpush1.msra.mxu0 0.0
    %1977 = vmatprep.subr.mxu0 0.0
    %1978 = vmatpush1.msra.mxu0 0.0
    %1979 = vmatprep.subr.mxu0 0.0
    %1980 = vmatpush1.msra.mxu0 0.0
    %1981 = vmatprep.subr.mxu0 0.0
    %1982 = vmatpush1.msra.mxu0 0.0
    %1983 = vmatprep.subr.mxu0 0.0
    %1984 = vmatpush1.msra.mxu0 0.0
    %1985 = vmatprep.subr.mxu0 0.0
    %1986 = vmatpush1.msra.mxu0 0.0
    %1987 = vmatprep.subr.mxu0 0.0
    %1988 = vmatpush1.msra.mxu0 0.0
    %1989 = vmatprep.mubr.f32.mxu0 0.0
    %1990 = vmatmul.mubr.f32.gmra.mrb[0].mxu0 %v1914
    %v1991 = vpop.f32.mrb[0].mxu0
    %v1992 = vadd.f32 %v1895, %v1991
    %v1993 = vpop.f32.mrb[0].mxu0
    %1994 = vmatprep.mubr.f32.mxu0 0.0
    %1995 = vmatmul.mubr.f32.gmra.mrb[0].mxu0 %v1917
    %v1996 = vpop.f32.mrb[0].mxu0
    %v1997 = vadd.f32 %v1900, %v1996
    %v1998 = vpop.f32.mrb[0].mxu0
    %1999 = vmatprep.mubr.f32.mxu0 0.0
    %2000 = vmatmul.mubr.f32.gmra.mrb[0].mxu0 %v1920
    %v2001 = vpop.f32.mrb[0].mxu0
    %v2002 = vadd.f32 %v1905, %v2001
    %v2003 = vpop.f32.mrb[0].mxu0
    %2004 = vmatprep.mubr.f32.mxu0 0.0
    %2005 = vmatmul.mubr.f32.gmra.mrb[0].mxu0 %v1923
    %v2006 = vpop.f32.mrb[0].mxu0
    %v2007 = vadd.f32 %v1910, %v2006
    %v2008 = vpop.f32.mrb[0].mxu0
    %2009 = vdwg.mxu0
    %v2010 = vld [vmem:[%s3 + $0x1] sm:$0x1]
    %v2011 = vlaneseq
    %v2012 = vshrl.u32 %v2011, 7
    %v2013 = vsub.s32 0, %v2012
    %v2014 = vrot.slane %v2010, %v2013
    %v2015 = vadd.f32 %v1246, %v2014
    %v2016 = vadd.f32 %v1251, %v2014
    %v2017 = vadd.f32 %v1256, %v2014
    %v2018 = vadd.f32 %v1261, %v2014
    %v2019 = vadd.f32 %v1992, %v2014
    %v2020 = vadd.f32 %v1997, %v2014
    %v2021 = vadd.f32 %v2002, %v2014
    %v2022 = vadd.f32 %v2007, %v2014
    %v2023 = vadd.f32 %v2015, %v366
    %v2024 = vadd.f32 %v2016, %v367
    %v2025 = vadd.f32 %v2017, %v368
    %v2026 = vadd.f32 %v2018, %v369
    %v2027 = vadd.f32 %v2019, %v370
    %v2028 = vadd.f32 %v2020, %v371
    %v2029 = vadd.f32 %v2021, %v372
    %v2030 = vadd.f32 %v2022, %v373
    %v2031 = vld [vmem:[%s3 + $0x2] sm:$0x1]
    %v2032 = vld [vmem:[%s3 + $0x3] sm:$0x1]
    %v2033 = vsel %vm244, %v2023, 0.0
    %2034 = vadd.xlane.f32.xlu0 %v2033
    %v2035 = vpop.xlane.xlu0 %2034
    %v2036 = vsel %vm244, %v2024, 0.0
    %2037 = vadd.xlane.f32.xlu0 %v2036
    %v2038 = vpop.xlane.xlu0 %2037
    %v2039 = vsel %vm244, %v2025, 0.0
    %2040 = vadd.xlane.f32.xlu0 %v2039
    %v2041 = vpop.xlane.xlu0 %2040
    %v2042 = vsel %vm244, %v2026, 0.0
    %2043 = vadd.xlane.f32.xlu0 %v2042
    %v2044 = vpop.xlane.xlu0 %2043
    %v2045 = vsel %vm244, %v2027, 0.0
    %2046 = vadd.xlane.f32.xlu0 %v2045
    %v2047 = vpop.xlane.xlu0 %2046
    %v2048 = vsel %vm244, %v2028, 0.0
    %2049 = vadd.xlane.f32.xlu0 %v2048
    %v2050 = vpop.xlane.xlu0 %2049
    %v2051 = vsel %vm244, %v2029, 0.0
    %2052 = vadd.xlane.f32.xlu0 %v2051
    %v2053 = vpop.xlane.xlu0 %2052
    %v2054 = vsel %vm244, %v2030, 0.0
    %2055 = vadd.xlane.f32.xlu0 %v2054
    %v2056 = vpop.xlane.xlu0 %2055
    %v2057 = vmul.f32 %v2035, %v269
    %v2058 = vmul.f32 %v2038, %v269
    %v2059 = vmul.f32 %v2041, %v269
    %v2060 = vmul.f32 %v2044, %v269
    %v2061 = vmul.f32 %v2047, %v269
    %v2062 = vmul.f32 %v2050, %v269
    %v2063 = vmul.f32 %v2053, %v269
    %v2064 = vmul.f32 %v2056, %v269
    %v2065 = vsub.f32 %v2023, %v2057
    %v2066 = vsub.f32 %v2024, %v2058
    %v2067 = vsub.f32 %v2025, %v2059
    %v2068 = vsub.f32 %v2026, %v2060
    %v2069 = vsub.f32 %v2027, %v2061
    %v2070 = vsub.f32 %v2028, %v2062
    %v2071 = vsub.f32 %v2029, %v2063
    %v2072 = vsub.f32 %v2030, %v2064
    %v2073 = vmul.f32 %v2065, %v2065
    %v2074 = vmul.f32 %v2066, %v2066
    %v2075 = vmul.f32 %v2067, %v2067
    %v2076 = vmul.f32 %v2068, %v2068
    %v2077 = vmul.f32 %v2069, %v2069
    %v2078 = vmul.f32 %v2070, %v2070
    %v2079 = vmul.f32 %v2071, %v2071
    %v2080 = vmul.f32 %v2072, %v2072
    %v2081 = vsel %vm244, %v2073, 0.0
    %2082 = vadd.xlane.f32.xlu0 %v2081
    %v2083 = vpop.xlane.xlu0 %2082
    %v2084 = vsel %vm244, %v2074, 0.0
    %2085 = vadd.xlane.f32.xlu0 %v2084
    %v2086 = vpop.xlane.xlu0 %2085
    %v2087 = vsel %vm244, %v2075, 0.0
    %2088 = vadd.xlane.f32.xlu0 %v2087
    %v2089 = vpop.xlane.xlu0 %2088
    %v2090 = vsel %vm244, %v2076, 0.0
    %2091 = vadd.xlane.f32.xlu0 %v2090
    %v2092 = vpop.xlane.xlu0 %2091
    %v2093 = vsel %vm244, %v2077, 0.0
    %2094 = vadd.xlane.f32.xlu0 %v2093
    %v2095 = vpop.xlane.xlu0 %2094
    %v2096 = vsel %vm244, %v2078, 0.0
    %2097 = vadd.xlane.f32.xlu0 %v2096
    %v2098 = vpop.xlane.xlu0 %2097
    %v2099 = vsel %vm244, %v2079, 0.0
    %2100 = vadd.xlane.f32.xlu0 %v2099
    %v2101 = vpop.xlane.xlu0 %2100
    %v2102 = vsel %vm244, %v2080, 0.0
    %2103 = vadd.xlane.f32.xlu0 %v2102
    %v2104 = vpop.xlane.xlu0 %2103
    %v2105 = vmul.f32 %v2083, %v269
    %v2106 = vmul.f32 %v2086, %v269
    %v2107 = vmul.f32 %v2089, %v269
    %v2108 = vmul.f32 %v2092, %v269
    %v2109 = vmul.f32 %v2095, %v269
    %v2110 = vmul.f32 %v2098, %v269
    %v2111 = vmul.f32 %v2101, %v269
    %v2112 = vmul.f32 %v2104, %v269
    %v2113 = vadd.f32 %v2105, 1e-12
    %v2114 = vadd.f32 %v2106, 1e-12
    %v2115 = vadd.f32 %v2107, 1e-12
    %v2116 = vadd.f32 %v2108, 1e-12
    %v2117 = vadd.f32 %v2109, 1e-12
    %v2118 = vadd.f32 %v2110, 1e-12
    %v2119 = vadd.f32 %v2111, 1e-12
    %v2120 = vadd.f32 %v2112, 1e-12
    %v2121 = vrsqrt.pop %v2113
    %v2122 = vrsqrt.pop %v2114
    %v2123 = vrsqrt.pop %v2115
    %v2124 = vrsqrt.pop %v2116
    %v2125 = vrsqrt.pop %v2117
    %v2126 = vrsqrt.pop %v2118
    %v2127 = vrsqrt.pop %v2119
    %v2128 = vrsqrt.pop %v2120
    %v2129 = vmul.f32 %v2065, %v2121
    %v2130 = vmul.f32 %v2066, %v2122
    %v2131 = vmul.f32 %v2067, %v2123
    %v2132 = vmul.f32 %v2068, %v2124
    %v2133 = vmul.f32 %v2069, %v2125
    %v2134 = vmul.f32 %v2070, %v2126
    %v2135 = vmul.f32 %v2071, %v2127
    %v2136 = vmul.f32 %v2072, %v2128
    %v2137 = vlaneseq
    %v2138 = vshrl.u32 %v2137, 7
    %v2139 = vsub.s32 0, %v2138
    %v2140 = vrot.slane %v2031, %v2139
    %v2141 = vmul.f32 %v2129, %v2140
    %v2142 = vmul.f32 %v2130, %v2140
    %v2143 = vmul.f32 %v2131, %v2140
    %v2144 = vmul.f32 %v2132, %v2140
    %v2145 = vmul.f32 %v2133, %v2140
    %v2146 = vmul.f32 %v2134, %v2140
    %v2147 = vmul.f32 %v2135, %v2140
    %v2148 = vmul.f32 %v2136, %v2140
    %v2149 = vlaneseq
    %v2150 = vshrl.u32 %v2149, 7
    %v2151 = vsub.s32 0, %v2150
    %v2152 = vrot.slane %v2032, %v2151
    %v2153 = vadd.f32 %v2141, %v2152
    %v2154 = vadd.f32 %v2142, %v2152
    %v2155 = vadd.f32 %v2143, %v2152
    %v2156 = vadd.f32 %v2144, %v2152
    %v2157 = vadd.f32 %v2145, %v2152
    %v2158 = vadd.f32 %v2146, %v2152
    %v2159 = vadd.f32 %v2147, %v2152
    %v2160 = vadd.f32 %v2148, %v2152
    %v2161 = vld [vmem:[#allocation4 + $0x10] sm:$0xff]
    %v2162 = vld [vmem:[#allocation4 + $0x30] sm:$0xff]
    %v2163 = vld [vmem:[#allocation4 + $0x50] sm:$0xff]
    %v2164 = vld [vmem:[#allocation4 + $0x70] sm:$0xff]
    %v2165 = vld [vmem:[%s3 + $0x4] sm:$0x1]
    %v2166 = vlaneseq
    %v2167 = vshrl.u32 %v2166, 7
    %v2168 = vsub.s32 0, %v2167
    %v2169 = vrot.slane %v2165, %v2168
    %v2171 = vsel %vm244, %v2153, 0
    %v2174 = vsel %vm244, %v2154, 0
    %v2177 = vsel %vm244, %v2155, 0
    %v2180 = vsel %vm244, %v2156, 0
    %v2183 = vsel %vm244, %v2157, 0
    %v2186 = vsel %vm244, %v2158, 0
    %v2189 = vsel %vm244, %v2159, 0
    %v2192 = vsel %vm244, %v2160, 0
    %2194 = vmatprep.subr.mxu0 0.0
    %2195 = vmatpush1.msra.mxu0 %v2161
    %2196 = vmatprep.subr.mxu0 0.0
    %2197 = vmatpush1.msra.mxu0 %v2162
    %2198 = vmatprep.subr.mxu0 0.0
    %2199 = vmatpush1.msra.mxu0 %v2163
    %2200 = vmatprep.subr.mxu0 0.0
    %2201 = vmatpush1.msra.mxu0 %v2164
    %2202 = vmatprep.subr.mxu0 0.0
    %2203 = vmatpush1.msra.mxu0 0.0
    %2204 = vmatprep.subr.mxu0 0.0
    %2205 = vmatpush1.msra.mxu0 0.0
    %2206 = vmatprep.subr.mxu0 0.0
    %2207 = vmatpush1.msra.mxu0 0.0
    %2208 = vmatprep.subr.mxu0 0.0
    %2209 = vmatpush1.msra.mxu0 0.0
    %2210 = vmatprep.subr.mxu0 0.0
    %2211 = vmatpush1.msra.mxu0 0.0
    %2212 = vmatprep.subr.mxu0 0.0
    %2213 = vmatpush1.msra.mxu0 0.0
    %2214 = vmatprep.subr.mxu0 0.0
    %2215 = vmatpush1.msra.mxu0 0.0
    %2216 = vmatprep.subr.mxu0 0.0
    %2217 = vmatpush1.msra.mxu0 0.0
    %2218 = vmatprep.subr.mxu0 0.0
    %2219 = vmatpush1.msra.mxu0 0.0
    %2220 = vmatprep.subr.mxu0 0.0
    %2221 = vmatpush1.msra.mxu0 0.0
    %2222 = vmatprep.subr.mxu0 0.0
    %2223 = vmatpush1.msra.mxu0 0.0
    %2224 = vmatprep.subr.mxu0 0.0
    %2225 = vmatpush1.msra.mxu0 0.0
    %2226 = vmatprep.subr.mxu0 0.0
    %2227 = vmatpush1.msra.mxu0 0.0
    %2228 = vmatprep.subr.mxu0 0.0
    %2229 = vmatpush1.msra.mxu0 0.0
    %2230 = vmatprep.subr.mxu0 0.0
    %2231 = vmatpush1.msra.mxu0 0.0
    %2232 = vmatprep.subr.mxu0 0.0
    %2233 = vmatpush1.msra.mxu0 0.0
    %2234 = vmatprep.subr.mxu0 0.0
    %2235 = vmatpush1.msra.mxu0 0.0
    %2236 = vmatprep.subr.mxu0 0.0
    %2237 = vmatpush1.msra.mxu0 0.0
    %2238 = vmatprep.subr.mxu0 0.0
    %2239 = vmatpush1.msra.mxu0 0.0
    %2240 = vmatprep.subr.mxu0 0.0
    %2241 = vmatpush1.msra.mxu0 0.0
    %2242 = vmatprep.subr.mxu0 0.0
    %2243 = vmatpush1.msra.mxu0 0.0
    %2244 = vmatprep.subr.mxu0 0.0
    %2245 = vmatpush1.msra.mxu0 0.0
    %2246 = vmatprep.subr.mxu0 0.0
    %2247 = vmatpush1.msra.mxu0 0.0
    %2248 = vmatprep.subr.mxu0 0.0
    %2249 = vmatpush1.msra.mxu0 0.0
    %2250 = vmatprep.subr.mxu0 0.0
    %2251 = vmatpush1.msra.mxu0 0.0
    %2252 = vmatprep.subr.mxu0 0.0
    %2253 = vmatpush1.msra.mxu0 0.0
    %2254 = vmatprep.subr.mxu0 0.0
    %2255 = vmatpush1.msra.mxu0 0.0
    %2256 = vmatprep.subr.mxu0 0.0
    %2257 = vmatpush1.msra.mxu0 0.0
    %2258 = vmatprep.mubr.f32.mxu0 0.0
    %2259 = vmatmul.mubr.f32.gmra.mrb[0].mxu0 %v2171
    %v2260 = vpop.f32.mrb[0].mxu0
    %v2261 = vadd.f32 %v2169, %v2260
    %v2262 = vpop.f32.mrb[0].mxu0
    %2263 = vmatprep.mubr.f32.mxu0 0.0
    %2264 = vmatmul.mubr.f32.gmra.mrb[0].mxu0 %v2174
    %v2265 = vpop.f32.mrb[0].mxu0
    %v2266 = vadd.f32 %v2169, %v2265
    %v2267 = vpop.f32.mrb[0].mxu0
    %2268 = vmatprep.mubr.f32.mxu0 0.0
    %2269 = vmatmul.mubr.f32.gmra.mrb[0].mxu0 %v2177
    %v2270 = vpop.f32.mrb[0].mxu0
    %v2271 = vadd.f32 %v2169, %v2270
    %v2272 = vpop.f32.mrb[0].mxu0
    %2273 = vmatprep.mubr.f32.mxu0 0.0
    %2274 = vmatmul.mubr.f32.gmra.mrb[0].mxu0 %v2180
    %v2275 = vpop.f32.mrb[0].mxu0
    %v2276 = vadd.f32 %v2169, %v2275
    %v2277 = vpop.f32.mrb[0].mxu0
    %2278 = vmatprep.mubr.f32.mxu0 0.0
    %2279 = vmatmul.mubr.f32.gmra.mrb[0].mxu0 %v2183
    %v2280 = vpop.f32.mrb[0].mxu0
    %v2281 = vadd.f32 %v2169, %v2280
    %v2282 = vpop.f32.mrb[0].mxu0
    %2283 = vmatprep.mubr.f32.mxu0 0.0
    %2284 = vmatmul.mubr.f32.gmra.mrb[0].mxu0 %v2186
    %v2285 = vpop.f32.mrb[0].mxu0
    %v2286 = vadd.f32 %v2169, %v2285
    %v2287 = vpop.f32.mrb[0].mxu0
    %2288 = vmatprep.mubr.f32.mxu0 0.0
    %2289 = vmatmul.mubr.f32.gmra.mrb[0].mxu0 %v2189
    %v2290 = vpop.f32.mrb[0].mxu0
    %v2291 = vadd.f32 %v2169, %v2290
    %v2292 = vpop.f32.mrb[0].mxu0
    %2293 = vmatprep.mubr.f32.mxu0 0.0
    %2294 = vmatmul.mubr.f32.gmra.mrb[0].mxu0 %v2192
    %v2295 = vpop.f32.mrb[0].mxu0
    %v2296 = vadd.f32 %v2169, %v2295
    %v2297 = vpop.f32.mrb[0].mxu0
    %2298 = vdwg.mxu0
    %v2299 = vmul.f32 %v2261, 0.5
    %v2300 = vmul.f32 %v2266, 0.5
    %v2301 = vmul.f32 %v2271, 0.5
    %v2302 = vmul.f32 %v2276, 0.5
    %v2303 = vmul.f32 %v2281, 0.5
    %v2304 = vmul.f32 %v2286, 0.5
    %v2305 = vmul.f32 %v2291, 0.5
    %v2306 = vmul.f32 %v2296, 0.5
    %v2307 = vmul.f32 %v2261, 0.044715
    %v2308 = vmul.f32 %v2266, 0.044715
    %v2309 = vmul.f32 %v2271, 0.044715
    %v2310 = vmul.f32 %v2276, 0.044715
    %v2311 = vmul.f32 %v2281, 0.044715
    %v2312 = vmul.f32 %v2286, 0.044715
    %v2313 = vmul.f32 %v2291, 0.044715
    %v2314 = vmul.f32 %v2296, 0.044715
    %v2315 = vmul.f32 %v2307, %v2261
    %v2316 = vmul.f32 %v2308, %v2266
    %v2317 = vmul.f32 %v2309, %v2271
    %v2318 = vmul.f32 %v2310, %v2276
    %v2319 = vmul.f32 %v2311, %v2281
    %v2320 = vmul.f32 %v2312, %v2286
    %v2321 = vmul.f32 %v2313, %v2291
    %v2322 = vmul.f32 %v2314, %v2296
    %v2323 = vmul.f32 %v2315, %v2261
    %v2324 = vmul.f32 %v2316, %v2266
    %v2325 = vmul.f32 %v2317, %v2271
    %v2326 = vmul.f32 %v2318, %v2276
    %v2327 = vmul.f32 %v2319, %v2281
    %v2328 = vmul.f32 %v2320, %v2286
    %v2329 = vmul.f32 %v2321, %v2291
    %v2330 = vmul.f32 %v2322, %v2296
    %v2331 = vadd.f32 %v2261, %v2323
    %v2332 = vadd.f32 %v2266, %v2324
    %v2333 = vadd.f32 %v2271, %v2325
    %v2334 = vadd.f32 %v2276, %v2326
    %v2335 = vadd.f32 %v2281, %v2327
    %v2336 = vadd.f32 %v2286, %v2328
    %v2337 = vadd.f32 %v2291, %v2329
    %v2338 = vadd.f32 %v2296, %v2330
    %v2339 = vmul.f32 %v2331, 0.7978846
    %v2340 = vmul.f32 %v2332, 0.7978846
    %v2341 = vmul.f32 %v2333, 0.7978846
    %v2342 = vmul.f32 %v2334, 0.7978846
    %v2343 = vmul.f32 %v2335, 0.7978846
    %v2344 = vmul.f32 %v2336, 0.7978846
    %v2345 = vmul.f32 %v2337, 0.7978846
    %v2346 = vmul.f32 %v2338, 0.7978846
    %v2347 = vtanh.pop %v2339
    %v2348 = vtanh.pop %v2340
    %v2349 = vtanh.pop %v2341
    %v2350 = vtanh.pop %v2342
    %v2351 = vtanh.pop %v2343
    %v2352 = vtanh.pop %v2344
    %v2353 = vtanh.pop %v2345
    %v2354 = vtanh.pop %v2346
    %v2355 = vadd.f32 %v2347, 1.0
    %v2356 = vadd.f32 %v2348, 1.0
    %v2357 = vadd.f32 %v2349, 1.0
    %v2358 = vadd.f32 %v2350, 1.0
    %v2359 = vadd.f32 %v2351, 1.0
    %v2360 = vadd.f32 %v2352, 1.0
    %v2361 = vadd.f32 %v2353, 1.0
    %v2362 = vadd.f32 %v2354, 1.0
    %v2363 = vmul.f32 %v2299, %v2355
    %v2364 = vmul.f32 %v2300, %v2356
    %v2365 = vmul.f32 %v2301, %v2357
    %v2366 = vmul.f32 %v2302, %v2358
    %v2367 = vmul.f32 %v2303, %v2359
    %v2368 = vmul.f32 %v2304, %v2360
    %v2369 = vmul.f32 %v2305, %v2361
    %v2370 = vmul.f32 %v2306, %v2362
    %v2371 = vld [vmem:[#allocation4 + $0x18] sm:$0xff]
    %v2372 = vld [vmem:[#allocation4 + $0x38] sm:$0xff]
    %v2373 = vld [vmem:[#allocation4 + $0x58] sm:$0xff]
    %v2374 = vld [vmem:[#allocation4 + $0x78] sm:$0xff]
    %v2375 = vld [vmem:[%s3 + $0x5] sm:$0x1]
    %v2376 = vlaneseq
    %v2377 = vshrl.u32 %v2376, 7
    %v2378 = vsub.s32 0, %v2377
    %v2379 = vrot.slane %v2375, %v2378
    %vm2380 = vcmask 523264
    %v2382 = vsel %vm2380, %v2363, 0
    %v2385 = vsel %vm2380, %v2364, 0
    %v2388 = vsel %vm2380, %v2365, 0
    %v2391 = vsel %vm2380, %v2366, 0
    %v2394 = vsel %vm2380, %v2367, 0
    %v2397 = vsel %vm2380, %v2368, 0
    %v2400 = vsel %vm2380, %v2369, 0
    %v2403 = vsel %vm2380, %v2370, 0
    %v2406 = vsel %vm2380, %v2371, 0
    %v2409 = vsel %vm2380, %v2372, 0
    %v2412 = vsel %vm2380, %v2373, 0
    %v2415 = vsel %vm2380, %v2374, 0
    %2417 = vmatprep.subr.mxu0 0.0
    %2418 = vmatpush1.xpose.msra.mxu0 %v2406
    %2419 = vmatprep.subr.mxu0 0.0
    %2420 = vmatpush1.xpose.msra.mxu0 %v2409
    %2421 = vmatprep.subr.mxu0 0.0
    %2422 = vmatpush1.xpose.msra.mxu0 %v2412
    %2423 = vmatprep.subr.mxu0 0.0
    %2424 = vmatpush1.xpose.msra.mxu0 %v2415
    %2425 = vmatprep.subr.mxu0 0.0
    %2426 = vmatpush1.xpose.msra.mxu0 0.0
    %2427 = vmatprep.subr.mxu0 0.0
    %2428 = vmatpush1.xpose.msra.mxu0 0.0
    %2429 = vmatprep.subr.mxu0 0.0
    %2430 = vmatpush1.xpose.msra.mxu0 0.0
    %2431 = vmatprep.subr.mxu0 0.0
    %2432 = vmatpush1.xpose.msra.mxu0 0.0
    %2433 = vmatprep.subr.mxu0 0.0
    %2434 = vmatpush1.xpose.msra.mxu0 0.0
    %2435 = vmatprep.subr.mxu0 0.0
    %2436 = vmatpush1.xpose.msra.mxu0 0.0
    %2437 = vmatprep.subr.mxu0 0.0
    %2438 = vmatpush1.xpose.msra.mxu0 0.0
    %2439 = vmatprep.subr.mxu0 0.0
    %2440 = vmatpush1.xpose.msra.mxu0 0.0
    %2441 = vmatprep.subr.mxu0 0.0
    %2442 = vmatpush1.xpose.msra.mxu0 0.0
    %2443 = vmatprep.subr.mxu0 0.0
    %2444 = vmatpush1.xpose.msra.mxu0 0.0
    %2445 = vmatprep.subr.mxu0 0.0
    %2446 = vmatpush1.xpose.msra.mxu0 0.0
    %2447 = vmatprep.subr.mxu0 0.0
    %2448 = vmatpush1.xpose.msra.mxu0 0.0
    %2449 = vmatprep.subr.mxu0 0.0
    %2450 = vmatpush1.xpose.msra.mxu0 0.0
    %2451 = vmatprep.subr.mxu0 0.0
    %2452 = vmatpush1.xpose.msra.mxu0 0.0
    %2453 = vmatprep.subr.mxu0 0.0
    %2454 = vmatpush1.xpose.msra.mxu0 0.0
    %2455 = vmatprep.subr.mxu0 0.0
    %2456 = vmatpush1.xpose.msra.mxu0 0.0
    %2457 = vmatprep.subr.mxu0 0.0
    %2458 = vmatpush1.xpose.msra.mxu0 0.0
    %2459 = vmatprep.subr.mxu0 0.0
    %2460 = vmatpush1.xpose.msra.mxu0 0.0
    %2461 = vmatprep.subr.mxu0 0.0
    %2462 = vmatpush1.xpose.msra.mxu0 0.0
    %2463 = vmatprep.subr.mxu0 0.0
    %2464 = vmatpush1.xpose.msra.mxu0 0.0
    %2465 = vmatprep.subr.mxu0 0.0
    %2466 = vmatpush1.xpose.msra.mxu0 0.0
    %2467 = vmatprep.subr.mxu0 0.0
    %2468 = vmatpush1.xpose.msra.mxu0 0.0
    %2469 = vmatprep.subr.mxu0 0.0
    %2470 = vmatpush1.xpose.msra.mxu0 0.0
    %2471 = vmatprep.subr.mxu0 0.0
    %2472 = vmatpush1.xpose.msra.mxu0 0.0
    %2473 = vmatprep.subr.mxu0 0.0
    %2474 = vmatpush1.xpose.msra.mxu0 0.0
    %2475 = vmatprep.subr.mxu0 0.0
    %2476 = vmatpush1.xpose.msra.mxu0 0.0
    %2477 = vmatprep.subr.mxu0 0.0
    %2478 = vmatpush1.xpose.msra.mxu0 0.0
    %2479 = vmatprep.subr.mxu0 0.0
    %2480 = vmatpush1.xpose.msra.mxu0 0.0
    %2481 = vmatprep.mubr.f32.mxu0 0.0
    %2482 = vmatmul.mubr.f32.gmra.mrb[0].mxu0 %v2382
    %v2483 = vpop.f32.mrb[0].mxu0
    %v2484 = vadd.f32 %v2379, %v2483
    %v2485 = vpop.f32.mrb[0].mxu0
    %2486 = vmatprep.mubr.f32.mxu0 0.0
    %2487 = vmatmul.mubr.f32.gmra.mrb[0].mxu0 %v2385
    %v2488 = vpop.f32.mrb[0].mxu0
    %v2489 = vadd.f32 %v2379, %v2488
    %v2490 = vpop.f32.mrb[0].mxu0
    %2491 = vmatprep.mubr.f32.mxu0 0.0
    %2492 = vmatmul.mubr.f32.gmra.mrb[0].mxu0 %v2388
    %v2493 = vpop.f32.mrb[0].mxu0
    %v2494 = vadd.f32 %v2379, %v2493
    %v2495 = vpop.f32.mrb[0].mxu0
    %2496 = vmatprep.mubr.f32.mxu0 0.0
    %2497 = vmatmul.mubr.f32.gmra.mrb[0].mxu0 %v2391
    %v2498 = vpop.f32.mrb[0].mxu0
    %v2499 = vadd.f32 %v2379, %v2498
    %v2500 = vpop.f32.mrb[0].mxu0
    %2501 = vmatprep.mubr.f32.mxu0 0.0
    %2502 = vmatmul.mubr.f32.gmra.mrb[0].mxu0 %v2394
    %v2503 = vpop.f32.mrb[0].mxu0
    %v2504 = vadd.f32 %v2379, %v2503
    %v2505 = vpop.f32.mrb[0].mxu0
    %2506 = vmatprep.mubr.f32.mxu0 0.0
    %2507 = vmatmul.mubr.f32.gmra.mrb[0].mxu0 %v2397
    %v2508 = vpop.f32.mrb[0].mxu0
    %v2509 = vadd.f32 %v2379, %v2508
    %v2510 = vpop.f32.mrb[0].mxu0
    %2511 = vmatprep.mubr.f32.mxu0 0.0
    %2512 = vmatmul.mubr.f32.gmra.mrb[0].mxu0 %v2400
    %v2513 = vpop.f32.mrb[0].mxu0
    %v2514 = vadd.f32 %v2379, %v2513
    %v2515 = vpop.f32.mrb[0].mxu0
    %2516 = vmatprep.mubr.f32.mxu0 0.0
    %2517 = vmatmul.mubr.f32.gmra.mrb[0].mxu0 %v2403
    %v2518 = vpop.f32.mrb[0].mxu0
    %v2519 = vadd.f32 %v2379, %v2518
    %v2520 = vpop.f32.mrb[0].mxu0
    %2521 = vdwg.mxu0
    %v2522 = vadd.f32 %v2484, %v2153
    %v2523 = vadd.f32 %v2489, %v2154
    %v2524 = vadd.f32 %v2494, %v2155
    %v2525 = vadd.f32 %v2499, %v2156
    %v2526 = vadd.f32 %v2504, %v2157
    %v2527 = vadd.f32 %v2509, %v2158
    %v2528 = vadd.f32 %v2514, %v2159
    %v2529 = vadd.f32 %v2519, %v2160
    %v2530 = vld [vmem:[%s3 + $0x6] sm:$0x1]
    %v2531 = vld [vmem:[%s3 + $0x7] sm:$0x1]
    %v2532 = vsel %vm244, %v2522, 0.0
    %2533 = vadd.xlane.f32.xlu0 %v2532
    %v2534 = vpop.xlane.xlu0 %2533
    %v2535 = vsel %vm244, %v2523, 0.0
    %2536 = vadd.xlane.f32.xlu0 %v2535
    %v2537 = vpop.xlane.xlu0 %2536
    %v2538 = vsel %vm244, %v2524, 0.0
    %2539 = vadd.xlane.f32.xlu0 %v2538
    %v2540 = vpop.xlane.xlu0 %2539
    %v2541 = vsel %vm244, %v2525, 0.0
    %2542 = vadd.xlane.f32.xlu0 %v2541
    %v2543 = vpop.xlane.xlu0 %2542
    %v2544 = vsel %vm244, %v2526, 0.0
    %2545 = vadd.xlane.f32.xlu0 %v2544
    %v2546 = vpop.xlane.xlu0 %2545
    %v2547 = vsel %vm244, %v2527, 0.0
    %2548 = vadd.xlane.f32.xlu0 %v2547
    %v2549 = vpop.xlane.xlu0 %2548
    %v2550 = vsel %vm244, %v2528, 0.0
    %2551 = vadd.xlane.f32.xlu0 %v2550
    %v2552 = vpop.xlane.xlu0 %2551
    %v2553 = vsel %vm244, %v2529, 0.0
    %2554 = vadd.xlane.f32.xlu0 %v2553
    %v2555 = vpop.xlane.xlu0 %2554
    %v2556 = vmul.f32 %v2534, %v269
    %v2557 = vmul.f32 %v2537, %v269
    %v2558 = vmul.f32 %v2540, %v269
    %v2559 = vmul.f32 %v2543, %v269
    %v2560 = vmul.f32 %v2546, %v269
    %v2561 = vmul.f32 %v2549, %v269
    %v2562 = vmul.f32 %v2552, %v269
    %v2563 = vmul.f32 %v2555, %v269
    %v2564 = vsub.f32 %v2522, %v2556
    %v2565 = vsub.f32 %v2523, %v2557
    %v2566 = vsub.f32 %v2524, %v2558
    %v2567 = vsub.f32 %v2525, %v2559
    %v2568 = vsub.f32 %v2526, %v2560
    %v2569 = vsub.f32 %v2527, %v2561
    %v2570 = vsub.f32 %v2528, %v2562
    %v2571 = vsub.f32 %v2529, %v2563
    %v2572 = vmul.f32 %v2564, %v2564
    %v2573 = vmul.f32 %v2565, %v2565
    %v2574 = vmul.f32 %v2566, %v2566
    %v2575 = vmul.f32 %v2567, %v2567
    %v2576 = vmul.f32 %v2568, %v2568
    %v2577 = vmul.f32 %v2569, %v2569
    %v2578 = vmul.f32 %v2570, %v2570
    %v2579 = vmul.f32 %v2571, %v2571
    %v2580 = vsel %vm244, %v2572, 0.0
    %2581 = vadd.xlane.f32.xlu0 %v2580
    %v2582 = vpop.xlane.xlu0 %2581
    %v2583 = vsel %vm244, %v2573, 0.0
    %2584 = vadd.xlane.f32.xlu0 %v2583
    %v2585 = vpop.xlane.xlu0 %2584
    %v2586 = vsel %vm244, %v2574, 0.0
    %2587 = vadd.xlane.f32.xlu0 %v2586
    %v2588 = vpop.xlane.xlu0 %2587
    %v2589 = vsel %vm244, %v2575, 0.0
    %2590 = vadd.xlane.f32.xlu0 %v2589
    %v2591 = vpop.xlane.xlu0 %2590
    %v2592 = vsel %vm244, %v2576, 0.0
    %2593 = vadd.xlane.f32.xlu0 %v2592
    %v2594 = vpop.xlane.xlu0 %2593
    %v2595 = vsel %vm244, %v2577, 0.0
    %2596 = vadd.xlane.f32.xlu0 %v2595
    %v2597 = vpop.xlane.xlu0 %2596
    %v2598 = vsel %vm244, %v2578, 0.0
    %2599 = vadd.xlane.f32.xlu0 %v2598
    %v2600 = vpop.xlane.xlu0 %2599
    %v2601 = vsel %vm244, %v2579, 0.0
    %2602 = vadd.xlane.f32.xlu0 %v2601
    %v2603 = vpop.xlane.xlu0 %2602
    %v2604 = vmul.f32 %v2582, %v269
    %v2605 = vmul.f32 %v2585, %v269
    %v2606 = vmul.f32 %v2588, %v269
    %v2607 = vmul.f32 %v2591, %v269
    %v2608 = vmul.f32 %v2594, %v269
    %v2609 = vmul.f32 %v2597, %v269
    %v2610 = vmul.f32 %v2600, %v269
    %v2611 = vmul.f32 %v2603, %v269
    %v2612 = vadd.f32 %v2604, 1e-12
    %v2613 = vadd.f32 %v2605, 1e-12
    %v2614 = vadd.f32 %v2606, 1e-12
    %v2615 = vadd.f32 %v2607, 1e-12
    %v2616 = vadd.f32 %v2608, 1e-12
    %v2617 = vadd.f32 %v2609, 1e-12
    %v2618 = vadd.f32 %v2610, 1e-12
    %v2619 = vadd.f32 %v2611, 1e-12
    %v2620 = vrsqrt.pop %v2612
    %v2621 = vrsqrt.pop %v2613
    %v2622 = vrsqrt.pop %v2614
    %v2623 = vrsqrt.pop %v2615
    %v2624 = vrsqrt.pop %v2616
    %v2625 = vrsqrt.pop %v2617
    %v2626 = vrsqrt.pop %v2618
    %v2627 = vrsqrt.pop %v2619
    %v2628 = vmul.f32 %v2564, %v2620
    %v2629 = vmul.f32 %v2565, %v2621
    %v2630 = vmul.f32 %v2566, %v2622
    %v2631 = vmul.f32 %v2567, %v2623
    %v2632 = vmul.f32 %v2568, %v2624
    %v2633 = vmul.f32 %v2569, %v2625
    %v2634 = vmul.f32 %v2570, %v2626
    %v2635 = vmul.f32 %v2571, %v2627
    %v2636 = vlaneseq
    %v2637 = vshrl.u32 %v2636, 7
    %v2638 = vsub.s32 0, %v2637
    %v2639 = vrot.slane %v2530, %v2638
    %v2640 = vmul.f32 %v2628, %v2639
    %v2641 = vmul.f32 %v2629, %v2639
    %v2642 = vmul.f32 %v2630, %v2639
    %v2643 = vmul.f32 %v2631, %v2639
    %v2644 = vmul.f32 %v2632, %v2639
    %v2645 = vmul.f32 %v2633, %v2639
    %v2646 = vmul.f32 %v2634, %v2639
    %v2647 = vmul.f32 %v2635, %v2639
    %v2648 = vlaneseq
    %v2649 = vshrl.u32 %v2648, 7
    %v2650 = vsub.s32 0, %v2649
    %v2651 = vrot.slane %v2531, %v2650
    %v2652 = vadd.f32 %v2640, %v2651
    %v2653 = vadd.f32 %v2641, %v2651
    %v2654 = vadd.f32 %v2642, %v2651
    %v2655 = vadd.f32 %v2643, %v2651
    %v2656 = vadd.f32 %v2644, %v2651
    %v2657 = vadd.f32 %v2645, %v2651
    %v2658 = vadd.f32 %v2646, %v2651
    %v2659 = vadd.f32 %v2647, %v2651
    %s2660 = scalar_lea.vmem [#allocation4], 128
    %v2661 = vld [vmem:[%s2660] sm:$0xff]
    %v2662 = vld [vmem:[%s2660 + $0x20] sm:$0xff]
    %v2663 = vld [vmem:[%s2660 + $0x40] sm:$0xff]
    %v2664 = vld [vmem:[%s2660 + $0x60] sm:$0xff]
    %s2665 = scalar_lea.vmem %s3, 8
    %v2666 = vld [vmem:[%s2665] sm:$0x1]
    %v2667 = vlaneseq
    %v2668 = vshrl.u32 %v2667, 7
    %v2669 = vsub.s32 0, %v2668
    %v2670 = vrot.slane %v2666, %v2669
    %v2672 = vsel %vm244, %v2652, 0
    %v2675 = vsel %vm244, %v2653, 0
    %v2678 = vsel %vm244, %v2654, 0
    %v2681 = vsel %vm244, %v2655, 0
    %v2684 = vsel %vm244, %v2656, 0
    %v2687 = vsel %vm244, %v2657, 0
    %v2690 = vsel %vm244, %v2658, 0
    %v2693 = vsel %vm244, %v2659, 0
    %2695 = vmatprep.subr.mxu0 0.0
    %2696 = vmatpush1.msra.mxu0 %v2661
    %2697 = vmatprep.subr.mxu0 0.0
    %2698 = vmatpush1.msra.mxu0 %v2662
    %2699 = vmatprep.subr.mxu0 0.0
    %2700 = vmatpush1.msra.mxu0 %v2663
    %2701 = vmatprep.subr.mxu0 0.0
    %2702 = vmatpush1.msra.mxu0 %v2664
    %2703 = vmatprep.subr.mxu0 0.0
    %2704 = vmatpush1.msra.mxu0 0.0
    %2705 = vmatprep.subr.mxu0 0.0
    %2706 = vmatpush1.msra.mxu0 0.0
    %2707 = vmatprep.subr.mxu0 0.0
    %2708 = vmatpush1.msra.mxu0 0.0
    %2709 = vmatprep.subr.mxu0 0.0
    %2710 = vmatpush1.msra.mxu0 0.0
    %2711 = vmatprep.subr.mxu0 0.0
    %2712 = vmatpush1.msra.mxu0 0.0
    %2713 = vmatprep.subr.mxu0 0.0
    %2714 = vmatpush1.msra.mxu0 0.0
    %2715 = vmatprep.subr.mxu0 0.0
    %2716 = vmatpush1.msra.mxu0 0.0
    %2717 = vmatprep.subr.mxu0 0.0
    %2718 = vmatpush1.msra.mxu0 0.0
    %2719 = vmatprep.subr.mxu0 0.0
    %2720 = vmatpush1.msra.mxu0 0.0
    %2721 = vmatprep.subr.mxu0 0.0
    %2722 = vmatpush1.msra.mxu0 0.0
    %2723 = vmatprep.subr.mxu0 0.0
    %2724 = vmatpush1.msra.mxu0 0.0
    %2725 = vmatprep.subr.mxu0 0.0
    %2726 = vmatpush1.msra.mxu0 0.0
    %2727 = vmatprep.subr.mxu0 0.0
    %2728 = vmatpush1.msra.mxu0 0.0
    %2729 = vmatprep.subr.mxu0 0.0
    %2730 = vmatpush1.msra.mxu0 0.0
    %2731 = vmatprep.subr.mxu0 0.0
    %2732 = vmatpush1.msra.mxu0 0.0
    %2733 = vmatprep.subr.mxu0 0.0
    %2734 = vmatpush1.msra.mxu0 0.0
    %2735 = vmatprep.subr.mxu0 0.0
    %2736 = vmatpush1.msra.mxu0 0.0
    %2737 = vmatprep.subr.mxu0 0.0
    %2738 = vmatpush1.msra.mxu0 0.0
    %2739 = vmatprep.subr.mxu0 0.0
    %2740 = vmatpush1.msra.mxu0 0.0
    %2741 = vmatprep.subr.mxu0 0.0
    %2742 = vmatpush1.msra.mxu0 0.0
    %2743 = vmatprep.subr.mxu0 0.0
    %2744 = vmatpush1.msra.mxu0 0.0
    %2745 = vmatprep.subr.mxu0 0.0
    %2746 = vmatpush1.msra.mxu0 0.0
    %2747 = vmatprep.subr.mxu0 0.0
    %2748 = vmatpush1.msra.mxu0 0.0
    %2749 = vmatprep.subr.mxu0 0.0
    %2750 = vmatpush1.msra.mxu0 0.0
    %2751 = vmatprep.subr.mxu0 0.0
    %2752 = vmatpush1.msra.mxu0 0.0
    %2753 = vmatprep.subr.mxu0 0.0
    %2754 = vmatpush1.msra.mxu0 0.0
    %2755 = vmatprep.subr.mxu0 0.0
    %2756 = vmatpush1.msra.mxu0 0.0
    %2757 = vmatprep.subr.mxu0 0.0
    %2758 = vmatpush1.msra.mxu0 0.0
    %2759 = vmatprep.mubr.f32.mxu0 0.0
    %2760 = vmatmul.mubr.f32.gmra.mrb[0].mxu0 %v2672
    %v2761 = vpop.f32.mrb[0].mxu0
    %v2762 = vadd.f32 %v2670, %v2761
    %v2763 = vpop.f32.mrb[0].mxu0
    %2764 = vmatprep.mubr.f32.mxu0 0.0
    %2765 = vmatmul.mubr.f32.gmra.mrb[0].mxu0 %v2675
    %v2766 = vpop.f32.mrb[0].mxu0
    %v2767 = vadd.f32 %v2670, %v2766
    %v2768 = vpop.f32.mrb[0].mxu0
    %2769 = vmatprep.mubr.f32.mxu0 0.0
    %2770 = vmatmul.mubr.f32.gmra.mrb[0].mxu0 %v2678
    %v2771 = vpop.f32.mrb[0].mxu0
    %v2772 = vadd.f32 %v2670, %v2771
    %v2773 = vpop.f32.mrb[0].mxu0
    %2774 = vmatprep.mubr.f32.mxu0 0.0
    %2775 = vmatmul.mubr.f32.gmra.mrb[0].mxu0 %v2681
    %v2776 = vpop.f32.mrb[0].mxu0
    %v2777 = vadd.f32 %v2670, %v2776
    %v2778 = vpop.f32.mrb[0].mxu0
    %2779 = vmatprep.mubr.f32.mxu0 0.0
    %2780 = vmatmul.mubr.f32.gmra.mrb[0].mxu0 %v2684
    %v2781 = vpop.f32.mrb[0].mxu0
    %v2782 = vadd.f32 %v2670, %v2781
    %v2783 = vpop.f32.mrb[0].mxu0
    %2784 = vmatprep.mubr.f32.mxu0 0.0
    %2785 = vmatmul.mubr.f32.gmra.mrb[0].mxu0 %v2687
    %v2786 = vpop.f32.mrb[0].mxu0
    %v2787 = vadd.f32 %v2670, %v2786
    %v2788 = vpop.f32.mrb[0].mxu0
    %2789 = vmatprep.mubr.f32.mxu0 0.0
    %2790 = vmatmul.mubr.f32.gmra.mrb[0].mxu0 %v2690
    %v2791 = vpop.f32.mrb[0].mxu0
    %v2792 = vadd.f32 %v2670, %v2791
    %v2793 = vpop.f32.mrb[0].mxu0
    %2794 = vmatprep.mubr.f32.mxu0 0.0
    %2795 = vmatmul.mubr.f32.gmra.mrb[0].mxu0 %v2693
    %v2796 = vpop.f32.mrb[0].mxu0
    %v2797 = vadd.f32 %v2670, %v2796
    %v2798 = vpop.f32.mrb[0].mxu0
    %2799 = vdwg.mxu0
    %2804 = vrot.lane.b32.xlu0 %v2762, 96
    %v2805 = vpop.permute.xlu0 %2804
    %2806 = vrot.lane.b32.xlu0 %v2767, 96
    %v2807 = vpop.permute.xlu0 %2806
    %2808 = vrot.lane.b32.xlu0 %v2772, 96
    %v2809 = vpop.permute.xlu0 %2808
    %2810 = vrot.lane.b32.xlu0 %v2777, 96
    %v2811 = vpop.permute.xlu0 %2810
    %v2812 = vsel %vm112, %v2762, 0
    %v2814 = vsel %vm112, %v2767, 0
    %v2816 = vsel %vm112, %v2772, 0
    %v2818 = vsel %vm112, %v2777, 0
    %v2820 = vsel %vm112, %v2805, 0
    %v2822 = vsel %vm112, %v2807, 0
    %v2824 = vsel %vm112, %v2809, 0
    %v2826 = vsel %vm112, %v2811, 0
    %2828 = vmatprep.subr.mxu0 0.0
    %2829 = vmatpush1.xpose.msra.mxu0 %v2820
    %2830 = vmatprep.subr.mxu0 0.0
    %2831 = vmatpush1.xpose.msra.mxu0 %v2822
    %2832 = vmatprep.subr.mxu0 0.0
    %2833 = vmatpush1.xpose.msra.mxu0 %v2824
    %2834 = vmatprep.subr.mxu0 0.0
    %2835 = vmatpush1.xpose.msra.mxu0 %v2826
    %2836 = vmatprep.subr.mxu0 0.0
    %2837 = vmatpush1.xpose.msra.mxu0 0.0
    %2838 = vmatprep.subr.mxu0 0.0
    %2839 = vmatpush1.xpose.msra.mxu0 0.0
    %2840 = vmatprep.subr.mxu0 0.0
    %2841 = vmatpush1.xpose.msra.mxu0 0.0
    %2842 = vmatprep.subr.mxu0 0.0
    %2843 = vmatpush1.xpose.msra.mxu0 0.0
    %2844 = vmatprep.subr.mxu0 0.0
    %2845 = vmatpush1.xpose.msra.mxu0 0.0
    %2846 = vmatprep.subr.mxu0 0.0
    %2847 = vmatpush1.xpose.msra.mxu0 0.0
    %2848 = vmatprep.subr.mxu0 0.0
    %2849 = vmatpush1.xpose.msra.mxu0 0.0
    %2850 = vmatprep.subr.mxu0 0.0
    %2851 = vmatpush1.xpose.msra.mxu0 0.0
    %2852 = vmatprep.subr.mxu0 0.0
    %2853 = vmatpush1.xpose.msra.mxu0 0.0
    %2854 = vmatprep.subr.mxu0 0.0
    %2855 = vmatpush1.xpose.msra.mxu0 0.0
    %2856 = vmatprep.subr.mxu0 0.0
    %2857 = vmatpush1.xpose.msra.mxu0 0.0
    %2858 = vmatprep.subr.mxu0 0.0
    %2859 = vmatpush1.xpose.msra.mxu0 0.0
    %2860 = vmatprep.subr.mxu0 0.0
    %2861 = vmatpush1.xpose.msra.mxu0 0.0
    %2862 = vmatprep.subr.mxu0 0.0
    %2863 = vmatpush1.xpose.msra.mxu0 0.0
    %2864 = vmatprep.subr.mxu0 0.0
    %2865 = vmatpush1.xpose.msra.mxu0 0.0
    %2866 = vmatprep.subr.mxu0 0.0
    %2867 = vmatpush1.xpose.msra.mxu0 0.0
    %2868 = vmatprep.subr.mxu0 0.0
    %2869 = vmatpush1.xpose.msra.mxu0 0.0
    %2870 = vmatprep.subr.mxu0 0.0
    %2871 = vmatpush1.xpose.msra.mxu0 0.0
    %2872 = vmatprep.subr.mxu0 0.0
    %2873 = vmatpush1.xpose.msra.mxu0 0.0
    %2874 = vmatprep.subr.mxu0 0.0
    %2875 = vmatpush1.xpose.msra.mxu0 0.0
    %2876 = vmatprep.subr.mxu0 0.0
    %2877 = vmatpush1.xpose.msra.mxu0 0.0
    %2878 = vmatprep.subr.mxu0 0.0
    %2879 = vmatpush1.xpose.msra.mxu0 0.0
    %2880 = vmatprep.subr.mxu0 0.0
    %2881 = vmatpush1.xpose.msra.mxu0 0.0
    %2882 = vmatprep.subr.mxu0 0.0
    %2883 = vmatpush1.xpose.msra.mxu0 0.0
    %2884 = vmatprep.subr.mxu0 0.0
    %2885 = vmatpush1.xpose.msra.mxu0 0.0
    %2886 = vmatprep.subr.mxu0 0.0
    %2887 = vmatpush1.xpose.msra.mxu0 0.0
    %2888 = vmatprep.subr.mxu0 0.0
    %2889 = vmatpush1.xpose.msra.mxu0 0.0
    %2890 = vmatprep.subr.mxu0 0.0
    %2891 = vmatpush1.xpose.msra.mxu0 0.0
    %2892 = vmatprep.mubr.f32.mxu0 0.0
    %2893 = vmatmul.mubr.f32.gmra.mrb[0].mxu0 %v2812
    %v2894 = vpop.f32.mrb[0].mxu0
    %v2895 = vadd.f32 0.0, %v2894
    %v2896 = vpop.f32.mrb[0].mxu0
    %2897 = vmatprep.mubr.f32.mxu0 0.0
    %2898 = vmatmul.mubr.f32.gmra.mrb[0].mxu0 %v2814
    %v2899 = vpop.f32.mrb[0].mxu0
    %v2900 = vadd.f32 0.0, %v2899
    %v2901 = vpop.f32.mrb[0].mxu0
    %2902 = vmatprep.mubr.f32.mxu0 0.0
    %2903 = vmatmul.mubr.f32.gmra.mrb[0].mxu0 %v2816
    %v2904 = vpop.f32.mrb[0].mxu0
    %v2905 = vadd.f32 0.0, %v2904
    %v2906 = vpop.f32.mrb[0].mxu0
    %2907 = vmatprep.mubr.f32.mxu0 0.0
    %2908 = vmatmul.mubr.f32.gmra.mrb[0].mxu0 %v2818
    %v2909 = vpop.f32.mrb[0].mxu0
    %v2910 = vadd.f32 0.0, %v2909
    %v2911 = vpop.f32.mrb[0].mxu0
    %2912 = vdwg.mxu0
    %v2913 = vmul.f32 %v2895, 0.25
    %v2914 = vmul.f32 %v2900, 0.25
    %v2915 = vmul.f32 %v2905, 0.25
    %v2916 = vmul.f32 %v2910, 0.25
    %v2917 = vadd.f32 %v2913, %v375
    %v2918 = vadd.f32 %v2914, %v375
    %v2919 = vadd.f32 %v2915, %v375
    %v2920 = vadd.f32 %v2916, %v375
    %v2921 = vsel %vm244, %v2917, -inf
    %2922 = vmax.xlane.f32.xlu0 %v2921
    %v2923 = vpop.xlane.xlu0 %2922
    %v2924 = vsel %vm244, %v2918, -inf
    %2925 = vmax.xlane.f32.xlu0 %v2924
    %v2926 = vpop.xlane.xlu0 %2925
    %v2927 = vsel %vm244, %v2919, -inf
    %2928 = vmax.xlane.f32.xlu0 %v2927
    %v2929 = vpop.xlane.xlu0 %2928
    %v2930 = vsel %vm244, %v2920, -inf
    %2931 = vmax.xlane.f32.xlu0 %v2930
    %v2932 = vpop.xlane.xlu0 %2931
    %v2933 = vsub.f32 %v2917, %v2923
    %v2934 = vsub.f32 %v2918, %v2926
    %v2935 = vsub.f32 %v2919, %v2929
    %v2936 = vsub.f32 %v2920, %v2932
    %v2937 = vmul.f32 %v2933, 1.442695
    %v2938 = vpow.pop %v2937
    %v2939 = vmul.f32 %v2934, 1.442695
    %v2940 = vpow.pop %v2939
    %v2941 = vmul.f32 %v2935, 1.442695
    %v2942 = vpow.pop %v2941
    %v2943 = vmul.f32 %v2936, 1.442695
    %v2944 = vpow.pop %v2943
    %v2945 = vsel %vm244, %v2938, 0.0
    %2946 = vadd.xlane.f32.xlu0 %v2945
    %v2947 = vpop.xlane.xlu0 %2946
    %v2948 = vsel %vm244, %v2940, 0.0
    %2949 = vadd.xlane.f32.xlu0 %v2948
    %v2950 = vpop.xlane.xlu0 %2949
    %v2951 = vsel %vm244, %v2942, 0.0
    %2952 = vadd.xlane.f32.xlu0 %v2951
    %v2953 = vpop.xlane.xlu0 %2952
    %v2954 = vsel %vm244, %v2944, 0.0
    %2955 = vadd.xlane.f32.xlu0 %v2954
    %v2956 = vpop.xlane.xlu0 %2955
    %v2957 = vrcp.pop %v2947
    %v2958 = vrcp.pop %v2950
    %v2959 = vrcp.pop %v2953
    %v2960 = vrcp.pop %v2956
    %v2961 = vmul.f32 %v2938, %v2957
    %v2962 = vmul.f32 %v2940, %v2958
    %v2963 = vmul.f32 %v2942, %v2959
    %v2964 = vmul.f32 %v2944, %v2960
    %2965 = vrot.lane.b32.xlu0 %v2762, 64
    %v2966 = vpop.permute.xlu0 %2965
    %2967 = vrot.lane.b32.xlu0 %v2767, 64
    %v2968 = vpop.permute.xlu0 %2967
    %2969 = vrot.lane.b32.xlu0 %v2772, 64
    %v2970 = vpop.permute.xlu0 %2969
    %2971 = vrot.lane.b32.xlu0 %v2777, 64
    %v2972 = vpop.permute.xlu0 %2971
    %v2978 = vsel %vm244, %v2961, 0
    %v2981 = vsel %vm244, %v2962, 0
    %v2984 = vsel %vm244, %v2963, 0
    %v2987 = vsel %vm244, %v2964, 0
    %2989 = vmatprep.subr.mxu0 0.0
    %2990 = vmatpush1.msra.mxu0 %v2966
    %2991 = vmatprep.subr.mxu0 0.0
    %2992 = vmatpush1.msra.mxu0 %v2968
    %2993 = vmatprep.subr.mxu0 0.0
    %2994 = vmatpush1.msra.mxu0 %v2970
    %2995 = vmatprep.subr.mxu0 0.0
    %2996 = vmatpush1.msra.mxu0 %v2972
    %2997 = vmatprep.subr.mxu0 0.0
    %2998 = vmatpush1.msra.mxu0 0.0
    %2999 = vmatprep.subr.mxu0 0.0
    %3000 = vmatpush1.msra.mxu0 0.0
    %3001 = vmatprep.subr.mxu0 0.0
    %3002 = vmatpush1.msra.mxu0 0.0
    %3003 = vmatprep.subr.mxu0 0.0
    %3004 = vmatpush1.msra.mxu0 0.0
    %3005 = vmatprep.subr.mxu0 0.0
    %3006 = vmatpush1.msra.mxu0 0.0
    %3007 = vmatprep.subr.mxu0 0.0
    %3008 = vmatpush1.msra.mxu0 0.0
    %3009 = vmatprep.subr.mxu0 0.0
    %3010 = vmatpush1.msra.mxu0 0.0
    %3011 = vmatprep.subr.mxu0 0.0
    %3012 = vmatpush1.msra.mxu0 0.0
    %3013 = vmatprep.subr.mxu0 0.0
    %3014 = vmatpush1.msra.mxu0 0.0
    %3015 = vmatprep.subr.mxu0 0.0
    %3016 = vmatpush1.msra.mxu0 0.0
    %3017 = vmatprep.subr.mxu0 0.0
    %3018 = vmatpush1.msra.mxu0 0.0
    %3019 = vmatprep.subr.mxu0 0.0
    %3020 = vmatpush1.msra.mxu0 0.0
    %3021 = vmatprep.subr.mxu0 0.0
    %3022 = vmatpush1.msra.mxu0 0.0
    %3023 = vmatprep.subr.mxu0 0.0
    %3024 = vmatpush1.msra.mxu0 0.0
    %3025 = vmatprep.subr.mxu0 0.0
    %3026 = vmatpush1.msra.mxu0 0.0
    %3027 = vmatprep.subr.mxu0 0.0
    %3028 = vmatpush1.msra.mxu0 0.0
    %3029 = vmatprep.subr.mxu0 0.0
    %3030 = vmatpush1.msra.mxu0 0.0
    %3031 = vmatprep.subr.mxu0 0.0
    %3032 = vmatpush1.msra.mxu0 0.0
    %3033 = vmatprep.subr.mxu0 0.0
    %3034 = vmatpush1.msra.mxu0 0.0
    %3035 = vmatprep.subr.mxu0 0.0
    %3036 = vmatpush1.msra.mxu0 0.0
    %3037 = vmatprep.subr.mxu0 0.0
    %3038 = vmatpush1.msra.mxu0 0.0
    %3039 = vmatprep.subr.mxu0 0.0
    %3040 = vmatpush1.msra.mxu0 0.0
    %3041 = vmatprep.subr.mxu0 0.0
    %3042 = vmatpush1.msra.mxu0 0.0
    %3043 = vmatprep.subr.mxu0 0.0
    %3044 = vmatpush1.msra.mxu0 0.0
    %3045 = vmatprep.subr.mxu0 0.0
    %3046 = vmatpush1.msra.mxu0 0.0
    %3047 = vmatprep.subr.mxu0 0.0
    %3048 = vmatpush1.msra.mxu0 0.0
    %3049 = vmatprep.subr.mxu0 0.0
    %3050 = vmatpush1.msra.mxu0 0.0
    %3051 = vmatprep.subr.mxu0 0.0
    %3052 = vmatpush1.msra.mxu0 0.0
    %3053 = vmatprep.mubr.f32.mxu0 0.0
    %3054 = vmatmul.mubr.f32.gmra.mrb[0].mxu0 %v2978
    %v3055 = vpop.f32.mrb[0].mxu0
    %v3056 = vadd.f32 0.0, %v3055
    %v3057 = vpop.f32.mrb[0].mxu0
    %3058 = vmatprep.mubr.f32.mxu0 0.0
    %3059 = vmatmul.mubr.f32.gmra.mrb[0].mxu0 %v2981
    %v3060 = vpop.f32.mrb[0].mxu0
    %v3061 = vadd.f32 0.0, %v3060
    %v3062 = vpop.f32.mrb[0].mxu0
    %3063 = vmatprep.mubr.f32.mxu0 0.0
    %3064 = vmatmul.mubr.f32.gmra.mrb[0].mxu0 %v2984
    %v3065 = vpop.f32.mrb[0].mxu0
    %v3066 = vadd.f32 0.0, %v3065
    %v3067 = vpop.f32.mrb[0].mxu0
    %3068 = vmatprep.mubr.f32.mxu0 0.0
    %3069 = vmatmul.mubr.f32.gmra.mrb[0].mxu0 %v2987
    %v3070 = vpop.f32.mrb[0].mxu0
    %v3071 = vadd.f32 0.0, %v3070
    %v3072 = vpop.f32.mrb[0].mxu0
    %3073 = vdwg.mxu0
    %v3074 = vld [vmem:[%s2660 + $0x8] sm:$0xff]
    %v3075 = vld [vmem:[%s2660 + $0x28] sm:$0xff]
    %3076 = vrot.lane.b32.xlu0 %v2762, 112
    %v3077 = vpop.permute.xlu0 %3076
    %3078 = vrot.lane.b32.xlu0 %v2767, 112
    %v3079 = vpop.permute.xlu0 %3078
    %3080 = vrot.lane.b32.xlu0 %v2772, 112
    %v3081 = vpop.permute.xlu0 %3080
    %3082 = vrot.lane.b32.xlu0 %v2777, 112
    %v3083 = vpop.permute.xlu0 %3082
    %3084 = vrot.lane.b32.xlu0 %v2762, 80
    %v3085 = vpop.permute.xlu0 %3084
    %3086 = vrot.lane.b32.xlu0 %v2767, 80
    %v3087 = vpop.permute.xlu0 %3086
    %3088 = vrot.lane.b32.xlu0 %v2772, 80
    %v3089 = vpop.permute.xlu0 %3088
    %3090 = vrot.lane.b32.xlu0 %v2777, 80
    %v3091 = vpop.permute.xlu0 %3090
    %v3092 = vsel %vm112, %v3077, 0
    %v3094 = vsel %vm112, %v3079, 0
    %v3096 = vsel %vm112, %v3081, 0
    %v3098 = vsel %vm112, %v3083, 0
    %v3100 = vsel %vm112, %v3085, 0
    %v3102 = vsel %vm112, %v3087, 0
    %v3104 = vsel %vm112, %v3089, 0
    %v3106 = vsel %vm112, %v3091, 0
    %3108 = vmatprep.subr.mxu0 0.0
    %3109 = vmatpush1.xpose.msra.mxu0 %v3100
    %3110 = vmatprep.subr.mxu0 0.0
    %3111 = vmatpush1.xpose.msra.mxu0 %v3102
    %3112 = vmatprep.subr.mxu0 0.0
    %3113 = vmatpush1.xpose.msra.mxu0 %v3104
    %3114 = vmatprep.subr.mxu0 0.0
    %3115 = vmatpush1.xpose.msra.mxu0 %v3106
    %3116 = vmatprep.subr.mxu0 0.0
    %3117 = vmatpush1.xpose.msra.mxu0 0.0
    %3118 = vmatprep.subr.mxu0 0.0
    %3119 = vmatpush1.xpose.msra.mxu0 0.0
    %3120 = vmatprep.subr.mxu0 0.0
    %3121 = vmatpush1.xpose.msra.mxu0 0.0
    %3122 = vmatprep.subr.mxu0 0.0
    %3123 = vmatpush1.xpose.msra.mxu0 0.0
    %3124 = vmatprep.subr.mxu0 0.0
    %3125 = vmatpush1.xpose.msra.mxu0 0.0
    %3126 = vmatprep.subr.mxu0 0.0
    %3127 = vmatpush1.xpose.msra.mxu0 0.0
    %3128 = vmatprep.subr.mxu0 0.0
    %3129 = vmatpush1.xpose.msra.mxu0 0.0
    %3130 = vmatprep.subr.mxu0 0.0
    %3131 = vmatpush1.xpose.msra.mxu0 0.0
    %3132 = vmatprep.subr.mxu0 0.0
    %3133 = vmatpush1.xpose.msra.mxu0 0.0
    %3134 = vmatprep.subr.mxu0 0.0
    %3135 = vmatpush1.xpose.msra.mxu0 0.0
    %3136 = vmatprep.subr.mxu0 0.0
    %3137 = vmatpush1.xpose.msra.mxu0 0.0
    %3138 = vmatprep.subr.mxu0 0.0
    %3139 = vmatpush1.xpose.msra.mxu0 0.0
    %3140 = vmatprep.subr.mxu0 0.0
    %3141 = vmatpush1.xpose.msra.mxu0 0.0
    %3142 = vmatprep.subr.mxu0 0.0
    %3143 = vmatpush1.xpose.msra.mxu0 0.0
    %3144 = vmatprep.subr.mxu0 0.0
    %3145 = vmatpush1.xpose.msra.mxu0 0.0
    %3146 = vmatprep.subr.mxu0 0.0
    %3147 = vmatpush1.xpose.msra.mxu0 0.0
    %3148 = vmatprep.subr.mxu0 0.0
    %3149 = vmatpush1.xpose.msra.mxu0 0.0
    %3150 = vmatprep.subr.mxu0 0.0
    %3151 = vmatpush1.xpose.msra.mxu0 0.0
    %3152 = vmatprep.subr.mxu0 0.0
    %3153 = vmatpush1.xpose.msra.mxu0 0.0
    %3154 = vmatprep.subr.mxu0 0.0
    %3155 = vmatpush1.xpose.msra.mxu0 0.0
    %3156 = vmatprep.subr.mxu0 0.0
    %3157 = vmatpush1.xpose.msra.mxu0 0.0
    %3158 = vmatprep.subr.mxu0 0.0
    %3159 = vmatpush1.xpose.msra.mxu0 0.0
    %3160 = vmatprep.subr.mxu0 0.0
    %3161 = vmatpush1.xpose.msra.mxu0 0.0
    %3162 = vmatprep.subr.mxu0 0.0
    %3163 = vmatpush1.xpose.msra.mxu0 0.0
    %3164 = vmatprep.subr.mxu0 0.0
    %3165 = vmatpush1.xpose.msra.mxu0 0.0
    %3166 = vmatprep.subr.mxu0 0.0
    %3167 = vmatpush1.xpose.msra.mxu0 0.0
    %3168 = vmatprep.subr.mxu0 0.0
    %3169 = vmatpush1.xpose.msra.mxu0 0.0
    %3170 = vmatprep.subr.mxu0 0.0
    %3171 = vmatpush1.xpose.msra.mxu0 0.0
    %3172 = vmatprep.mubr.f32.mxu0 0.0
    %3173 = vmatmul.mubr.f32.gmra.mrb[0].mxu0 %v3092
    %v3174 = vpop.f32.mrb[0].mxu0
    %v3175 = vadd.f32 0.0, %v3174
    %v3176 = vpop.f32.mrb[0].mxu0
    %3177 = vmatprep.mubr.f32.mxu0 0.0
    %3178 = vmatmul.mubr.f32.gmra.mrb[0].mxu0 %v3094
    %v3179 = vpop.f32.mrb[0].mxu0
    %v3180 = vadd.f32 0.0, %v3179
    %v3181 = vpop.f32.mrb[0].mxu0
    %3182 = vmatprep.mubr.f32.mxu0 0.0
    %3183 = vmatmul.mubr.f32.gmra.mrb[0].mxu0 %v3096
    %v3184 = vpop.f32.mrb[0].mxu0
    %v3185 = vadd.f32 0.0, %v3184
    %v3186 = vpop.f32.mrb[0].mxu0
    %3187 = vmatprep.mubr.f32.mxu0 0.0
    %3188 = vmatmul.mubr.f32.gmra.mrb[0].mxu0 %v3098
    %v3189 = vpop.f32.mrb[0].mxu0
    %v3190 = vadd.f32 0.0, %v3189
    %v3191 = vpop.f32.mrb[0].mxu0
    %3192 = vdwg.mxu0
    %v3193 = vmul.f32 %v3175, 0.25
    %v3194 = vmul.f32 %v3180, 0.25
    %v3195 = vmul.f32 %v3185, 0.25
    %v3196 = vmul.f32 %v3190, 0.25
    %v3197 = vadd.f32 %v3193, %v375
    %v3198 = vadd.f32 %v3194, %v375
    %v3199 = vadd.f32 %v3195, %v375
    %v3200 = vadd.f32 %v3196, %v375
    %v3201 = vsel %vm244, %v3197, -inf
    %3202 = vmax.xlane.f32.xlu0 %v3201
    %v3203 = vpop.xlane.xlu0 %3202
    %v3204 = vsel %vm244, %v3198, -inf
    %3205 = vmax.xlane.f32.xlu0 %v3204
    %v3206 = vpop.xlane.xlu0 %3205
    %v3207 = vsel %vm244, %v3199, -inf
    %3208 = vmax.xlane.f32.xlu0 %v3207
    %v3209 = vpop.xlane.xlu0 %3208
    %v3210 = vsel %vm244, %v3200, -inf
    %3211 = vmax.xlane.f32.xlu0 %v3210
    %v3212 = vpop.xlane.xlu0 %3211
    %v3213 = vsub.f32 %v3197, %v3203
    %v3214 = vsub.f32 %v3198, %v3206
    %v3215 = vsub.f32 %v3199, %v3209
    %v3216 = vsub.f32 %v3200, %v3212
    %v3217 = vmul.f32 %v3213, 1.442695
    %v3218 = vpow.pop %v3217
    %v3219 = vmul.f32 %v3214, 1.442695
    %v3220 = vpow.pop %v3219
    %v3221 = vmul.f32 %v3215, 1.442695
    %v3222 = vpow.pop %v3221
    %v3223 = vmul.f32 %v3216, 1.442695
    %v3224 = vpow.pop %v3223
    %v3225 = vsel %vm244, %v3218, 0.0
    %3226 = vadd.xlane.f32.xlu0 %v3225
    %v3227 = vpop.xlane.xlu0 %3226
    %v3228 = vsel %vm244, %v3220, 0.0
    %3229 = vadd.xlane.f32.xlu0 %v3228
    %v3230 = vpop.xlane.xlu0 %3229
    %v3231 = vsel %vm244, %v3222, 0.0
    %3232 = vadd.xlane.f32.xlu0 %v3231
    %v3233 = vpop.xlane.xlu0 %3232
    %v3234 = vsel %vm244, %v3224, 0.0
    %3235 = vadd.xlane.f32.xlu0 %v3234
    %v3236 = vpop.xlane.xlu0 %3235
    %v3237 = vrcp.pop %v3227
    %v3238 = vrcp.pop %v3230
    %v3239 = vrcp.pop %v3233
    %v3240 = vrcp.pop %v3236
    %v3241 = vmul.f32 %v3218, %v3237
    %v3242 = vmul.f32 %v3220, %v3238
    %v3243 = vmul.f32 %v3222, %v3239
    %v3244 = vmul.f32 %v3224, %v3240
    %3245 = vrot.lane.b32.xlu0 %v2762, 48
    %v3246 = vpop.permute.xlu0 %3245
    %3247 = vrot.lane.b32.xlu0 %v2767, 48
    %v3248 = vpop.permute.xlu0 %3247
    %3249 = vrot.lane.b32.xlu0 %v2772, 48
    %v3250 = vpop.permute.xlu0 %3249
    %3251 = vrot.lane.b32.xlu0 %v2777, 48
    %v3252 = vpop.permute.xlu0 %3251
    %v3258 = vsel %vm244, %v3241, 0
    %v3261 = vsel %vm244, %v3242, 0
    %v3264 = vsel %vm244, %v3243, 0
    %v3267 = vsel %vm244, %v3244, 0
    %3269 = vmatprep.subr.mxu0 0.0
    %3270 = vmatpush1.msra.mxu0 %v3246
    %3271 = vmatprep.subr.mxu0 0.0
    %3272 = vmatpush1.msra.mxu0 %v3248
    %3273 = vmatprep.subr.mxu0 0.0
    %3274 = vmatpush1.msra.mxu0 %v3250
    %3275 = vmatprep.subr.mxu0 0.0
    %3276 = vmatpush1.msra.mxu0 %v3252
    %3277 = vmatprep.subr.mxu0 0.0
    %3278 = vmatpush1.msra.mxu0 0.0
    %3279 = vmatprep.subr.mxu0 0.0
    %3280 = vmatpush1.msra.mxu0 0.0
    %3281 = vmatprep.subr.mxu0 0.0
    %3282 = vmatpush1.msra.mxu0 0.0
    %3283 = vmatprep.subr.mxu0 0.0
    %3284 = vmatpush1.msra.mxu0 0.0
    %3285 = vmatprep.subr.mxu0 0.0
    %3286 = vmatpush1.msra.mxu0 0.0
    %3287 = vmatprep.subr.mxu0 0.0
    %3288 = vmatpush1.msra.mxu0 0.0
    %3289 = vmatprep.subr.mxu0 0.0
    %3290 = vmatpush1.msra.mxu0 0.0
    %3291 = vmatprep.subr.mxu0 0.0
    %3292 = vmatpush1.msra.mxu0 0.0
    %3293 = vmatprep.subr.mxu0 0.0
    %3294 = vmatpush1.msra.mxu0 0.0
    %3295 = vmatprep.subr.mxu0 0.0
    %3296 = vmatpush1.msra.mxu0 0.0
    %3297 = vmatprep.subr.mxu0 0.0
    %3298 = vmatpush1.msra.mxu0 0.0
    %3299 = vmatprep.subr.mxu0 0.0
    %3300 = vmatpush1.msra.mxu0 0.0
    %3301 = vmatprep.subr.mxu0 0.0
    %3302 = vmatpush1.msra.mxu0 0.0
    %3303 = vmatprep.subr.mxu0 0.0
    %3304 = vmatpush1.msra.mxu0 0.0
    %3305 = vmatprep.subr.mxu0 0.0
    %3306 = vmatpush1.msra.mxu0 0.0
    %3307 = vmatprep.subr.mxu0 0.0
    %3308 = vmatpush1.msra.mxu0 0.0
    %3309 = vmatprep.subr.mxu0 0.0
    %3310 = vmatpush1.msra.mxu0 0.0
    %3311 = vmatprep.subr.mxu0 0.0
    %3312 = vmatpush1.msra.mxu0 0.0
    %3313 = vmatprep.subr.mxu0 0.0
    %3314 = vmatpush1.msra.mxu0 0.0
    %3315 = vmatprep.subr.mxu0 0.0
    %3316 = vmatpush1.msra.mxu0 0.0
    %3317 = vmatprep.subr.mxu0 0.0
    %3318 = vmatpush1.msra.mxu0 0.0
    %3319 = vmatprep.subr.mxu0 0.0
    %3320 = vmatpush1.msra.mxu0 0.0
    %3321 = vmatprep.subr.mxu0 0.0
    %3322 = vmatpush1.msra.mxu0 0.0
    %3323 = vmatprep.subr.mxu0 0.0
    %3324 = vmatpush1.msra.mxu0 0.0
    %3325 = vmatprep.subr.mxu0 0.0
    %3326 = vmatpush1.msra.mxu0 0.0
    %3327 = vmatprep.subr.mxu0 0.0
    %3328 = vmatpush1.msra.mxu0 0.0
    %3329 = vmatprep.subr.mxu0 0.0
    %3330 = vmatpush1.msra.mxu0 0.0
    %3331 = vmatprep.subr.mxu0 0.0
    %3332 = vmatpush1.msra.mxu0 0.0
    %3333 = vmatprep.mubr.f32.mxu0 0.0
    %3334 = vmatmul.mubr.f32.gmra.mrb[0].mxu0 %v3258
    %v3335 = vpop.f32.mrb[0].mxu0
    %v3336 = vadd.f32 0.0, %v3335
    %v3337 = vpop.f32.mrb[0].mxu0
    %3338 = vmatprep.mubr.f32.mxu0 0.0
    %3339 = vmatmul.mubr.f32.gmra.mrb[0].mxu0 %v3261
    %v3340 = vpop.f32.mrb[0].mxu0
    %v3341 = vadd.f32 0.0, %v3340
    %v3342 = vpop.f32.mrb[0].mxu0
    %3343 = vmatprep.mubr.f32.mxu0 0.0
    %3344 = vmatmul.mubr.f32.gmra.mrb[0].mxu0 %v3264
    %v3345 = vpop.f32.mrb[0].mxu0
    %v3346 = vadd.f32 0.0, %v3345
    %v3347 = vpop.f32.mrb[0].mxu0
    %3348 = vmatprep.mubr.f32.mxu0 0.0
    %3349 = vmatmul.mubr.f32.gmra.mrb[0].mxu0 %v3267
    %v3350 = vpop.f32.mrb[0].mxu0
    %v3351 = vadd.f32 0.0, %v3350
    %v3352 = vpop.f32.mrb[0].mxu0
    %3353 = vdwg.mxu0
    %v3354 = vld [vmem:[%s2660 + $0x48] sm:$0xff]
    %v3355 = vld [vmem:[%s2660 + $0x68] sm:$0xff]
    %v3357 = vsel %vm112, %v3336, 0
    %v3360 = vsel %vm112, %v3341, 0
    %v3363 = vsel %vm112, %v3346, 0
    %v3366 = vsel %vm112, %v3351, 0
    %3368 = vmatprep.subr.mxu0 0.0
    %3369 = vmatpush1.msra.mxu0 %v3354
    %3370 = vmatprep.subr.mxu0 0.0
    %3371 = vmatpush1.msra.mxu0 %v3355
    %3372 = vmatprep.subr.mxu0 0.0
    %3373 = vmatpush1.msra.mxu0 0.0
    %3374 = vmatprep.subr.mxu0 0.0
    %3375 = vmatpush1.msra.mxu0 0.0
    %3376 = vmatprep.subr.mxu0 0.0
    %3377 = vmatpush1.msra.mxu0 0.0
    %3378 = vmatprep.subr.mxu0 0.0
    %3379 = vmatpush1.msra.mxu0 0.0
    %3380 = vmatprep.subr.mxu0 0.0
    %3381 = vmatpush1.msra.mxu0 0.0
    %3382 = vmatprep.subr.mxu0 0.0
    %3383 = vmatpush1.msra.mxu0 0.0
    %3384 = vmatprep.subr.mxu0 0.0
    %3385 = vmatpush1.msra.mxu0 0.0
    %3386 = vmatprep.subr.mxu0 0.0
    %3387 = vmatpush1.msra.mxu0 0.0
    %3388 = vmatprep.subr.mxu0 0.0
    %3389 = vmatpush1.msra.mxu0 0.0
    %3390 = vmatprep.subr.mxu0 0.0
    %3391 = vmatpush1.msra.mxu0 0.0
    %3392 = vmatprep.subr.mxu0 0.0
    %3393 = vmatpush1.msra.mxu0 0.0
    %3394 = vmatprep.subr.mxu0 0.0
    %3395 = vmatpush1.msra.mxu0 0.0
    %3396 = vmatprep.subr.mxu0 0.0
    %3397 = vmatpush1.msra.mxu0 0.0
    %3398 = vmatprep.subr.mxu0 0.0
    %3399 = vmatpush1.msra.mxu0 0.0
    %3400 = vmatprep.subr.mxu0 0.0
    %3401 = vmatpush1.msra.mxu0 0.0
    %3402 = vmatprep.subr.mxu0 0.0
    %3403 = vmatpush1.msra.mxu0 0.0
    %3404 = vmatprep.subr.mxu0 0.0
    %3405 = vmatpush1.msra.mxu0 0.0
    %3406 = vmatprep.subr.mxu0 0.0
    %3407 = vmatpush1.msra.mxu0 0.0
    %3408 = vmatprep.subr.mxu0 0.0
    %3409 = vmatpush1.msra.mxu0 0.0
    %3410 = vmatprep.subr.mxu0 0.0
    %3411 = vmatpush1.msra.mxu0 0.0
    %3412 = vmatprep.subr.mxu0 0.0
    %3413 = vmatpush1.msra.mxu0 0.0
    %3414 = vmatprep.subr.mxu0 0.0
    %3415 = vmatpush1.msra.mxu0 0.0
    %3416 = vmatprep.subr.mxu0 0.0
    %3417 = vmatpush1.msra.mxu0 0.0
    %3418 = vmatprep.subr.mxu0 0.0
    %3419 = vmatpush1.msra.mxu0 0.0
    %3420 = vmatprep.subr.mxu0 0.0
    %3421 = vmatpush1.msra.mxu0 0.0
    %3422 = vmatprep.subr.mxu0 0.0
    %3423 = vmatpush1.msra.mxu0 0.0
    %3424 = vmatprep.subr.mxu0 0.0
    %3425 = vmatpush1.msra.mxu0 0.0
    %3426 = vmatprep.subr.mxu0 0.0
    %3427 = vmatpush1.msra.mxu0 0.0
    %3428 = vmatprep.subr.mxu0 0.0
    %3429 = vmatpush1.msra.mxu0 0.0
    %3430 = vmatprep.subr.mxu0 0.0
    %3431 = vmatpush1.msra.mxu0 0.0
    %3432 = vmatprep.mubr.f32.mxu0 0.0
    %3433 = vmatmul.mubr.f32.gmra.mrb[0].mxu0 %v3357
    %v3434 = vpop.f32.mrb[0].mxu0
    %v3435 = vadd.f32 0.0, %v3434
    %v3436 = vpop.f32.mrb[0].mxu0
    %3437 = vmatprep.mubr.f32.mxu0 0.0
    %3438 = vmatmul.mubr.f32.gmra.mrb[0].mxu0 %v3360
    %v3439 = vpop.f32.mrb[0].mxu0
    %v3440 = vadd.f32 0.0, %v3439
    %v3441 = vpop.f32.mrb[0].mxu0
    %3442 = vmatprep.mubr.f32.mxu0 0.0
    %3443 = vmatmul.mubr.f32.gmra.mrb[0].mxu0 %v3363
    %v3444 = vpop.f32.mrb[0].mxu0
    %v3445 = vadd.f32 0.0, %v3444
    %v3446 = vpop.f32.mrb[0].mxu0
    %3447 = vmatprep.mubr.f32.mxu0 0.0
    %3448 = vmatmul.mubr.f32.gmra.mrb[0].mxu0 %v3366
    %v3449 = vpop.f32.mrb[0].mxu0
    %v3450 = vadd.f32 0.0, %v3449
    %v3451 = vpop.f32.mrb[0].mxu0
    %3452 = vdwg.mxu0
    %v3454 = vsel %vm112, %v3056, 0
    %v3457 = vsel %vm112, %v3061, 0
    %v3460 = vsel %vm112, %v3066, 0
    %v3463 = vsel %vm112, %v3071, 0
    %3465 = vmatprep.subr.mxu0 0.0
    %3466 = vmatpush1.msra.mxu0 %v3074
    %3467 = vmatprep.subr.mxu0 0.0
    %3468 = vmatpush1.msra.mxu0 %v3075
    %3469 = vmatprep.subr.mxu0 0.0
    %3470 = vmatpush1.msra.mxu0 0.0
    %3471 = vmatprep.subr.mxu0 0.0
    %3472 = vmatpush1.msra.mxu0 0.0
    %3473 = vmatprep.subr.mxu0 0.0
    %3474 = vmatpush1.msra.mxu0 0.0
    %3475 = vmatprep.subr.mxu0 0.0
    %3476 = vmatpush1.msra.mxu0 0.0
    %3477 = vmatprep.subr.mxu0 0.0
    %3478 = vmatpush1.msra.mxu0 0.0
    %3479 = vmatprep.subr.mxu0 0.0
    %3480 = vmatpush1.msra.mxu0 0.0
    %3481 = vmatprep.subr.mxu0 0.0
    %3482 = vmatpush1.msra.mxu0 0.0
    %3483 = vmatprep.subr.mxu0 0.0
    %3484 = vmatpush1.msra.mxu0 0.0
    %3485 = vmatprep.subr.mxu0 0.0
    %3486 = vmatpush1.msra.mxu0 0.0
    %3487 = vmatprep.subr.mxu0 0.0
    %3488 = vmatpush1.msra.mxu0 0.0
    %3489 = vmatprep.subr.mxu0 0.0
    %3490 = vmatpush1.msra.mxu0 0.0
    %3491 = vmatprep.subr.mxu0 0.0
    %3492 = vmatpush1.msra.mxu0 0.0
    %3493 = vmatprep.subr.mxu0 0.0
    %3494 = vmatpush1.msra.mxu0 0.0
    %3495 = vmatprep.subr.mxu0 0.0
    %3496 = vmatpush1.msra.mxu0 0.0
    %3497 = vmatprep.subr.mxu0 0.0
    %3498 = vmatpush1.msra.mxu0 0.0
    %3499 = vmatprep.subr.mxu0 0.0
    %3500 = vmatpush1.msra.mxu0 0.0
    %3501 = vmatprep.subr.mxu0 0.0
    %3502 = vmatpush1.msra.mxu0 0.0
    %3503 = vmatprep.subr.mxu0 0.0
    %3504 = vmatpush1.msra.mxu0 0.0
    %3505 = vmatprep.subr.mxu0 0.0
    %3506 = vmatpush1.msra.mxu0 0.0
    %3507 = vmatprep.subr.mxu0 0.0
    %3508 = vmatpush1.msra.mxu0 0.0
    %3509 = vmatprep.subr.mxu0 0.0
    %3510 = vmatpush1.msra.mxu0 0.0
    %3511 = vmatprep.subr.mxu0 0.0
    %3512 = vmatpush1.msra.mxu0 0.0
    %3513 = vmatprep.subr.mxu0 0.0
    %3514 = vmatpush1.msra.mxu0 0.0
    %3515 = vmatprep.subr.mxu0 0.0
    %3516 = vmatpush1.msra.mxu0 0.0
    %3517 = vmatprep.subr.mxu0 0.0
    %3518 = vmatpush1.msra.mxu0 0.0
    %3519 = vmatprep.subr.mxu0 0.0
    %3520 = vmatpush1.msra.mxu0 0.0
    %3521 = vmatprep.subr.mxu0 0.0
    %3522 = vmatpush1.msra.mxu0 0.0
    %3523 = vmatprep.subr.mxu0 0.0
    %3524 = vmatpush1.msra.mxu0 0.0
    %3525 = vmatprep.subr.mxu0 0.0
    %3526 = vmatpush1.msra.mxu0 0.0
    %3527 = vmatprep.subr.mxu0 0.0
    %3528 = vmatpush1.msra.mxu0 0.0
    %3529 = vmatprep.mubr.f32.mxu0 0.0
    %3530 = vmatmul.mubr.f32.gmra.mrb[0].mxu0 %v3454
    %v3531 = vpop.f32.mrb[0].mxu0
    %v3532 = vadd.f32 %v3435, %v3531
    %v3533 = vpop.f32.mrb[0].mxu0
    %3534 = vmatprep.mubr.f32.mxu0 0.0
    %3535 = vmatmul.mubr.f32.gmra.mrb[0].mxu0 %v3457
    %v3536 = vpop.f32.mrb[0].mxu0
    %v3537 = vadd.f32 %v3440, %v3536
    %v3538 = vpop.f32.mrb[0].mxu0
    %3539 = vmatprep.mubr.f32.mxu0 0.0
    %3540 = vmatmul.mubr.f32.gmra.mrb[0].mxu0 %v3460
    %v3541 = vpop.f32.mrb[0].mxu0
    %v3542 = vadd.f32 %v3445, %v3541
    %v3543 = vpop.f32.mrb[0].mxu0
    %3544 = vmatprep.mubr.f32.mxu0 0.0
    %3545 = vmatmul.mubr.f32.gmra.mrb[0].mxu0 %v3463
    %v3546 = vpop.f32.mrb[0].mxu0
    %v3547 = vadd.f32 %v3450, %v3546
    %v3548 = vpop.f32.mrb[0].mxu0
    %3549 = vdwg.mxu0
    %3554 = vrot.lane.b32.xlu0 %v2782, 96
    %v3555 = vpop.permute.xlu0 %3554
    %3556 = vrot.lane.b32.xlu0 %v2787, 96
    %v3557 = vpop.permute.xlu0 %3556
    %3558 = vrot.lane.b32.xlu0 %v2792, 96
    %v3559 = vpop.permute.xlu0 %3558
    %3560 = vrot.lane.b32.xlu0 %v2797, 96
    %v3561 = vpop.permute.xlu0 %3560
    %v3562 = vsel %vm112, %v2782, 0
    %v3564 = vsel %vm112, %v2787, 0
    %v3566 = vsel %vm112, %v2792, 0
    %v3568 = vsel %vm112, %v2797, 0
    %v3570 = vsel %vm112, %v3555, 0
    %v3572 = vsel %vm112, %v3557, 0
    %v3574 = vsel %vm112, %v3559, 0
    %v3576 = vsel %vm112, %v3561, 0
    %3578 = vmatprep.subr.mxu0 0.0
    %3579 = vmatpush1.xpose.msra.mxu0 %v3570
    %3580 = vmatprep.subr.mxu0 0.0
    %3581 = vmatpush1.xpose.msra.mxu0 %v3572
    %3582 = vmatprep.subr.mxu0 0.0
    %3583 = vmatpush1.xpose.msra.mxu0 %v3574
    %3584 = vmatprep.subr.mxu0 0.0
    %3585 = vmatpush1.xpose.msra.mxu0 %v3576
    %3586 = vmatprep.subr.mxu0 0.0
    %3587 = vmatpush1.xpose.msra.mxu0 0.0
    %3588 = vmatprep.subr.mxu0 0.0
    %3589 = vmatpush1.xpose.msra.mxu0 0.0
    %3590 = vmatprep.subr.mxu0 0.0
    %3591 = vmatpush1.xpose.msra.mxu0 0.0
    %3592 = vmatprep.subr.mxu0 0.0
    %3593 = vmatpush1.xpose.msra.mxu0 0.0
    %3594 = vmatprep.subr.mxu0 0.0
    %3595 = vmatpush1.xpose.msra.mxu0 0.0
    %3596 = vmatprep.subr.mxu0 0.0
    %3597 = vmatpush1.xpose.msra.mxu0 0.0
    %3598 = vmatprep.subr.mxu0 0.0
    %3599 = vmatpush1.xpose.msra.mxu0 0.0
    %3600 = vmatprep.subr.mxu0 0.0
    %3601 = vmatpush1.xpose.msra.mxu0 0.0
    %3602 = vmatprep.subr.mxu0 0.0
    %3603 = vmatpush1.xpose.msra.mxu0 0.0
    %3604 = vmatprep.subr.mxu0 0.0
    %3605 = vmatpush1.xpose.msra.mxu0 0.0
    %3606 = vmatprep.subr.mxu0 0.0
    %3607 = vmatpush1.xpose.msra.mxu0 0.0
    %3608 = vmatprep.subr.mxu0 0.0
    %3609 = vmatpush1.xpose.msra.mxu0 0.0
    %3610 = vmatprep.subr.mxu0 0.0
    %3611 = vmatpush1.xpose.msra.mxu0 0.0
    %3612 = vmatprep.subr.mxu0 0.0
    %3613 = vmatpush1.xpose.msra.mxu0 0.0
    %3614 = vmatprep.subr.mxu0 0.0
    %3615 = vmatpush1.xpose.msra.mxu0 0.0
    %3616 = vmatprep.subr.mxu0 0.0
    %3617 = vmatpush1.xpose.msra.mxu0 0.0
    %3618 = vmatprep.subr.mxu0 0.0
    %3619 = vmatpush1.xpose.msra.mxu0 0.0
    %3620 = vmatprep.subr.mxu0 0.0
    %3621 = vmatpush1.xpose.msra.mxu0 0.0
    %3622 = vmatprep.subr.mxu0 0.0
    %3623 = vmatpush1.xpose.msra.mxu0 0.0
    %3624 = vmatprep.subr.mxu0 0.0
    %3625 = vmatpush1.xpose.msra.mxu0 0.0
    %3626 = vmatprep.subr.mxu0 0.0
    %3627 = vmatpush1.xpose.msra.mxu0 0.0
    %3628 = vmatprep.subr.mxu0 0.0
    %3629 = vmatpush1.xpose.msra.mxu0 0.0
    %3630 = vmatprep.subr.mxu0 0.0
    %3631 = vmatpush1.xpose.msra.mxu0 0.0
    %3632 = vmatprep.subr.mxu0 0.0
    %3633 = vmatpush1.xpose.msra.mxu0 0.0
    %3634 = vmatprep.subr.mxu0 0.0
    %3635 = vmatpush1.xpose.msra.mxu0 0.0
    %3636 = vmatprep.subr.mxu0 0.0
    %3637 = vmatpush1.xpose.msra.mxu0 0.0
    %3638 = vmatprep.subr.mxu0 0.0
    %3639 = vmatpush1.xpose.msra.mxu0 0.0
    %3640 = vmatprep.subr.mxu0 0.0
    %3641 = vmatpush1.xpose.msra.mxu0 0.0
    %3642 = vmatprep.mubr.f32.mxu0 0.0
    %3643 = vmatmul.mubr.f32.gmra.mrb[0].mxu0 %v3562
    %v3644 = vpop.f32.mrb[0].mxu0
    %v3645 = vadd.f32 0.0, %v3644
    %v3646 = vpop.f32.mrb[0].mxu0
    %3647 = vmatprep.mubr.f32.mxu0 0.0
    %3648 = vmatmul.mubr.f32.gmra.mrb[0].mxu0 %v3564
    %v3649 = vpop.f32.mrb[0].mxu0
    %v3650 = vadd.f32 0.0, %v3649
    %v3651 = vpop.f32.mrb[0].mxu0
    %3652 = vmatprep.mubr.f32.mxu0 0.0
    %3653 = vmatmul.mubr.f32.gmra.mrb[0].mxu0 %v3566
    %v3654 = vpop.f32.mrb[0].mxu0
    %v3655 = vadd.f32 0.0, %v3654
    %v3656 = vpop.f32.mrb[0].mxu0
    %3657 = vmatprep.mubr.f32.mxu0 0.0
    %3658 = vmatmul.mubr.f32.gmra.mrb[0].mxu0 %v3568
    %v3659 = vpop.f32.mrb[0].mxu0
    %v3660 = vadd.f32 0.0, %v3659
    %v3661 = vpop.f32.mrb[0].mxu0
    %3662 = vdwg.mxu0
    %v3663 = vmul.f32 %v3645, 0.25
    %v3664 = vmul.f32 %v3650, 0.25
    %v3665 = vmul.f32 %v3655, 0.25
    %v3666 = vmul.f32 %v3660, 0.25
    %v3667 = vadd.f32 %v3663, %v375
    %v3668 = vadd.f32 %v3664, %v375
    %v3669 = vadd.f32 %v3665, %v375
    %v3670 = vadd.f32 %v3666, %v375
    %v3671 = vsel %vm244, %v3667, -inf
    %3672 = vmax.xlane.f32.xlu0 %v3671
    %v3673 = vpop.xlane.xlu0 %3672
    %v3674 = vsel %vm244, %v3668, -inf
    %3675 = vmax.xlane.f32.xlu0 %v3674
    %v3676 = vpop.xlane.xlu0 %3675
    %v3677 = vsel %vm244, %v3669, -inf
    %3678 = vmax.xlane.f32.xlu0 %v3677
    %v3679 = vpop.xlane.xlu0 %3678
    %v3680 = vsel %vm244, %v3670, -inf
    %3681 = vmax.xlane.f32.xlu0 %v3680
    %v3682 = vpop.xlane.xlu0 %3681
    %v3683 = vsub.f32 %v3667, %v3673
    %v3684 = vsub.f32 %v3668, %v3676
    %v3685 = vsub.f32 %v3669, %v3679
    %v3686 = vsub.f32 %v3670, %v3682
    %v3687 = vmul.f32 %v3683, 1.442695
    %v3688 = vpow.pop %v3687
    %v3689 = vmul.f32 %v3684, 1.442695
    %v3690 = vpow.pop %v3689
    %v3691 = vmul.f32 %v3685, 1.442695
    %v3692 = vpow.pop %v3691
    %v3693 = vmul.f32 %v3686, 1.442695
    %v3694 = vpow.pop %v3693
    %v3695 = vsel %vm244, %v3688, 0.0
    %3696 = vadd.xlane.f32.xlu0 %v3695
    %v3697 = vpop.xlane.xlu0 %3696
    %v3698 = vsel %vm244, %v3690, 0.0
    %3699 = vadd.xlane.f32.xlu0 %v3698
    %v3700 = vpop.xlane.xlu0 %3699
    %v3701 = vsel %vm244, %v3692, 0.0
    %3702 = vadd.xlane.f32.xlu0 %v3701
    %v3703 = vpop.xlane.xlu0 %3702
    %v3704 = vsel %vm244, %v3694, 0.0
    %3705 = vadd.xlane.f32.xlu0 %v3704
    %v3706 = vpop.xlane.xlu0 %3705
    %v3707 = vrcp.pop %v3697
    %v3708 = vrcp.pop %v3700
    %v3709 = vrcp.pop %v3703
    %v3710 = vrcp.pop %v3706
    %v3711 = vmul.f32 %v3688, %v3707
    %v3712 = vmul.f32 %v3690, %v3708
    %v3713 = vmul.f32 %v3692, %v3709
    %v3714 = vmul.f32 %v3694, %v3710
    %3715 = vrot.lane.b32.xlu0 %v2782, 64
    %v3716 = vpop.permute.xlu0 %3715
    %3717 = vrot.lane.b32.xlu0 %v2787, 64
    %v3718 = vpop.permute.xlu0 %3717
    %3719 = vrot.lane.b32.xlu0 %v2792, 64
    %v3720 = vpop.permute.xlu0 %3719
    %3721 = vrot.lane.b32.xlu0 %v2797, 64
    %v3722 = vpop.permute.xlu0 %3721
    %v3728 = vsel %vm244, %v3711, 0
    %v3731 = vsel %vm244, %v3712, 0
    %v3734 = vsel %vm244, %v3713, 0
    %v3737 = vsel %vm244, %v3714, 0
    %3739 = vmatprep.subr.mxu0 0.0
    %3740 = vmatpush1.msra.mxu0 %v3716
    %3741 = vmatprep.subr.mxu0 0.0
    %3742 = vmatpush1.msra.mxu0 %v3718
    %3743 = vmatprep.subr.mxu0 0.0
    %3744 = vmatpush1.msra.mxu0 %v3720
    %3745 = vmatprep.subr.mxu0 0.0
    %3746 = vmatpush1.msra.mxu0 %v3722
    %3747 = vmatprep.subr.mxu0 0.0
    %3748 = vmatpush1.msra.mxu0 0.0
    %3749 = vmatprep.subr.mxu0 0.0
    %3750 = vmatpush1.msra.mxu0 0.0
    %3751 = vmatprep.subr.mxu0 0.0
    %3752 = vmatpush1.msra.mxu0 0.0
    %3753 = vmatprep.subr.mxu0 0.0
    %3754 = vmatpush1.msra.mxu0 0.0
    %3755 = vmatprep.subr.mxu0 0.0
    %3756 = vmatpush1.msra.mxu0 0.0
    %3757 = vmatprep.subr.mxu0 0.0
    %3758 = vmatpush1.msra.mxu0 0.0
    %3759 = vmatprep.subr.mxu0 0.0
    %3760 = vmatpush1.msra.mxu0 0.0
    %3761 = vmatprep.subr.mxu0 0.0
    %3762 = vmatpush1.msra.mxu0 0.0
    %3763 = vmatprep.subr.mxu0 0.0
    %3764 = vmatpush1.msra.mxu0 0.0
    %3765 = vmatprep.subr.mxu0 0.0
    %3766 = vmatpush1.msra.mxu0 0.0
    %3767 = vmatprep.subr.mxu0 0.0
    %3768 = vmatpush1.msra.mxu0 0.0
    %3769 = vmatprep.subr.mxu0 0.0
    %3770 = vmatpush1.msra.mxu0 0.0
    %3771 = vmatprep.subr.mxu0 0.0
    %3772 = vmatpush1.msra.mxu0 0.0
    %3773 = vmatprep.subr.mxu0 0.0
    %3774 = vmatpush1.msra.mxu0 0.0
    %3775 = vmatprep.subr.mxu0 0.0
    %3776 = vmatpush1.msra.mxu0 0.0
    %3777 = vmatprep.subr.mxu0 0.0
    %3778 = vmatpush1.msra.mxu0 0.0
    %3779 = vmatprep.subr.mxu0 0.0
    %3780 = vmatpush1.msra.mxu0 0.0
    %3781 = vmatprep.subr.mxu0 0.0
    %3782 = vmatpush1.msra.mxu0 0.0
    %3783 = vmatprep.subr.mxu0 0.0
    %3784 = vmatpush1.msra.mxu0 0.0
    %3785 = vmatprep.subr.mxu0 0.0
    %3786 = vmatpush1.msra.mxu0 0.0
    %3787 = vmatprep.subr.mxu0 0.0
    %3788 = vmatpush1.msra.mxu0 0.0
    %3789 = vmatprep.subr.mxu0 0.0
    %3790 = vmatpush1.msra.mxu0 0.0
    %3791 = vmatprep.subr.mxu0 0.0
    %3792 = vmatpush1.msra.mxu0 0.0
    %3793 = vmatprep.subr.mxu0 0.0
    %3794 = vmatpush1.msra.mxu0 0.0
    %3795 = vmatprep.subr.mxu0 0.0
    %3796 = vmatpush1.msra.mxu0 0.0
    %3797 = vmatprep.subr.mxu0 0.0
    %3798 = vmatpush1.msra.mxu0 0.0
    %3799 = vmatprep.subr.mxu0 0.0
    %3800 = vmatpush1.msra.mxu0 0.0
    %3801 = vmatprep.subr.mxu0 0.0
    %3802 = vmatpush1.msra.mxu0 0.0
    %3803 = vmatprep.mubr.f32.mxu0 0.0
    %3804 = vmatmul.mubr.f32.gmra.mrb[0].mxu0 %v3728
    %v3805 = vpop.f32.mrb[0].mxu0
    %v3806 = vadd.f32 0.0, %v3805
    %v3807 = vpop.f32.mrb[0].mxu0
    %3808 = vmatprep.mubr.f32.mxu0 0.0
    %3809 = vmatmul.mubr.f32.gmra.mrb[0].mxu0 %v3731
    %v3810 = vpop.f32.mrb[0].mxu0
    %v3811 = vadd.f32 0.0, %v3810
    %v3812 = vpop.f32.mrb[0].mxu0
    %3813 = vmatprep.mubr.f32.mxu0 0.0
    %3814 = vmatmul.mubr.f32.gmra.mrb[0].mxu0 %v3734
    %v3815 = vpop.f32.mrb[0].mxu0
    %v3816 = vadd.f32 0.0, %v3815
    %v3817 = vpop.f32.mrb[0].mxu0
    %3818 = vmatprep.mubr.f32.mxu0 0.0
    %3819 = vmatmul.mubr.f32.gmra.mrb[0].mxu0 %v3737
    %v3820 = vpop.f32.mrb[0].mxu0
    %v3821 = vadd.f32 0.0, %v3820
    %v3822 = vpop.f32.mrb[0].mxu0
    %3823 = vdwg.mxu0
    %3824 = vrot.lane.b32.xlu0 %v2782, 112
    %v3825 = vpop.permute.xlu0 %3824
    %3826 = vrot.lane.b32.xlu0 %v2787, 112
    %v3827 = vpop.permute.xlu0 %3826
    %3828 = vrot.lane.b32.xlu0 %v2792, 112
    %v3829 = vpop.permute.xlu0 %3828
    %3830 = vrot.lane.b32.xlu0 %v2797, 112
    %v3831 = vpop.permute.xlu0 %3830
    %3832 = vrot.lane.b32.xlu0 %v2782, 80
    %v3833 = vpop.permute.xlu0 %3832
    %3834 = vrot.lane.b32.xlu0 %v2787, 80
    %v3835 = vpop.permute.xlu0 %3834
    %3836 = vrot.lane.b32.xlu0 %v2792, 80
    %v3837 = vpop.permute.xlu0 %3836
    %3838 = vrot.lane.b32.xlu0 %v2797, 80
    %v3839 = vpop.permute.xlu0 %3838
    %v3840 = vsel %vm112, %v3825, 0
    %v3842 = vsel %vm112, %v3827, 0
    %v3844 = vsel %vm112, %v3829, 0
    %v3846 = vsel %vm112, %v3831, 0
    %v3848 = vsel %vm112, %v3833, 0
    %v3850 = vsel %vm112, %v3835, 0
    %v3852 = vsel %vm112, %v3837, 0
    %v3854 = vsel %vm112, %v3839, 0
    %3856 = vmatprep.subr.mxu0 0.0
    %3857 = vmatpush1.xpose.msra.mxu0 %v3848
    %3858 = vmatprep.subr.mxu0 0.0
    %3859 = vmatpush1.xpose.msra.mxu0 %v3850
    %3860 = vmatprep.subr.mxu0 0.0
    %3861 = vmatpush1.xpose.msra.mxu0 %v3852
    %3862 = vmatprep.subr.mxu0 0.0
    %3863 = vmatpush1.xpose.msra.mxu0 %v3854
    %3864 = vmatprep.subr.mxu0 0.0
    %3865 = vmatpush1.xpose.msra.mxu0 0.0
    %3866 = vmatprep.subr.mxu0 0.0
    %3867 = vmatpush1.xpose.msra.mxu0 0.0
    %3868 = vmatprep.subr.mxu0 0.0
    %3869 = vmatpush1.xpose.msra.mxu0 0.0
    %3870 = vmatprep.subr.mxu0 0.0
    %3871 = vmatpush1.xpose.msra.mxu0 0.0
    %3872 = vmatprep.subr.mxu0 0.0
    %3873 = vmatpush1.xpose.msra.mxu0 0.0
    %3874 = vmatprep.subr.mxu0 0.0
    %3875 = vmatpush1.xpose.msra.mxu0 0.0
    %3876 = vmatprep.subr.mxu0 0.0
    %3877 = vmatpush1.xpose.msra.mxu0 0.0
    %3878 = vmatprep.subr.mxu0 0.0
    %3879 = vmatpush1.xpose.msra.mxu0 0.0
    %3880 = vmatprep.subr.mxu0 0.0
    %3881 = vmatpush1.xpose.msra.mxu0 0.0
    %3882 = vmatprep.subr.mxu0 0.0
    %3883 = vmatpush1.xpose.msra.mxu0 0.0
    %3884 = vmatprep.subr.mxu0 0.0
    %3885 = vmatpush1.xpose.msra.mxu0 0.0
    %3886 = vmatprep.subr.mxu0 0.0
    %3887 = vmatpush1.xpose.msra.mxu0 0.0
    %3888 = vmatprep.subr.mxu0 0.0
    %3889 = vmatpush1.xpose.msra.mxu0 0.0
    %3890 = vmatprep.subr.mxu0 0.0
    %3891 = vmatpush1.xpose.msra.mxu0 0.0
    %3892 = vmatprep.subr.mxu0 0.0
    %3893 = vmatpush1.xpose.msra.mxu0 0.0
    %3894 = vmatprep.subr.mxu0 0.0
    %3895 = vmatpush1.xpose.msra.mxu0 0.0
    %3896 = vmatprep.subr.mxu0 0.0
    %3897 = vmatpush1.xpose.msra.mxu0 0.0
    %3898 = vmatprep.subr.mxu0 0.0
    %3899 = vmatpush1.xpose.msra.mxu0 0.0
    %3900 = vmatprep.subr.mxu0 0.0
    %3901 = vmatpush1.xpose.msra.mxu0 0.0
    %3902 = vmatprep.subr.mxu0 0.0
    %3903 = vmatpush1.xpose.msra.mxu0 0.0
    %3904 = vmatprep.subr.mxu0 0.0
    %3905 = vmatpush1.xpose.msra.mxu0 0.0
    %3906 = vmatprep.subr.mxu0 0.0
    %3907 = vmatpush1.xpose.msra.mxu0 0.0
    %3908 = vmatprep.subr.mxu0 0.0
    %3909 = vmatpush1.xpose.msra.mxu0 0.0
    %3910 = vmatprep.subr.mxu0 0.0
    %3911 = vmatpush1.xpose.msra.mxu0 0.0
    %3912 = vmatprep.subr.mxu0 0.0
    %3913 = vmatpush1.xpose.msra.mxu0 0.0
    %3914 = vmatprep.subr.mxu0 0.0
    %3915 = vmatpush1.xpose.msra.mxu0 0.0
    %3916 = vmatprep.subr.mxu0 0.0
    %3917 = vmatpush1.xpose.msra.mxu0 0.0
    %3918 = vmatprep.subr.mxu0 0.0
    %3919 = vmatpush1.xpose.msra.mxu0 0.0
    %3920 = vmatprep.mubr.f32.mxu0 0.0
    %3921 = vmatmul.mubr.f32.gmra.mrb[0].mxu0 %v3840
    %v3922 = vpop.f32.mrb[0].mxu0
    %v3923 = vadd.f32 0.0, %v3922
    %v3924 = vpop.f32.mrb[0].mxu0
    %3925 = vmatprep.mubr.f32.mxu0 0.0
    %3926 = vmatmul.mubr.f32.gmra.mrb[0].mxu0 %v3842
    %v3927 = vpop.f32.mrb[0].mxu0
    %v3928 = vadd.f32 0.0, %v3927
    %v3929 = vpop.f32.mrb[0].mxu0
    %3930 = vmatprep.mubr.f32.mxu0 0.0
    %3931 = vmatmul.mubr.f32.gmra.mrb[0].mxu0 %v3844
    %v3932 = vpop.f32.mrb[0].mxu0
    %v3933 = vadd.f32 0.0, %v3932
    %v3934 = vpop.f32.mrb[0].mxu0
    %3935 = vmatprep.mubr.f32.mxu0 0.0
    %3936 = vmatmul.mubr.f32.gmra.mrb[0].mxu0 %v3846
    %v3937 = vpop.f32.mrb[0].mxu0
    %v3938 = vadd.f32 0.0, %v3937
    %v3939 = vpop.f32.mrb[0].mxu0
    %3940 = vdwg.mxu0
    %v3941 = vmul.f32 %v3923, 0.25
    %v3942 = vmul.f32 %v3928, 0.25
    %v3943 = vmul.f32 %v3933, 0.25
    %v3944 = vmul.f32 %v3938, 0.25
    %v3945 = vadd.f32 %v3941, %v375
    %v3946 = vadd.f32 %v3942, %v375
    %v3947 = vadd.f32 %v3943, %v375
    %v3948 = vadd.f32 %v3944, %v375
    %v3949 = vsel %vm244, %v3945, -inf
    %3950 = vmax.xlane.f32.xlu0 %v3949
    %v3951 = vpop.xlane.xlu0 %3950
    %v3952 = vsel %vm244, %v3946, -inf
    %3953 = vmax.xlane.f32.xlu0 %v3952
    %v3954 = vpop.xlane.xlu0 %3953
    %v3955 = vsel %vm244, %v3947, -inf
    %3956 = vmax.xlane.f32.xlu0 %v3955
    %v3957 = vpop.xlane.xlu0 %3956
    %v3958 = vsel %vm244, %v3948, -inf
    %3959 = vmax.xlane.f32.xlu0 %v3958
    %v3960 = vpop.xlane.xlu0 %3959
    %v3961 = vsub.f32 %v3945, %v3951
    %v3962 = vsub.f32 %v3946, %v3954
    %v3963 = vsub.f32 %v3947, %v3957
    %v3964 = vsub.f32 %v3948, %v3960
    %v3965 = vmul.f32 %v3961, 1.442695
    %v3966 = vpow.pop %v3965
    %v3967 = vmul.f32 %v3962, 1.442695
    %v3968 = vpow.pop %v3967
    %v3969 = vmul.f32 %v3963, 1.442695
    %v3970 = vpow.pop %v3969
    %v3971 = vmul.f32 %v3964, 1.442695
    %v3972 = vpow.pop %v3971
    %v3973 = vsel %vm244, %v3966, 0.0
    %3974 = vadd.xlane.f32.xlu0 %v3973
    %v3975 = vpop.xlane.xlu0 %3974
    %v3976 = vsel %vm244, %v3968, 0.0
    %3977 = vadd.xlane.f32.xlu0 %v3976
    %v3978 = vpop.xlane.xlu0 %3977
    %v3979 = vsel %vm244, %v3970, 0.0
    %3980 = vadd.xlane.f32.xlu0 %v3979
    %v3981 = vpop.xlane.xlu0 %3980
    %v3982 = vsel %vm244, %v3972, 0.0
    %3983 = vadd.xlane.f32.xlu0 %v3982
    %v3984 = vpop.xlane.xlu0 %3983
    %v3985 = vrcp.pop %v3975
    %v3986 = vrcp.pop %v3978
    %v3987 = vrcp.pop %v3981
    %v3988 = vrcp.pop %v3984
    %v3989 = vmul.f32 %v3966, %v3985
    %v3990 = vmul.f32 %v3968, %v3986
    %v3991 = vmul.f32 %v3970, %v3987
    %v3992 = vmul.f32 %v3972, %v3988
    %3993 = vrot.lane.b32.xlu0 %v2782, 48
    %v3994 = vpop.permute.xlu0 %3993
    %3995 = vrot.lane.b32.xlu0 %v2787, 48
    %v3996 = vpop.permute.xlu0 %3995
    %3997 = vrot.lane.b32.xlu0 %v2792, 48
    %v3998 = vpop.permute.xlu0 %3997
    %3999 = vrot.lane.b32.xlu0 %v2797, 48
    %v4000 = vpop.permute.xlu0 %3999
    %v4006 = vsel %vm244, %v3989, 0
    %v4009 = vsel %vm244, %v3990, 0
    %v4012 = vsel %vm244, %v3991, 0
    %v4015 = vsel %vm244, %v3992, 0
    %4017 = vmatprep.subr.mxu0 0.0
    %4018 = vmatpush1.msra.mxu0 %v3994
    %4019 = vmatprep.subr.mxu0 0.0
    %4020 = vmatpush1.msra.mxu0 %v3996
    %4021 = vmatprep.subr.mxu0 0.0
    %4022 = vmatpush1.msra.mxu0 %v3998
    %4023 = vmatprep.subr.mxu0 0.0
    %4024 = vmatpush1.msra.mxu0 %v4000
    %4025 = vmatprep.subr.mxu0 0.0
    %4026 = vmatpush1.msra.mxu0 0.0
    %4027 = vmatprep.subr.mxu0 0.0
    %4028 = vmatpush1.msra.mxu0 0.0
    %4029 = vmatprep.subr.mxu0 0.0
    %4030 = vmatpush1.msra.mxu0 0.0
    %4031 = vmatprep.subr.mxu0 0.0
    %4032 = vmatpush1.msra.mxu0 0.0
    %4033 = vmatprep.subr.mxu0 0.0
    %4034 = vmatpush1.msra.mxu0 0.0
    %4035 = vmatprep.subr.mxu0 0.0
    %4036 = vmatpush1.msra.mxu0 0.0
    %4037 = vmatprep.subr.mxu0 0.0
    %4038 = vmatpush1.msra.mxu0 0.0
    %4039 = vmatprep.subr.mxu0 0.0
    %4040 = vmatpush1.msra.mxu0 0.0
    %4041 = vmatprep.subr.mxu0 0.0
    %4042 = vmatpush1.msra.mxu0 0.0
    %4043 = vmatprep.subr.mxu0 0.0
    %4044 = vmatpush1.msra.mxu0 0.0
    %4045 = vmatprep.subr.mxu0 0.0
    %4046 = vmatpush1.msra.mxu0 0.0
    %4047 = vmatprep.subr.mxu0 0.0
    %4048 = vmatpush1.msra.mxu0 0.0
    %4049 = vmatprep.subr.mxu0 0.0
    %4050 = vmatpush1.msra.mxu0 0.0
    %4051 = vmatprep.subr.mxu0 0.0
    %4052 = vmatpush1.msra.mxu0 0.0
    %4053 = vmatprep.subr.mxu0 0.0
    %4054 = vmatpush1.msra.mxu0 0.0
    %4055 = vmatprep.subr.mxu0 0.0
    %4056 = vmatpush1.msra.mxu0 0.0
    %4057 = vmatprep.subr.mxu0 0.0
    %4058 = vmatpush1.msra.mxu0 0.0
    %4059 = vmatprep.subr.mxu0 0.0
    %4060 = vmatpush1.msra.mxu0 0.0
    %4061 = vmatprep.subr.mxu0 0.0
    %4062 = vmatpush1.msra.mxu0 0.0
    %4063 = vmatprep.subr.mxu0 0.0
    %4064 = vmatpush1.msra.mxu0 0.0
    %4065 = vmatprep.subr.mxu0 0.0
    %4066 = vmatpush1.msra.mxu0 0.0
    %4067 = vmatprep.subr.mxu0 0.0
    %4068 = vmatpush1.msra.mxu0 0.0
    %4069 = vmatprep.subr.mxu0 0.0
    %4070 = vmatpush1.msra.mxu0 0.0
    %4071 = vmatprep.subr.mxu0 0.0
    %4072 = vmatpush1.msra.mxu0 0.0
    %4073 = vmatprep.subr.mxu0 0.0
    %4074 = vmatpush1.msra.mxu0 0.0
    %4075 = vmatprep.subr.mxu0 0.0
    %4076 = vmatpush1.msra.mxu0 0.0
    %4077 = vmatprep.subr.mxu0 0.0
    %4078 = vmatpush1.msra.mxu0 0.0
    %4079 = vmatprep.subr.mxu0 0.0
    %4080 = vmatpush1.msra.mxu0 0.0
    %4081 = vmatprep.mubr.f32.mxu0 0.0
    %4082 = vmatmul.mubr.f32.gmra.mrb[0].mxu0 %v4006
    %v4083 = vpop.f32.mrb[0].mxu0
    %v4084 = vadd.f32 0.0, %v4083
    %v4085 = vpop.f32.mrb[0].mxu0
    %4086 = vmatprep.mubr.f32.mxu0 0.0
    %4087 = vmatmul.mubr.f32.gmra.mrb[0].mxu0 %v4009
    %v4088 = vpop.f32.mrb[0].mxu0
    %v4089 = vadd.f32 0.0, %v4088
    %v4090 = vpop.f32.mrb[0].mxu0
    %4091 = vmatprep.mubr.f32.mxu0 0.0
    %4092 = vmatmul.mubr.f32.gmra.mrb[0].mxu0 %v4012
    %v4093 = vpop.f32.mrb[0].mxu0
    %v4094 = vadd.f32 0.0, %v4093
    %v4095 = vpop.f32.mrb[0].mxu0
    %4096 = vmatprep.mubr.f32.mxu0 0.0
    %4097 = vmatmul.mubr.f32.gmra.mrb[0].mxu0 %v4015
    %v4098 = vpop.f32.mrb[0].mxu0
    %v4099 = vadd.f32 0.0, %v4098
    %v4100 = vpop.f32.mrb[0].mxu0
    %4101 = vdwg.mxu0
    %v4103 = vsel %vm112, %v4084, 0
    %v4106 = vsel %vm112, %v4089, 0
    %v4109 = vsel %vm112, %v4094, 0
    %v4112 = vsel %vm112, %v4099, 0
    %4114 = vmatprep.subr.mxu0 0.0
    %4115 = vmatpush1.msra.mxu0 %v3354
    %4116 = vmatprep.subr.mxu0 0.0
    %4117 = vmatpush1.msra.mxu0 %v3355
    %4118 = vmatprep.subr.mxu0 0.0
    %4119 = vmatpush1.msra.mxu0 0.0
    %4120 = vmatprep.subr.mxu0 0.0
    %4121 = vmatpush1.msra.mxu0 0.0
    %4122 = vmatprep.subr.mxu0 0.0
    %4123 = vmatpush1.msra.mxu0 0.0
    %4124 = vmatprep.subr.mxu0 0.0
    %4125 = vmatpush1.msra.mxu0 0.0
    %4126 = vmatprep.subr.mxu0 0.0
    %4127 = vmatpush1.msra.mxu0 0.0
    %4128 = vmatprep.subr.mxu0 0.0
    %4129 = vmatpush1.msra.mxu0 0.0
    %4130 = vmatprep.subr.mxu0 0.0
    %4131 = vmatpush1.msra.mxu0 0.0
    %4132 = vmatprep.subr.mxu0 0.0
    %4133 = vmatpush1.msra.mxu0 0.0
    %4134 = vmatprep.subr.mxu0 0.0
    %4135 = vmatpush1.msra.mxu0 0.0
    %4136 = vmatprep.subr.mxu0 0.0
    %4137 = vmatpush1.msra.mxu0 0.0
    %4138 = vmatprep.subr.mxu0 0.0
    %4139 = vmatpush1.msra.mxu0 0.0
    %4140 = vmatprep.subr.mxu0 0.0
    %4141 = vmatpush1.msra.mxu0 0.0
    %4142 = vmatprep.subr.mxu0 0.0
    %4143 = vmatpush1.msra.mxu0 0.0
    %4144 = vmatprep.subr.mxu0 0.0
    %4145 = vmatpush1.msra.mxu0 0.0
    %4146 = vmatprep.subr.mxu0 0.0
    %4147 = vmatpush1.msra.mxu0 0.0
    %4148 = vmatprep.subr.mxu0 0.0
    %4149 = vmatpush1.msra.mxu0 0.0
    %4150 = vmatprep.subr.mxu0 0.0
    %4151 = vmatpush1.msra.mxu0 0.0
    %4152 = vmatprep.subr.mxu0 0.0
    %4153 = vmatpush1.msra.mxu0 0.0
    %4154 = vmatprep.subr.mxu0 0.0
    %4155 = vmatpush1.msra.mxu0 0.0
    %4156 = vmatprep.subr.mxu0 0.0
    %4157 = vmatpush1.msra.mxu0 0.0
    %4158 = vmatprep.subr.mxu0 0.0
    %4159 = vmatpush1.msra.mxu0 0.0
    %4160 = vmatprep.subr.mxu0 0.0
    %4161 = vmatpush1.msra.mxu0 0.0
    %4162 = vmatprep.subr.mxu0 0.0
    %4163 = vmatpush1.msra.mxu0 0.0
    %4164 = vmatprep.subr.mxu0 0.0
    %4165 = vmatpush1.msra.mxu0 0.0
    %4166 = vmatprep.subr.mxu0 0.0
    %4167 = vmatpush1.msra.mxu0 0.0
    %4168 = vmatprep.subr.mxu0 0.0
    %4169 = vmatpush1.msra.mxu0 0.0
    %4170 = vmatprep.subr.mxu0 0.0
    %4171 = vmatpush1.msra.mxu0 0.0
    %4172 = vmatprep.subr.mxu0 0.0
    %4173 = vmatpush1.msra.mxu0 0.0
    %4174 = vmatprep.subr.mxu0 0.0
    %4175 = vmatpush1.msra.mxu0 0.0
    %4176 = vmatprep.subr.mxu0 0.0
    %4177 = vmatpush1.msra.mxu0 0.0
    %4178 = vmatprep.mubr.f32.mxu0 0.0
    %4179 = vmatmul.mubr.f32.gmra.mrb[0].mxu0 %v4103
    %v4180 = vpop.f32.mrb[0].mxu0
    %v4181 = vadd.f32 0.0, %v4180
    %v4182 = vpop.f32.mrb[0].mxu0
    %4183 = vmatprep.mubr.f32.mxu0 0.0
    %4184 = vmatmul.mubr.f32.gmra.mrb[0].mxu0 %v4106
    %v4185 = vpop.f32.mrb[0].mxu0
    %v4186 = vadd.f32 0.0, %v4185
    %v4187 = vpop.f32.mrb[0].mxu0
    %4188 = vmatprep.mubr.f32.mxu0 0.0
    %4189 = vmatmul.mubr.f32.gmra.mrb[0].mxu0 %v4109
    %v4190 = vpop.f32.mrb[0].mxu0
    %v4191 = vadd.f32 0.0, %v4190
    %v4192 = vpop.f32.mrb[0].mxu0
    %4193 = vmatprep.mubr.f32.mxu0 0.0
    %4194 = vmatmul.mubr.f32.gmra.mrb[0].mxu0 %v4112
    %v4195 = vpop.f32.mrb[0].mxu0
    %v4196 = vadd.f32 0.0, %v4195
    %v4197 = vpop.f32.mrb[0].mxu0
    %4198 = vdwg.mxu0
    %v4200 = vsel %vm112, %v3806, 0
    %v4203 = vsel %vm112, %v3811, 0
    %v4206 = vsel %vm112, %v3816, 0
    %v4209 = vsel %vm112, %v3821, 0
    %4211 = vmatprep.subr.mxu0 0.0
    %4212 = vmatpush1.msra.mxu0 %v3074
    %4213 = vmatprep.subr.mxu0 0.0
    %4214 = vmatpush1.msra.mxu0 %v3075
    %4215 = vmatprep.subr.mxu0 0.0
    %4216 = vmatpush1.msra.mxu0 0.0
    %4217 = vmatprep.subr.mxu0 0.0
    %4218 = vmatpush1.msra.mxu0 0.0
    %4219 = vmatprep.subr.mxu0 0.0
    %4220 = vmatpush1.msra.mxu0 0.0
    %4221 = vmatprep.subr.mxu0 0.0
    %4222 = vmatpush1.msra.mxu0 0.0
    %4223 = vmatprep.subr.mxu0 0.0
    %4224 = vmatpush1.msra.mxu0 0.0
    %4225 = vmatprep.subr.mxu0 0.0
    %4226 = vmatpush1.msra.mxu0 0.0
    %4227 = vmatprep.subr.mxu0 0.0
    %4228 = vmatpush1.msra.mxu0 0.0
    %4229 = vmatprep.subr.mxu0 0.0
    %4230 = vmatpush1.msra.mxu0 0.0
    %4231 = vmatprep.subr.mxu0 0.0
    %4232 = vmatpush1.msra.mxu0 0.0
    %4233 = vmatprep.subr.mxu0 0.0
    %4234 = vmatpush1.msra.mxu0 0.0
    %4235 = vmatprep.subr.mxu0 0.0
    %4236 = vmatpush1.msra.mxu0 0.0
    %4237 = vmatprep.subr.mxu0 0.0
    %4238 = vmatpush1.msra.mxu0 0.0
    %4239 = vmatprep.subr.mxu0 0.0
    %4240 = vmatpush1.msra.mxu0 0.0
    %4241 = vmatprep.subr.mxu0 0.0
    %4242 = vmatpush1.msra.mxu0 0.0
    %4243 = vmatprep.subr.mxu0 0.0
    %4244 = vmatpush1.msra.mxu0 0.0
    %4245 = vmatprep.subr.mxu0 0.0
    %4246 = vmatpush1.msra.mxu0 0.0
    %4247 = vmatprep.subr.mxu0 0.0
    %4248 = vmatpush1.msra.mxu0 0.0
    %4249 = vmatprep.subr.mxu0 0.0
    %4250 = vmatpush1.msra.mxu0 0.0
    %4251 = vmatprep.subr.mxu0 0.0
    %4252 = vmatpush1.msra.mxu0 0.0
    %4253 = vmatprep.subr.mxu0 0.0
    %4254 = vmatpush1.msra.mxu0 0.0
    %4255 = vmatprep.subr.mxu0 0.0
    %4256 = vmatpush1.msra.mxu0 0.0
    %4257 = vmatprep.subr.mxu0 0.0
    %4258 = vmatpush1.msra.mxu0 0.0
    %4259 = vmatprep.subr.mxu0 0.0
    %4260 = vmatpush1.msra.mxu0 0.0
    %4261 = vmatprep.subr.mxu0 0.0
    %4262 = vmatpush1.msra.mxu0 0.0
    %4263 = vmatprep.subr.mxu0 0.0
    %4264 = vmatpush1.msra.mxu0 0.0
    %4265 = vmatprep.subr.mxu0 0.0
    %4266 = vmatpush1.msra.mxu0 0.0
    %4267 = vmatprep.subr.mxu0 0.0
    %4268 = vmatpush1.msra.mxu0 0.0
    %4269 = vmatprep.subr.mxu0 0.0
    %4270 = vmatpush1.msra.mxu0 0.0
    %4271 = vmatprep.subr.mxu0 0.0
    %4272 = vmatpush1.msra.mxu0 0.0
    %4273 = vmatprep.subr.mxu0 0.0
    %4274 = vmatpush1.msra.mxu0 0.0
    %4275 = vmatprep.mubr.f32.mxu0 0.0
    %4276 = vmatmul.mubr.f32.gmra.mrb[0].mxu0 %v4200
    %v4277 = vpop.f32.mrb[0].mxu0
    %v4278 = vadd.f32 %v4181, %v4277
    %v4279 = vpop.f32.mrb[0].mxu0
    %4280 = vmatprep.mubr.f32.mxu0 0.0
    %4281 = vmatmul.mubr.f32.gmra.mrb[0].mxu0 %v4203
    %v4282 = vpop.f32.mrb[0].mxu0
    %v4283 = vadd.f32 %v4186, %v4282
    %v4284 = vpop.f32.mrb[0].mxu0
    %4285 = vmatprep.mubr.f32.mxu0 0.0
    %4286 = vmatmul.mubr.f32.gmra.mrb[0].mxu0 %v4206
    %v4287 = vpop.f32.mrb[0].mxu0
    %v4288 = vadd.f32 %v4191, %v4287
    %v4289 = vpop.f32.mrb[0].mxu0
    %4290 = vmatprep.mubr.f32.mxu0 0.0
    %4291 = vmatmul.mubr.f32.gmra.mrb[0].mxu0 %v4209
    %v4292 = vpop.f32.mrb[0].mxu0
    %v4293 = vadd.f32 %v4196, %v4292
    %v4294 = vpop.f32.mrb[0].mxu0
    %4295 = vdwg.mxu0
    %v4296 = vld [vmem:[%s2665 + $0x1] sm:$0x1]
    %v4297 = vlaneseq
    %v4298 = vshrl.u32 %v4297, 7
    %v4299 = vsub.s32 0, %v4298
    %v4300 = vrot.slane %v4296, %v4299
    %v4301 = vadd.f32 %v3532, %v4300
    %v4302 = vadd.f32 %v3537, %v4300
    %v4303 = vadd.f32 %v3542, %v4300
    %v4304 = vadd.f32 %v3547, %v4300
    %v4305 = vadd.f32 %v4278, %v4300
    %v4306 = vadd.f32 %v4283, %v4300
    %v4307 = vadd.f32 %v4288, %v4300
    %v4308 = vadd.f32 %v4293, %v4300
    %v4309 = vadd.f32 %v4301, %v2652
    %v4310 = vadd.f32 %v4302, %v2653
    %v4311 = vadd.f32 %v4303, %v2654
    %v4312 = vadd.f32 %v4304, %v2655
    %v4313 = vadd.f32 %v4305, %v2656
    %v4314 = vadd.f32 %v4306, %v2657
    %v4315 = vadd.f32 %v4307, %v2658
    %v4316 = vadd.f32 %v4308, %v2659
    %v4317 = vld [vmem:[%s2665 + $0x2] sm:$0x1]
    %v4318 = vld [vmem:[%s2665 + $0x3] sm:$0x1]
    %v4319 = vsel %vm244, %v4309, 0.0
    %4320 = vadd.xlane.f32.xlu0 %v4319
    %v4321 = vpop.xlane.xlu0 %4320
    %v4322 = vsel %vm244, %v4310, 0.0
    %4323 = vadd.xlane.f32.xlu0 %v4322
    %v4324 = vpop.xlane.xlu0 %4323
    %v4325 = vsel %vm244, %v4311, 0.0
    %4326 = vadd.xlane.f32.xlu0 %v4325
    %v4327 = vpop.xlane.xlu0 %4326
    %v4328 = vsel %vm244, %v4312, 0.0
    %4329 = vadd.xlane.f32.xlu0 %v4328
    %v4330 = vpop.xlane.xlu0 %4329
    %v4331 = vsel %vm244, %v4313, 0.0
    %4332 = vadd.xlane.f32.xlu0 %v4331
    %v4333 = vpop.xlane.xlu0 %4332
    %v4334 = vsel %vm244, %v4314, 0.0
    %4335 = vadd.xlane.f32.xlu0 %v4334
    %v4336 = vpop.xlane.xlu0 %4335
    %v4337 = vsel %vm244, %v4315, 0.0
    %4338 = vadd.xlane.f32.xlu0 %v4337
    %v4339 = vpop.xlane.xlu0 %4338
    %v4340 = vsel %vm244, %v4316, 0.0
    %4341 = vadd.xlane.f32.xlu0 %v4340
    %v4342 = vpop.xlane.xlu0 %4341
    %v4343 = vmul.f32 %v4321, %v269
    %v4344 = vmul.f32 %v4324, %v269
    %v4345 = vmul.f32 %v4327, %v269
    %v4346 = vmul.f32 %v4330, %v269
    %v4347 = vmul.f32 %v4333, %v269
    %v4348 = vmul.f32 %v4336, %v269
    %v4349 = vmul.f32 %v4339, %v269
    %v4350 = vmul.f32 %v4342, %v269
    %v4351 = vsub.f32 %v4309, %v4343
    %v4352 = vsub.f32 %v4310, %v4344
    %v4353 = vsub.f32 %v4311, %v4345
    %v4354 = vsub.f32 %v4312, %v4346
    %v4355 = vsub.f32 %v4313, %v4347
    %v4356 = vsub.f32 %v4314, %v4348
    %v4357 = vsub.f32 %v4315, %v4349
    %v4358 = vsub.f32 %v4316, %v4350
    %v4359 = vmul.f32 %v4351, %v4351
    %v4360 = vmul.f32 %v4352, %v4352
    %v4361 = vmul.f32 %v4353, %v4353
    %v4362 = vmul.f32 %v4354, %v4354
    %v4363 = vmul.f32 %v4355, %v4355
    %v4364 = vmul.f32 %v4356, %v4356
    %v4365 = vmul.f32 %v4357, %v4357
    %v4366 = vmul.f32 %v4358, %v4358
    %v4367 = vsel %vm244, %v4359, 0.0
    %4368 = vadd.xlane.f32.xlu0 %v4367
    %v4369 = vpop.xlane.xlu0 %4368
    %v4370 = vsel %vm244, %v4360, 0.0
    %4371 = vadd.xlane.f32.xlu0 %v4370
    %v4372 = vpop.xlane.xlu0 %4371
    %v4373 = vsel %vm244, %v4361, 0.0
    %4374 = vadd.xlane.f32.xlu0 %v4373
    %v4375 = vpop.xlane.xlu0 %4374
    %v4376 = vsel %vm244, %v4362, 0.0
    %4377 = vadd.xlane.f32.xlu0 %v4376
    %v4378 = vpop.xlane.xlu0 %4377
    %v4379 = vsel %vm244, %v4363, 0.0
    %4380 = vadd.xlane.f32.xlu0 %v4379
    %v4381 = vpop.xlane.xlu0 %4380
    %v4382 = vsel %vm244, %v4364, 0.0
    %4383 = vadd.xlane.f32.xlu0 %v4382
    %v4384 = vpop.xlane.xlu0 %4383
    %v4385 = vsel %vm244, %v4365, 0.0
    %4386 = vadd.xlane.f32.xlu0 %v4385
    %v4387 = vpop.xlane.xlu0 %4386
    %v4388 = vsel %vm244, %v4366, 0.0
    %4389 = vadd.xlane.f32.xlu0 %v4388
    %v4390 = vpop.xlane.xlu0 %4389
    %v4391 = vmul.f32 %v4369, %v269
    %v4392 = vmul.f32 %v4372, %v269
    %v4393 = vmul.f32 %v4375, %v269
    %v4394 = vmul.f32 %v4378, %v269
    %v4395 = vmul.f32 %v4381, %v269
    %v4396 = vmul.f32 %v4384, %v269
    %v4397 = vmul.f32 %v4387, %v269
    %v4398 = vmul.f32 %v4390, %v269
    %v4399 = vadd.f32 %v4391, 1e-12
    %v4400 = vadd.f32 %v4392, 1e-12
    %v4401 = vadd.f32 %v4393, 1e-12
    %v4402 = vadd.f32 %v4394, 1e-12
    %v4403 = vadd.f32 %v4395, 1e-12
    %v4404 = vadd.f32 %v4396, 1e-12
    %v4405 = vadd.f32 %v4397, 1e-12
    %v4406 = vadd.f32 %v4398, 1e-12
    %v4407 = vrsqrt.pop %v4399
    %v4408 = vrsqrt.pop %v4400
    %v4409 = vrsqrt.pop %v4401
    %v4410 = vrsqrt.pop %v4402
    %v4411 = vrsqrt.pop %v4403
    %v4412 = vrsqrt.pop %v4404
    %v4413 = vrsqrt.pop %v4405
    %v4414 = vrsqrt.pop %v4406
    %v4415 = vmul.f32 %v4351, %v4407
    %v4416 = vmul.f32 %v4352, %v4408
    %v4417 = vmul.f32 %v4353, %v4409
    %v4418 = vmul.f32 %v4354, %v4410
    %v4419 = vmul.f32 %v4355, %v4411
    %v4420 = vmul.f32 %v4356, %v4412
    %v4421 = vmul.f32 %v4357, %v4413
    %v4422 = vmul.f32 %v4358, %v4414
    %v4423 = vlaneseq
    %v4424 = vshrl.u32 %v4423, 7
    %v4425 = vsub.s32 0, %v4424
    %v4426 = vrot.slane %v4317, %v4425
    %v4427 = vmul.f32 %v4415, %v4426
    %v4428 = vmul.f32 %v4416, %v4426
    %v4429 = vmul.f32 %v4417, %v4426
    %v4430 = vmul.f32 %v4418, %v4426
    %v4431 = vmul.f32 %v4419, %v4426
    %v4432 = vmul.f32 %v4420, %v4426
    %v4433 = vmul.f32 %v4421, %v4426
    %v4434 = vmul.f32 %v4422, %v4426
    %v4435 = vlaneseq
    %v4436 = vshrl.u32 %v4435, 7
    %v4437 = vsub.s32 0, %v4436
    %v4438 = vrot.slane %v4318, %v4437
    %v4439 = vadd.f32 %v4427, %v4438
    %v4440 = vadd.f32 %v4428, %v4438
    %v4441 = vadd.f32 %v4429, %v4438
    %v4442 = vadd.f32 %v4430, %v4438
    %v4443 = vadd.f32 %v4431, %v4438
    %v4444 = vadd.f32 %v4432, %v4438
    %v4445 = vadd.f32 %v4433, %v4438
    %v4446 = vadd.f32 %v4434, %v4438
    %v4447 = vld [vmem:[%s2660 + $0x10] sm:$0xff]
    %v4448 = vld [vmem:[%s2660 + $0x30] sm:$0xff]
    %v4449 = vld [vmem:[%s2660 + $0x50] sm:$0xff]
    %v4450 = vld [vmem:[%s2660 + $0x70] sm:$0xff]
    %v4451 = vld [vmem:[%s2665 + $0x4] sm:$0x1]
    %v4452 = vlaneseq
    %v4453 = vshrl.u32 %v4452, 7
    %v4454 = vsub.s32 0, %v4453
    %v4455 = vrot.slane %v4451, %v4454
    %v4457 = vsel %vm244, %v4439, 0
    %v4460 = vsel %vm244, %v4440, 0
    %v4463 = vsel %vm244, %v4441, 0
    %v4466 = vsel %vm244, %v4442, 0
    %v4469 = vsel %vm244, %v4443, 0
    %v4472 = vsel %vm244, %v4444, 0
    %v4475 = vsel %vm244, %v4445, 0
    %v4478 = vsel %vm244, %v4446, 0
    %4480 = vmatprep.subr.mxu0 0.0
    %4481 = vmatpush1.msra.mxu0 %v4447
    %4482 = vmatprep.subr.mxu0 0.0
    %4483 = vmatpush1.msra.mxu0 %v4448
    %4484 = vmatprep.subr.mxu0 0.0
    %4485 = vmatpush1.msra.mxu0 %v4449
    %4486 = vmatprep.subr.mxu0 0.0
    %4487 = vmatpush1.msra.mxu0 %v4450
    %4488 = vmatprep.subr.mxu0 0.0
    %4489 = vmatpush1.msra.mxu0 0.0
    %4490 = vmatprep.subr.mxu0 0.0
    %4491 = vmatpush1.msra.mxu0 0.0
    %4492 = vmatprep.subr.mxu0 0.0
    %4493 = vmatpush1.msra.mxu0 0.0
    %4494 = vmatprep.subr.mxu0 0.0
    %4495 = vmatpush1.msra.mxu0 0.0
    %4496 = vmatprep.subr.mxu0 0.0
    %4497 = vmatpush1.msra.mxu0 0.0
    %4498 = vmatprep.subr.mxu0 0.0
    %4499 = vmatpush1.msra.mxu0 0.0
    %4500 = vmatprep.subr.mxu0 0.0
    %4501 = vmatpush1.msra.mxu0 0.0
    %4502 = vmatprep.subr.mxu0 0.0
    %4503 = vmatpush1.msra.mxu0 0.0
    %4504 = vmatprep.subr.mxu0 0.0
    %4505 = vmatpush1.msra.mxu0 0.0
    %4506 = vmatprep.subr.mxu0 0.0
    %4507 = vmatpush1.msra.mxu0 0.0
    %4508 = vmatprep.subr.mxu0 0.0
    %4509 = vmatpush1.msra.mxu0 0.0
    %4510 = vmatprep.subr.mxu0 0.0
    %4511 = vmatpush1.msra.mxu0 0.0
    %4512 = vmatprep.subr.mxu0 0.0
    %4513 = vmatpush1.msra.mxu0 0.0
    %4514 = vmatprep.subr.mxu0 0.0
    %4515 = vmatpush1.msra.mxu0 0.0
    %4516 = vmatprep.subr.mxu0 0.0
    %4517 = vmatpush1.msra.mxu0 0.0
    %4518 = vmatprep.subr.mxu0 0.0
    %4519 = vmatpush1.msra.mxu0 0.0
    %4520 = vmatprep.subr.mxu0 0.0
    %4521 = vmatpush1.msra.mxu0 0.0
    %4522 = vmatprep.subr.mxu0 0.0
    %4523 = vmatpush1.msra.mxu0 0.0
    %4524 = vmatprep.subr.mxu0 0.0
    %4525 = vmatpush1.msra.mxu0 0.0
    %4526 = vmatprep.subr.mxu0 0.0
    %4527 = vmatpush1.msra.mxu0 0.0
    %4528 = vmatprep.subr.mxu0 0.0
    %4529 = vmatpush1.msra.mxu0 0.0
    %4530 = vmatprep.subr.mxu0 0.0
    %4531 = vmatpush1.msra.mxu0 0.0
    %4532 = vmatprep.subr.mxu0 0.0
    %4533 = vmatpush1.msra.mxu0 0.0
    %4534 = vmatprep.subr.mxu0 0.0
    %4535 = vmatpush1.msra.mxu0 0.0
    %4536 = vmatprep.subr.mxu0 0.0
    %4537 = vmatpush1.msra.mxu0 0.0
    %4538 = vmatprep.subr.mxu0 0.0
    %4539 = vmatpush1.msra.mxu0 0.0
    %4540 = vmatprep.subr.mxu0 0.0
    %4541 = vmatpush1.msra.mxu0 0.0
    %4542 = vmatprep.subr.mxu0 0.0
    %4543 = vmatpush1.msra.mxu0 0.0
    %4544 = vmatprep.mubr.f32.mxu0 0.0
    %4545 = vmatmul.mubr.f32.gmra.mrb[0].mxu0 %v4457
    %v4546 = vpop.f32.mrb[0].mxu0
    %v4547 = vadd.f32 %v4455, %v4546
    %v4548 = vpop.f32.mrb[0].mxu0
    %4549 = vmatprep.mubr.f32.mxu0 0.0
    %4550 = vmatmul.mubr.f32.gmra.mrb[0].mxu0 %v4460
    %v4551 = vpop.f32.mrb[0].mxu0
    %v4552 = vadd.f32 %v4455, %v4551
    %v4553 = vpop.f32.mrb[0].mxu0
    %4554 = vmatprep.mubr.f32.mxu0 0.0
    %4555 = vmatmul.mubr.f32.gmra.mrb[0].mxu0 %v4463
    %v4556 = vpop.f32.mrb[0].mxu0
    %v4557 = vadd.f32 %v4455, %v4556
    %v4558 = vpop.f32.mrb[0].mxu0
    %4559 = vmatprep.mubr.f32.mxu0 0.0
    %4560 = vmatmul.mubr.f32.gmra.mrb[0].mxu0 %v4466
    %v4561 = vpop.f32.mrb[0].mxu0
    %v4562 = vadd.f32 %v4455, %v4561
    %v4563 = vpop.f32.mrb[0].mxu0
    %4564 = vmatprep.mubr.f32.mxu0 0.0
    %4565 = vmatmul.mubr.f32.gmra.mrb[0].mxu0 %v4469
    %v4566 = vpop.f32.mrb[0].mxu0
    %v4567 = vadd.f32 %v4455, %v4566
    %v4568 = vpop.f32.mrb[0].mxu0
    %4569 = vmatprep.mubr.f32.mxu0 0.0
    %4570 = vmatmul.mubr.f32.gmra.mrb[0].mxu0 %v4472
    %v4571 = vpop.f32.mrb[0].mxu0
    %v4572 = vadd.f32 %v4455, %v4571
    %v4573 = vpop.f32.mrb[0].mxu0
    %4574 = vmatprep.mubr.f32.mxu0 0.0
    %4575 = vmatmul.mubr.f32.gmra.mrb[0].mxu0 %v4475
    %v4576 = vpop.f32.mrb[0].mxu0
    %v4577 = vadd.f32 %v4455, %v4576
    %v4578 = vpop.f32.mrb[0].mxu0
    %4579 = vmatprep.mubr.f32.mxu0 0.0
    %4580 = vmatmul.mubr.f32.gmra.mrb[0].mxu0 %v4478
    %v4581 = vpop.f32.mrb[0].mxu0
    %v4582 = vadd.f32 %v4455, %v4581
    %v4583 = vpop.f32.mrb[0].mxu0
    %4584 = vdwg.mxu0
    %v4585 = vmul.f32 %v4547, 0.5
    %v4586 = vmul.f32 %v4552, 0.5
    %v4587 = vmul.f32 %v4557, 0.5
    %v4588 = vmul.f32 %v4562, 0.5
    %v4589 = vmul.f32 %v4567, 0.5
    %v4590 = vmul.f32 %v4572, 0.5
    %v4591 = vmul.f32 %v4577, 0.5
    %v4592 = vmul.f32 %v4582, 0.5
    %v4593 = vmul.f32 %v4547, 0.044715
    %v4594 = vmul.f32 %v4552, 0.044715
    %v4595 = vmul.f32 %v4557, 0.044715
    %v4596 = vmul.f32 %v4562, 0.044715
    %v4597 = vmul.f32 %v4567, 0.044715
    %v4598 = vmul.f32 %v4572, 0.044715
    %v4599 = vmul.f32 %v4577, 0.044715
    %v4600 = vmul.f32 %v4582, 0.044715
    %v4601 = vmul.f32 %v4593, %v4547
    %v4602 = vmul.f32 %v4594, %v4552
    %v4603 = vmul.f32 %v4595, %v4557
    %v4604 = vmul.f32 %v4596, %v4562
    %v4605 = vmul.f32 %v4597, %v4567
    %v4606 = vmul.f32 %v4598, %v4572
    %v4607 = vmul.f32 %v4599, %v4577
    %v4608 = vmul.f32 %v4600, %v4582
    %v4609 = vmul.f32 %v4601, %v4547
    %v4610 = vmul.f32 %v4602, %v4552
    %v4611 = vmul.f32 %v4603, %v4557
    %v4612 = vmul.f32 %v4604, %v4562
    %v4613 = vmul.f32 %v4605, %v4567
    %v4614 = vmul.f32 %v4606, %v4572
    %v4615 = vmul.f32 %v4607, %v4577
    %v4616 = vmul.f32 %v4608, %v4582
    %v4617 = vadd.f32 %v4547, %v4609
    %v4618 = vadd.f32 %v4552, %v4610
    %v4619 = vadd.f32 %v4557, %v4611
    %v4620 = vadd.f32 %v4562, %v4612
    %v4621 = vadd.f32 %v4567, %v4613
    %v4622 = vadd.f32 %v4572, %v4614
    %v4623 = vadd.f32 %v4577, %v4615
    %v4624 = vadd.f32 %v4582, %v4616
    %v4625 = vmul.f32 %v4617, 0.7978846
    %v4626 = vmul.f32 %v4618, 0.7978846
    %v4627 = vmul.f32 %v4619, 0.7978846
    %v4628 = vmul.f32 %v4620, 0.7978846
    %v4629 = vmul.f32 %v4621, 0.7978846
    %v4630 = vmul.f32 %v4622, 0.7978846
    %v4631 = vmul.f32 %v4623, 0.7978846
    %v4632 = vmul.f32 %v4624, 0.7978846
    %v4633 = vtanh.pop %v4625
    %v4634 = vtanh.pop %v4626
    %v4635 = vtanh.pop %v4627
    %v4636 = vtanh.pop %v4628
    %v4637 = vtanh.pop %v4629
    %v4638 = vtanh.pop %v4630
    %v4639 = vtanh.pop %v4631
    %v4640 = vtanh.pop %v4632
    %v4641 = vadd.f32 %v4633, 1.0
    %v4642 = vadd.f32 %v4634, 1.0
    %v4643 = vadd.f32 %v4635, 1.0
    %v4644 = vadd.f32 %v4636, 1.0
    %v4645 = vadd.f32 %v4637, 1.0
    %v4646 = vadd.f32 %v4638, 1.0
    %v4647 = vadd.f32 %v4639, 1.0
    %v4648 = vadd.f32 %v4640, 1.0
    %v4649 = vmul.f32 %v4585, %v4641
    %v4650 = vmul.f32 %v4586, %v4642
    %v4651 = vmul.f32 %v4587, %v4643
    %v4652 = vmul.f32 %v4588, %v4644
    %v4653 = vmul.f32 %v4589, %v4645
    %v4654 = vmul.f32 %v4590, %v4646
    %v4655 = vmul.f32 %v4591, %v4647
    %v4656 = vmul.f32 %v4592, %v4648
    %v4657 = vld [vmem:[%s2660 + $0x18] sm:$0xff]
    %v4658 = vld [vmem:[%s2660 + $0x38] sm:$0xff]
    %v4659 = vld [vmem:[%s2660 + $0x58] sm:$0xff]
    %v4660 = vld [vmem:[%s2660 + $0x78] sm:$0xff]
    %v4661 = vld [vmem:[%s2665 + $0x5] sm:$0x1]
    %v4662 = vlaneseq
    %v4663 = vshrl.u32 %v4662, 7
    %v4664 = vsub.s32 0, %v4663
    %v4665 = vrot.slane %v4661, %v4664
    %v4667 = vsel %vm2380, %v4649, 0
    %v4670 = vsel %vm2380, %v4650, 0
    %v4673 = vsel %vm2380, %v4651, 0
    %v4676 = vsel %vm2380, %v4652, 0
    %v4679 = vsel %vm2380, %v4653, 0
    %v4682 = vsel %vm2380, %v4654, 0
    %v4685 = vsel %vm2380, %v4655, 0
    %v4688 = vsel %vm2380, %v4656, 0
    %v4691 = vsel %vm2380, %v4657, 0
    %v4694 = vsel %vm2380, %v4658, 0
    %v4697 = vsel %vm2380, %v4659, 0
    %v4700 = vsel %vm2380, %v4660, 0
    %4702 = vmatprep.subr.mxu0 0.0
    %4703 = vmatpush1.xpose.msra.mxu0 %v4691
    %4704 = vmatprep.subr.mxu0 0.0
    %4705 = vmatpush1.xpose.msra.mxu0 %v4694
    %4706 = vmatprep.subr.mxu0 0.0
    %4707 = vmatpush1.xpose.msra.mxu0 %v4697
    %4708 = vmatprep.subr.mxu0 0.0
    %4709 = vmatpush1.xpose.msra.mxu0 %v4700
    %4710 = vmatprep.subr.mxu0 0.0
    %4711 = vmatpush1.xpose.msra.mxu0 0.0
    %4712 = vmatprep.subr.mxu0 0.0
    %4713 = vmatpush1.xpose.msra.mxu0 0.0
    %4714 = vmatprep.subr.mxu0 0.0
    %4715 = vmatpush1.xpose.msra.mxu0 0.0
    %4716 = vmatprep.subr.mxu0 0.0
    %4717 = vmatpush1.xpose.msra.mxu0 0.0
    %4718 = vmatprep.subr.mxu0 0.0
    %4719 = vmatpush1.xpose.msra.mxu0 0.0
    %4720 = vmatprep.subr.mxu0 0.0
    %4721 = vmatpush1.xpose.msra.mxu0 0.0
    %4722 = vmatprep.subr.mxu0 0.0
    %4723 = vmatpush1.xpose.msra.mxu0 0.0
    %4724 = vmatprep.subr.mxu0 0.0
    %4725 = vmatpush1.xpose.msra.mxu0 0.0
    %4726 = vmatprep.subr.mxu0 0.0
    %4727 = vmatpush1.xpose.msra.mxu0 0.0
    %4728 = vmatprep.subr.mxu0 0.0
    %4729 = vmatpush1.xpose.msra.mxu0 0.0
    %4730 = vmatprep.subr.mxu0 0.0
    %4731 = vmatpush1.xpose.msra.mxu0 0.0
    %4732 = vmatprep.subr.mxu0 0.0
    %4733 = vmatpush1.xpose.msra.mxu0 0.0
    %4734 = vmatprep.subr.mxu0 0.0
    %4735 = vmatpush1.xpose.msra.mxu0 0.0
    %4736 = vmatprep.subr.mxu0 0.0
    %4737 = vmatpush1.xpose.msra.mxu0 0.0
    %4738 = vmatprep.subr.mxu0 0.0
    %4739 = vmatpush1.xpose.msra.mxu0 0.0
    %4740 = vmatprep.subr.mxu0 0.0
    %4741 = vmatpush1.xpose.msra.mxu0 0.0
    %4742 = vmatprep.subr.mxu0 0.0
    %4743 = vmatpush1.xpose.msra.mxu0 0.0
    %4744 = vmatprep.subr.mxu0 0.0
    %4745 = vmatpush1.xpose.msra.mxu0 0.0
    %4746 = vmatprep.subr.mxu0 0.0
    %4747 = vmatpush1.xpose.msra.mxu0 0.0
    %4748 = vmatprep.subr.mxu0 0.0
    %4749 = vmatpush1.xpose.msra.mxu0 0.0
    %4750 = vmatprep.subr.mxu0 0.0
    %4751 = vmatpush1.xpose.msra.mxu0 0.0
    %4752 = vmatprep.subr.mxu0 0.0
    %4753 = vmatpush1.xpose.msra.mxu0 0.0
    %4754 = vmatprep.subr.mxu0 0.0
    %4755 = vmatpush1.xpose.msra.mxu0 0.0
    %4756 = vmatprep.subr.mxu0 0.0
    %4757 = vmatpush1.xpose.msra.mxu0 0.0
    %4758 = vmatprep.subr.mxu0 0.0
    %4759 = vmatpush1.xpose.msra.mxu0 0.0
    %4760 = vmatprep.subr.mxu0 0.0
    %4761 = vmatpush1.xpose.msra.mxu0 0.0
    %4762 = vmatprep.subr.mxu0 0.0
    %4763 = vmatpush1.xpose.msra.mxu0 0.0
    %4764 = vmatprep.subr.mxu0 0.0
    %4765 = vmatpush1.xpose.msra.mxu0 0.0
    %4766 = vmatprep.mubr.f32.mxu0 0.0
    %4767 = vmatmul.mubr.f32.gmra.mrb[0].mxu0 %v4667
    %v4768 = vpop.f32.mrb[0].mxu0
    %v4769 = vadd.f32 %v4665, %v4768
    %v4770 = vpop.f32.mrb[0].mxu0
    %4771 = vmatprep.mubr.f32.mxu0 0.0
    %4772 = vmatmul.mubr.f32.gmra.mrb[0].mxu0 %v4670
    %v4773 = vpop.f32.mrb[0].mxu0
    %v4774 = vadd.f32 %v4665, %v4773
    %v4775 = vpop.f32.mrb[0].mxu0
    %4776 = vmatprep.mubr.f32.mxu0 0.0
    %4777 = vmatmul.mubr.f32.gmra.mrb[0].mxu0 %v4673
    %v4778 = vpop.f32.mrb[0].mxu0
    %v4779 = vadd.f32 %v4665, %v4778
    %v4780 = vpop.f32.mrb[0].mxu0
    %4781 = vmatprep.mubr.f32.mxu0 0.0
    %4782 = vmatmul.mubr.f32.gmra.mrb[0].mxu0 %v4676
    %v4783 = vpop.f32.mrb[0].mxu0
    %v4784 = vadd.f32 %v4665, %v4783
    %v4785 = vpop.f32.mrb[0].mxu0
    %4786 = vmatprep.mubr.f32.mxu0 0.0
    %4787 = vmatmul.mubr.f32.gmra.mrb[0].mxu0 %v4679
    %v4788 = vpop.f32.mrb[0].mxu0
    %v4789 = vadd.f32 %v4665, %v4788
    %v4790 = vpop.f32.mrb[0].mxu0
    %4791 = vmatprep.mubr.f32.mxu0 0.0
    %4792 = vmatmul.mubr.f32.gmra.mrb[0].mxu0 %v4682
    %v4793 = vpop.f32.mrb[0].mxu0
    %v4794 = vadd.f32 %v4665, %v4793
    %v4795 = vpop.f32.mrb[0].mxu0
    %4796 = vmatprep.mubr.f32.mxu0 0.0
    %4797 = vmatmul.mubr.f32.gmra.mrb[0].mxu0 %v4685
    %v4798 = vpop.f32.mrb[0].mxu0
    %v4799 = vadd.f32 %v4665, %v4798
    %v4800 = vpop.f32.mrb[0].mxu0
    %4801 = vmatprep.mubr.f32.mxu0 0.0
    %4802 = vmatmul.mubr.f32.gmra.mrb[0].mxu0 %v4688
    %v4803 = vpop.f32.mrb[0].mxu0
    %v4804 = vadd.f32 %v4665, %v4803
    %v4805 = vpop.f32.mrb[0].mxu0
    %4806 = vdwg.mxu0
    %v4807 = vadd.f32 %v4769, %v4439
    %v4808 = vadd.f32 %v4774, %v4440
    %v4809 = vadd.f32 %v4779, %v4441
    %v4810 = vadd.f32 %v4784, %v4442
    %v4811 = vadd.f32 %v4789, %v4443
    %v4812 = vadd.f32 %v4794, %v4444
    %v4813 = vadd.f32 %v4799, %v4445
    %v4814 = vadd.f32 %v4804, %v4446
    %v4815 = vld [vmem:[%s2665 + $0x6] sm:$0x1]
    %v4816 = vld [vmem:[%s2665 + $0x7] sm:$0x1]
    %v4817 = vsel %vm244, %v4807, 0.0
    %4818 = vadd.xlane.f32.xlu0 %v4817
    %v4819 = vpop.xlane.xlu0 %4818
    %v4820 = vsel %vm244, %v4808, 0.0
    %4821 = vadd.xlane.f32.xlu0 %v4820
    %v4822 = vpop.xlane.xlu0 %4821
    %v4823 = vsel %vm244, %v4809, 0.0
    %4824 = vadd.xlane.f32.xlu0 %v4823
    %v4825 = vpop.xlane.xlu0 %4824
    %v4826 = vsel %vm244, %v4810, 0.0
    %4827 = vadd.xlane.f32.xlu0 %v4826
    %v4828 = vpop.xlane.xlu0 %4827
    %v4829 = vsel %vm244, %v4811, 0.0
    %4830 = vadd.xlane.f32.xlu0 %v4829
    %v4831 = vpop.xlane.xlu0 %4830
    %v4832 = vsel %vm244, %v4812, 0.0
    %4833 = vadd.xlane.f32.xlu0 %v4832
    %v4834 = vpop.xlane.xlu0 %4833
    %v4835 = vsel %vm244, %v4813, 0.0
    %4836 = vadd.xlane.f32.xlu0 %v4835
    %v4837 = vpop.xlane.xlu0 %4836
    %v4838 = vsel %vm244, %v4814, 0.0
    %4839 = vadd.xlane.f32.xlu0 %v4838
    %v4840 = vpop.xlane.xlu0 %4839
    %v4841 = vmul.f32 %v4819, %v269
    %v4842 = vmul.f32 %v4822, %v269
    %v4843 = vmul.f32 %v4825, %v269
    %v4844 = vmul.f32 %v4828, %v269
    %v4845 = vmul.f32 %v4831, %v269
    %v4846 = vmul.f32 %v4834, %v269
    %v4847 = vmul.f32 %v4837, %v269
    %v4848 = vmul.f32 %v4840, %v269
    %v4849 = vsub.f32 %v4807, %v4841
    %v4850 = vsub.f32 %v4808, %v4842
    %v4851 = vsub.f32 %v4809, %v4843
    %v4852 = vsub.f32 %v4810, %v4844
    %v4853 = vsub.f32 %v4811, %v4845
    %v4854 = vsub.f32 %v4812, %v4846
    %v4855 = vsub.f32 %v4813, %v4847
    %v4856 = vsub.f32 %v4814, %v4848
    %v4857 = vmul.f32 %v4849, %v4849
    %v4858 = vmul.f32 %v4850, %v4850
    %v4859 = vmul.f32 %v4851, %v4851
    %v4860 = vmul.f32 %v4852, %v4852
    %v4861 = vmul.f32 %v4853, %v4853
    %v4862 = vmul.f32 %v4854, %v4854
    %v4863 = vmul.f32 %v4855, %v4855
    %v4864 = vmul.f32 %v4856, %v4856
    %v4865 = vsel %vm244, %v4857, 0.0
    %4866 = vadd.xlane.f32.xlu0 %v4865
    %v4867 = vpop.xlane.xlu0 %4866
    %v4868 = vsel %vm244, %v4858, 0.0
    %4869 = vadd.xlane.f32.xlu0 %v4868
    %v4870 = vpop.xlane.xlu0 %4869
    %v4871 = vsel %vm244, %v4859, 0.0
    %4872 = vadd.xlane.f32.xlu0 %v4871
    %v4873 = vpop.xlane.xlu0 %4872
    %v4874 = vsel %vm244, %v4860, 0.0
    %4875 = vadd.xlane.f32.xlu0 %v4874
    %v4876 = vpop.xlane.xlu0 %4875
    %v4877 = vsel %vm244, %v4861, 0.0
    %4878 = vadd.xlane.f32.xlu0 %v4877
    %v4879 = vpop.xlane.xlu0 %4878
    %v4880 = vsel %vm244, %v4862, 0.0
    %4881 = vadd.xlane.f32.xlu0 %v4880
    %v4882 = vpop.xlane.xlu0 %4881
    %v4883 = vsel %vm244, %v4863, 0.0
    %4884 = vadd.xlane.f32.xlu0 %v4883
    %v4885 = vpop.xlane.xlu0 %4884
    %v4886 = vsel %vm244, %v4864, 0.0
    %4887 = vadd.xlane.f32.xlu0 %v4886
    %v4888 = vpop.xlane.xlu0 %4887
    %v4889 = vmul.f32 %v4867, %v269
    %v4890 = vmul.f32 %v4870, %v269
    %v4891 = vmul.f32 %v4873, %v269
    %v4892 = vmul.f32 %v4876, %v269
    %v4893 = vmul.f32 %v4879, %v269
    %v4894 = vmul.f32 %v4882, %v269
    %v4895 = vmul.f32 %v4885, %v269
    %v4896 = vmul.f32 %v4888, %v269
    %v4897 = vadd.f32 %v4889, 1e-12
    %v4898 = vadd.f32 %v4890, 1e-12
    %v4899 = vadd.f32 %v4891, 1e-12
    %v4900 = vadd.f32 %v4892, 1e-12
    %v4901 = vadd.f32 %v4893, 1e-12
    %v4902 = vadd.f32 %v4894, 1e-12
    %v4903 = vadd.f32 %v4895, 1e-12
    %v4904 = vadd.f32 %v4896, 1e-12
    %v4905 = vrsqrt.pop %v4897
    %v4906 = vrsqrt.pop %v4898
    %v4907 = vrsqrt.pop %v4899
    %v4908 = vrsqrt.pop %v4900
    %v4909 = vrsqrt.pop %v4901
    %v4910 = vrsqrt.pop %v4902
    %v4911 = vrsqrt.pop %v4903
    %v4912 = vrsqrt.pop %v4904
    %v4913 = vmul.f32 %v4849, %v4905
    %v4914 = vmul.f32 %v4850, %v4906
    %v4915 = vmul.f32 %v4851, %v4907
    %v4916 = vmul.f32 %v4852, %v4908
    %v4917 = vmul.f32 %v4853, %v4909
    %v4918 = vmul.f32 %v4854, %v4910
    %v4919 = vmul.f32 %v4855, %v4911
    %v4920 = vmul.f32 %v4856, %v4912
    %v4921 = vlaneseq
    %v4922 = vshrl.u32 %v4921, 7
    %v4923 = vsub.s32 0, %v4922
    %v4924 = vrot.slane %v4815, %v4923
    %v4925 = vmul.f32 %v4913, %v4924
    %v4926 = vmul.f32 %v4914, %v4924
    %v4927 = vmul.f32 %v4915, %v4924
    %v4928 = vmul.f32 %v4916, %v4924
    %v4929 = vmul.f32 %v4917, %v4924
    %v4930 = vmul.f32 %v4918, %v4924
    %v4931 = vmul.f32 %v4919, %v4924
    %v4932 = vmul.f32 %v4920, %v4924
    %v4933 = vlaneseq
    %v4934 = vshrl.u32 %v4933, 7
    %v4935 = vsub.s32 0, %v4934
    %v4936 = vrot.slane %v4816, %v4935
    %v4937 = vadd.f32 %v4925, %v4936
    %v4938 = vadd.f32 %v4926, %v4936
    %v4939 = vadd.f32 %v4927, %v4936
    %v4940 = vadd.f32 %v4928, %v4936
    %v4941 = vadd.f32 %v4929, %v4936
    %v4942 = vadd.f32 %v4930, %v4936
    %v4943 = vadd.f32 %v4931, %v4936
    %v4944 = vadd.f32 %v4932, %v4936
    %v4945 = vld [vmem:[%s4] sm:$0xff]
    %v4946 = vld [vmem:[%s4 + $0x8] sm:$0xff]
    %v4947 = vld [vmem:[%s4 + $0x10] sm:$0xff]
    %v4948 = vld [vmem:[%s4 + $0x18] sm:$0xff]
    %v4949 = vld [vmem:[%s4 + $0x20] sm:$0x1]
    %v4950 = vlaneseq
    %v4951 = vshrl.u32 %v4950, 7
    %v4952 = vsub.s32 0, %v4951
    %v4953 = vrot.slane %v4949, %v4952
    %vm4958 = vcmask 1041408
    %v4959 = vrot.slane %v4937, 6
    %v4960 = vrot.slane %v4938, 6
    %v4961 = vsel %vm4958, %v4959, %v4960
    %v4962 = vrot.slane %v4939, 6
    %v4963 = vsel %vm4958, %v4960, %v4962
    %v4964 = vrot.slane %v4940, 6
    %v4965 = vsel %vm4958, %v4962, %v4964
    %v4966 = vsel %vm244, %v4961, 0
    %v4968 = vsel %vm244, %v4963, 0
    %v4970 = vsel %vm244, %v4965, 0
    %4972 = vmatprep.subr.mxu0 0.0
    %4973 = vmatpush1.msra.mxu0 %v4945
    %4974 = vmatprep.subr.mxu0 0.0
    %4975 = vmatpush1.msra.mxu0 %v4946
    %4976 = vmatprep.subr.mxu0 0.0
    %4977 = vmatpush1.msra.mxu0 %v4947
    %4978 = vmatprep.subr.mxu0 0.0
    %4979 = vmatpush1.msra.mxu0 %v4948
    %4980 = vmatprep.subr.mxu0 0.0
    %4981 = vmatpush1.msra.mxu0 0.0
    %4982 = vmatprep.subr.mxu0 0.0
    %4983 = vmatpush1.msra.mxu0 0.0
    %4984 = vmatprep.subr.mxu0 0.0
    %4985 = vmatpush1.msra.mxu0 0.0
    %4986 = vmatprep.subr.mxu0 0.0
    %4987 = vmatpush1.msra.mxu0 0.0
    %4988 = vmatprep.subr.mxu0 0.0
    %4989 = vmatpush1.msra.mxu0 0.0
    %4990 = vmatprep.subr.mxu0 0.0
    %4991 = vmatpush1.msra.mxu0 0.0
    %4992 = vmatprep.subr.mxu0 0.0
    %4993 = vmatpush1.msra.mxu0 0.0
    %4994 = vmatprep.subr.mxu0 0.0
    %4995 = vmatpush1.msra.mxu0 0.0
    %4996 = vmatprep.subr.mxu0 0.0
    %4997 = vmatpush1.msra.mxu0 0.0
    %4998 = vmatprep.subr.mxu0 0.0
    %4999 = vmatpush1.msra.mxu0 0.0
    %5000 = vmatprep.subr.mxu0 0.0
    %5001 = vmatpush1.msra.mxu0 0.0
    %5002 = vmatprep.subr.mxu0 0.0
    %5003 = vmatpush1.msra.mxu0 0.0
    %5004 = vmatprep.subr.mxu0 0.0
    %5005 = vmatpush1.msra.mxu0 0.0
    %5006 = vmatprep.subr.mxu0 0.0
    %5007 = vmatpush1.msra.mxu0 0.0
    %5008 = vmatprep.subr.mxu0 0.0
    %5009 = vmatpush1.msra.mxu0 0.0
    %5010 = vmatprep.subr.mxu0 0.0
    %5011 = vmatpush1.msra.mxu0 0.0
    %5012 = vmatprep.subr.mxu0 0.0
    %5013 = vmatpush1.msra.mxu0 0.0
    %5014 = vmatprep.subr.mxu0 0.0
    %5015 = vmatpush1.msra.mxu0 0.0
    %5016 = vmatprep.subr.mxu0 0.0
    %5017 = vmatpush1.msra.mxu0 0.0
    %5018 = vmatprep.subr.mxu0 0.0
    %5019 = vmatpush1.msra.mxu0 0.0
    %5020 = vmatprep.subr.mxu0 0.0
    %5021 = vmatpush1.msra.mxu0 0.0
    %5022 = vmatprep.subr.mxu0 0.0
    %5023 = vmatpush1.msra.mxu0 0.0
    %5024 = vmatprep.subr.mxu0 0.0
    %5025 = vmatpush1.msra.mxu0 0.0
    %5026 = vmatprep.subr.mxu0 0.0
    %5027 = vmatpush1.msra.mxu0 0.0
    %5028 = vmatprep.subr.mxu0 0.0
    %5029 = vmatpush1.msra.mxu0 0.0
    %5030 = vmatprep.subr.mxu0 0.0
    %5031 = vmatpush1.msra.mxu0 0.0
    %5032 = vmatprep.subr.mxu0 0.0
    %5033 = vmatpush1.msra.mxu0 0.0
    %5034 = vmatprep.subr.mxu0 0.0
    %5035 = vmatpush1.msra.mxu0 0.0
    %5036 = vmatprep.mubr.f32.mxu0 0.0
    %5037 = vmatmul.mubr.f32.gmra.mrb[0].mxu0 %v4966
    %v5038 = vpop.f32.mrb[0].mxu0
    %v5039 = vadd.f32 %v4953, %v5038
    %v5040 = vpop.f32.mrb[0].mxu0
    %5041 = vmatprep.mubr.f32.mxu0 0.0
    %5042 = vmatmul.mubr.f32.gmra.mrb[0].mxu0 %v4968
    %v5043 = vpop.f32.mrb[0].mxu0
    %v5044 = vadd.f32 %v4953, %v5043
    %v5045 = vpop.f32.mrb[0].mxu0
    %5046 = vmatprep.mubr.f32.mxu0 0.0
    %5047 = vmatmul.mubr.f32.gmra.mrb[0].mxu0 %v4970
    %v5048 = vpop.f32.mrb[0].mxu0
    %v5049 = vadd.f32 %v4953, %v5048
    %v5050 = vpop.f32.mrb[0].mxu0
    %5051 = vdwg.mxu0
    %5052 = vst [vmem:[%s5] sm:$0xff] %v5039
    %5053 = vst [vmem:[%s5 + $0x8] sm:$0xff] %v5044
    %5054 = vst [vmem:[%s5 + $0x10] sm:$0x7] %v5049
    %v5059 = vrot.slane %v4941, 6
    %v5060 = vrot.slane %v4942, 6
    %v5061 = vsel %vm4958, %v5059, %v5060
    %v5062 = vrot.slane %v4943, 6
    %v5063 = vsel %vm4958, %v5060, %v5062
    %v5064 = vrot.slane %v4944, 6
    %v5065 = vsel %vm4958, %v5062, %v5064
    %v5066 = vsel %vm244, %v5061, 0
    %v5068 = vsel %vm244, %v5063, 0
    %v5070 = vsel %vm244, %v5065, 0
    %5072 = vmatprep.subr.mxu0 0.0
    %5073 = vmatpush1.msra.mxu0 %v4945
    %5074 = vmatprep.subr.mxu0 0.0
    %5075 = vmatpush1.msra.mxu0 %v4946
    %5076 = vmatprep.subr.mxu0 0.0
    %5077 = vmatpush1.msra.mxu0 %v4947
    %5078 = vmatprep.subr.mxu0 0.0
    %5079 = vmatpush1.msra.mxu0 %v4948
    %5080 = vmatprep.subr.mxu0 0.0
    %5081 = vmatpush1.msra.mxu0 0.0
    %5082 = vmatprep.subr.mxu0 0.0
    %5083 = vmatpush1.msra.mxu0 0.0
    %5084 = vmatprep.subr.mxu0 0.0
    %5085 = vmatpush1.msra.mxu0 0.0
    %5086 = vmatprep.subr.mxu0 0.0
    %5087 = vmatpush1.msra.mxu0 0.0
    %5088 = vmatprep.subr.mxu0 0.0
    %5089 = vmatpush1.msra.mxu0 0.0
    %5090 = vmatprep.subr.mxu0 0.0
    %5091 = vmatpush1.msra.mxu0 0.0
    %5092 = vmatprep.subr.mxu0 0.0
    %5093 = vmatpush1.msra.mxu0 0.0
    %5094 = vmatprep.subr.mxu0 0.0
    %5095 = vmatpush1.msra.mxu0 0.0
    %5096 = vmatprep.subr.mxu0 0.0
    %5097 = vmatpush1.msra.mxu0 0.0
    %5098 = vmatprep.subr.mxu0 0.0
    %5099 = vmatpush1.msra.mxu0 0.0
    %5100 = vmatprep.subr.mxu0 0.0
    %5101 = vmatpush1.msra.mxu0 0.0
    %5102 = vmatprep.subr.mxu0 0.0
    %5103 = vmatpush1.msra.mxu0 0.0
    %5104 = vmatprep.subr.mxu0 0.0
    %5105 = vmatpush1.msra.mxu0 0.0
    %5106 = vmatprep.subr.mxu0 0.0
    %5107 = vmatpush1.msra.mxu0 0.0
    %5108 = vmatprep.subr.mxu0 0.0
    %5109 = vmatpush1.msra.mxu0 0.0
    %5110 = vmatprep.subr.mxu0 0.0
    %5111 = vmatpush1.msra.mxu0 0.0
    %5112 = vmatprep.subr.mxu0 0.0
    %5113 = vmatpush1.msra.mxu0 0.0
    %5114 = vmatprep.subr.mxu0 0.0
    %5115 = vmatpush1.msra.mxu0 0.0
    %5116 = vmatprep.subr.mxu0 0.0
    %5117 = vmatpush1.msra.mxu0 0.0
    %5118 = vmatprep.subr.mxu0 0.0
    %5119 = vmatpush1.msra.mxu0 0.0
    %5120 = vmatprep.subr.mxu0 0.0
    %5121 = vmatpush1.msra.mxu0 0.0
    %5122 = vmatprep.subr.mxu0 0.0
    %5123 = vmatpush1.msra.mxu0 0.0
    %5124 = vmatprep.subr.mxu0 0.0
    %5125 = vmatpush1.msra.mxu0 0.0
    %5126 = vmatprep.subr.mxu0 0.0
    %5127 = vmatpush1.msra.mxu0 0.0
    %5128 = vmatprep.subr.mxu0 0.0
    %5129 = vmatpush1.msra.mxu0 0.0
    %5130 = vmatprep.subr.mxu0 0.0
    %5131 = vmatpush1.msra.mxu0 0.0
    %5132 = vmatprep.subr.mxu0 0.0
    %5133 = vmatpush1.msra.mxu0 0.0
    %5134 = vmatprep.subr.mxu0 0.0
    %5135 = vmatpush1.msra.mxu0 0.0
    %5136 = vmatprep.mubr.f32.mxu0 0.0
    %5137 = vmatmul.mubr.f32.gmra.mrb[0].mxu0 %v5066
    %v5138 = vpop.f32.mrb[0].mxu0
    %v5139 = vadd.f32 %v4953, %v5138
    %v5140 = vpop.f32.mrb[0].mxu0
    %5141 = vmatprep.mubr.f32.mxu0 0.0
    %5142 = vmatmul.mubr.f32.gmra.mrb[0].mxu0 %v5068
    %v5143 = vpop.f32.mrb[0].mxu0
    %v5144 = vadd.f32 %v4953, %v5143
    %v5145 = vpop.f32.mrb[0].mxu0
    %5146 = vmatprep.mubr.f32.mxu0 0.0
    %5147 = vmatmul.mubr.f32.gmra.mrb[0].mxu0 %v5070
    %v5148 = vpop.f32.mrb[0].mxu0
    %v5149 = vadd.f32 %v4953, %v5148
    %v5150 = vpop.f32.mrb[0].mxu0
    %5151 = vdwg.mxu0
    %s5152 = scalar_lea.vmem %s5, 24
    %5153 = vst [vmem:[%s5152] sm:$0xff] %v5139
    %5154 = vst [vmem:[%s5152 + $0x8] sm:$0xff] %v5144
    %5155 = vst [vmem:[%s5152 + $0x10] sm:$0x7] %v5149
    // Predicated region
    $region30: #{_lambda_.1} parent=1 // pred_check
      _
    $region31: #{_lambda_.1} parent=1 // pred_check_branch
      %5157 = sbr.rel (0) target = $region33
    $region32: #{_lambda_.1} parent=1 // pred_region
      _
    $region33: #{_lambda_.1} parent=1 // pred_fallthru
      _
    // Predicated region
    $region34: #{_lambda_.1} parent=1 // pred_check
      _
    $region35: #{_lambda_.1} parent=1 // pred_check_branch
      %5159 = sbr.rel (0) target = $region37
    $region36: #{_lambda_.1} parent=1 // pred_region
      _
    $region37: #{_lambda_.1} parent=1 // pred_fallthru
      _
    %5160 = vsyncpa [#allocation3], 1
    %5161 = vsyncpa [#allocation5], 1

</llo_original>
